<compile_context>
chip_gen: v6e
topology: v6e:2x2x1
jax: 0.10.0
libtpu: 0.0.40
codegen_flags: <defaults>
</compile_context>

<pallas_src>
import functools

import jax
import jax.numpy as jnp
import numpy as np
from jax.experimental import pallas as pl
from jax.experimental.pallas import tpu as pltpu


def _round_up(x, m):
    return (x + m - 1) // m * m


def _largest_divisor_tile(total, target, mult):
    """Largest multiple of `mult` <= target that divides `total` (total % mult == 0)."""
    t = max(mult, (min(target, total) // mult) * mult)
    while t > mult and total % t:
        t -= mult
    return t if total % t == 0 else mult


def _bpnn_kernel(fp_ref, mask_ref, w1f_ref, w1b_ref, b1_ref,
                 whf_ref, whb_ref, bh_ref, wo_ref, bo_ref,
                 o_ref, grad_ref, *, n_elements, n_extra):
    """Grid = (atom_tiles,) [parallel].  Element loop unrolled in-kernel;
    weights use constant index_maps so they are DMA'd once and stay in VMEM."""
    xb = fp_ref[...]                                   # (TN, D) bf16 (MXU input)
    o_acc = jnp.zeros(o_ref.shape, jnp.float32)
    g_acc = jnp.zeros(grad_ref.shape, jnp.float32)

    for e in range(n_elements):                        # static unroll
        m = mask_ref[e]                                # (TN, 1) f32
        wo_row = wo_ref[e]                             # (1, H)  f32

        # ---- forward MLP: (Linear -> Tanh) x num_layers, then Linear -> 1 ----
        # bf16 MXU inputs, f32 accumulate; tanh / elementwise stay f32 (v5e-safe).
        h = jnp.tanh(jnp.dot(xb, w1f_ref[e],
                             preferred_element_type=jnp.float32) + b1_ref[e])
        hs = [h]
        for i in range(n_extra):                       # static unroll
            h = jnp.tanh(jnp.dot(h.astype(jnp.bfloat16), whf_ref[e, i],
                                 preferred_element_type=jnp.float32)
                         + bh_ref[e, i])
            hs.append(h)
        # final Linear(H -> 1) via lane reduction (avoids a 1-wide MXU matmul)
        y = jnp.sum(h * wo_row, axis=-1, keepdims=True) + bo_ref[e]   # (TN, 1)
        o_acc = o_acc + m * y

        # ---- analytic backward: d(mask_e * y_e)/d fp (f32 dots for accuracy) ----
        g = (m * wo_row) * (1.0 - hs[-1] * hs[-1])                    # (TN, H)
        for i in range(n_extra - 1, -1, -1):
            g = jnp.dot(g, whb_ref[e, i], preferred_element_type=jnp.float32)
            g = g * (1.0 - hs[i] * hs[i])
        g_acc = g_acc + jnp.dot(g, w1b_ref[e],
                                preferred_element_type=jnp.float32)   # (TN, D)

    o_ref[...] = o_acc
    grad_ref[...] = g_acc.astype(grad_ref.dtype)


def _forces_kernel(g_ref, fpr_ref, out_ref, acc_ref):
    """forces_row = -(grad_flat_row @ fprimes); grid = (col_tiles, k_tiles)."""
    k = pl.program_id(1)

    @pl.when(k == 0)
    def _():
        acc_ref[...] = jnp.zeros_like(acc_ref)

    acc_ref[...] += jnp.dot(g_ref[...], fpr_ref[...],
                            preferred_element_type=jnp.float32)

    @pl.when(k == pl.num_programs(1) - 1)
    def _():
        out_ref[...] = -acc_ref[...]


def bpnn_forward(fingerprints, mask, image_onehot_T, fprimes, params,
                 *, tile_n=256, tile_k=2048, tile_c=512):
    """Returns (energy[n_images], forces[n_atoms, 3]) like BPNN.forward."""
    N, D = fingerprints.shape
    E = mask.shape[1]
    w1, b1, wh, bh, wo, bo = params          # torch-layout weights (f32)
    H = w1.shape[2]
    n_extra = wh.shape[1]
    assert n_extra >= 1, "need num_layers >= 2"

    # ---- trace-time weight pre-arrangement (both matmul orientations) ----
    w1f = jnp.swapaxes(w1, 1, 2).astype(jnp.bfloat16)   # (E, D, H) = W1^T, fwd MXU
    whf = jnp.swapaxes(wh, 2, 3).astype(jnp.bfloat16)   # (E, L, H, H) = Wi^T, fwd
    w1b = w1                                            # (E, H, D)  f32, backward
    whb = wh                                            # (E, L, H, H) f32, backward

    # ---- atom tiling: big tiles; but >= 2 tiles when N is small (v7x 2 TCs) ----
    n8 = _round_up(N, 8)
    tn = max(8, min(_round_up(tile_n, 8), n8))
    if n8 // tn < 2 and n8 >= 16:
        tn = _round_up(n8 // 2, 8)
    n_pad = _round_up(n8, tn)
    num_atom_tiles = n_pad // tn

    fp_p = jnp.zeros((n_pad, D), jnp.bfloat16).at[:N].set(
        fingerprints.astype(jnp.bfloat16))
    mask_e = jnp.zeros((E, n_pad, 1), jnp.float32).at[:, :N, 0].set(mask.T)

    kernel = functools.partial(_bpnn_kernel, n_elements=E, n_extra=n_extra)
    o_p, grad_p = pl.pallas_call(
        kernel,
        out_shape=(
            jax.ShapeDtypeStruct((n_pad, 1), jnp.float32),
            jax.ShapeDtypeStruct((n_pad, D), jnp.bfloat16),
        ),
        grid_spec=pltpu.PrefetchScalarGridSpec(
            num_scalar_prefetch=0,
            grid=(num_atom_tiles,),
            in_specs=[
                pl.BlockSpec((tn, D), lambda n: (n, 0)),                  # fp tile
                pl.BlockSpec((E, tn, 1), lambda n: (0, n, 0)),            # mask
                pl.BlockSpec((E, D, H), lambda n: (0, 0, 0)),             # W1^T bf16
                pl.BlockSpec((E, H, D), lambda n: (0, 0, 0)),             # W1   f32
                pl.BlockSpec((E, 1, H), lambda n: (0, 0, 0)),             # b1
                pl.BlockSpec((E, n_extra, H, H), lambda n: (0, 0, 0, 0)), # Wi^T bf16
                pl.BlockSpec((E, n_extra, H, H), lambda n: (0, 0, 0, 0)), # Wi   f32
                pl.BlockSpec((E, n_extra, 1, H), lambda n: (0, 0, 0, 0)), # b_i
                pl.BlockSpec((E, 1, H), lambda n: (0, 0, 0)),             # W_out
                pl.BlockSpec((E, 1, 1), lambda n: (0, 0, 0)),             # b_out
            ],
            out_specs=[
                pl.BlockSpec((tn, 1), lambda n: (n, 0)),                  # o
                pl.BlockSpec((tn, D), lambda n: (n, 0)),                  # dE/dfp
            ],
        ),
        compiler_params=pltpu.CompilerParams(
            dimension_semantics=("parallel",)),
    )(fp_p, mask_e, w1f, w1b, b1, whf, whb, bh, wo, bo)

    # per-image energy: plain-JAX segment sum (tiny), frees VMEM in the kernel
    o = o_p[:N]                                              # (N, 1)
    energy = jnp.dot(image_onehot_T, o).reshape(-1)          # (n_images,)

    # ---- forces = -(dE/dfp flat row @ fprimes), bf16 stream, f32 accumulate ----
    K = N * D
    C = fprimes.shape[1]                                     # 3 * N
    g_row = grad_p[:N].reshape(1, K)                         # bf16, matches .view(1,-1)
    fpr = fprimes.astype(jnp.bfloat16)                       # halve HBM bytes (GEMV is BW-bound)

    if K % 128 == 0:
        # no padded copy of the largest array: tk divides K exactly
        tk = _largest_divisor_tile(K, tile_k, 128)
        k_tiles = K // tk
    else:
        # TODO(synk): ragged K (input_dim not a multiple of 128) -> pad once.
        tk = min(_round_up(tile_k, 128), _round_up(K, 128))
        k_pad = _round_up(K, tk)
        g_row = jnp.zeros((1, k_pad), jnp.bfloat16).at[0, :K].set(g_row[0])
        fpr = jnp.zeros((k_pad, C), jnp.bfloat16).at[:K].set(fpr)
        k_tiles = k_pad // tk

    tc = min(_round_up(tile_c, 128), _round_up(C, 128))
    if pl.cdiv(C, tc) < 2 and tc > 128:
        tc = _round_up(pl.cdiv(C, 2), 128)   # >=2 column tiles (v7x: both TCs busy)
    c_tiles = pl.cdiv(C, tc)
    c_out = c_tiles * tc                     # ragged C tail handled by edge blocks

    # VMEM budget: double-buffered fprimes blocks + small row/acc + headroom.
    fpr_blk_bytes = tk * tc * 2
    vmem_limit = int(min(96 << 20, max(16 << 20, 3 * fpr_blk_bytes + (4 << 20))))

    forces_row = pl.pallas_call(
        _forces_kernel,
        out_shape=jax.ShapeDtypeStruct((1, c_out), jnp.float32),
        grid_spec=pltpu.PrefetchScalarGridSpec(
            num_scalar_prefetch=0,
            grid=(c_tiles, k_tiles),
            in_specs=[
                pl.BlockSpec((1, tk), lambda c, k: (0, k)),
                pl.BlockSpec((tk, tc), lambda c, k: (k, c)),
            ],
            out_specs=pl.BlockSpec((1, tc), lambda c, k: (0, c)),
            scratch_shapes=[pltpu.VMEM((1, tc), jnp.float32)],
        ),
        compiler_params=pltpu.CompilerParams(
            dimension_semantics=("parallel", "arbitrary"),
            vmem_limit_bytes=vmem_limit),
    )(g_row, fpr)

    # NOTE: assumes fprimes' 3N axis is atom-major / xyz-minor (matches the
    # torch reference .view(-1, 3)).
    forces = forces_row[0, :C].reshape(-1, 3)
    return energy, forces


def init_bpnn_params(key, n_elements, input_dim, hidden, num_layers):
    """Xavier-uniform weights, zero biases (matches MLP.reset_parameters).
    Weights stored in torch Linear layout (out_features, in_features)."""
    def xavier(k, shape):
        fan_out, fan_in = shape[-2], shape[-1]
        bound = float(np.sqrt(6.0 / (fan_in + fan_out)))
        return jax.random.uniform(k, shape, jnp.float32, -bound, bound)

    n_extra = num_layers - 1
    k1, k2, k3 = jax.random.split(key, 3)
    w1 = xavier(k1, (n_elements, hidden, input_dim))
    b1 = jnp.zeros((n_elements, 1, hidden), jnp.float32)
    wh = xavier(k2, (n_elements, n_extra, hidden, hidden))
    bh = jnp.zeros((n_elements, n_extra, 1, hidden), jnp.float32)
    wo = xavier(k3, (n_elements, 1, hidden))
    bo = jnp.zeros((n_elements, 1, 1), jnp.float32)
    return (w1, b1, wh, bh, wo, bo)


if __name__ == "__main__":
    key = jax.random.PRNGKey(0)
    elements = [1, 8]          # atomic numbers (H, O)
    E = len(elements)
    input_dim = 128            # lane-dense (multiple of 128)
    hidden = 128
    num_layers = 3             # 2 extra hidden tanh layers + linear head
    n_atoms = 64
    n_images = 2

    k_fp, k_an, k_pr, k_par = jax.random.split(key, 4)
    fingerprints = jax.random.normal(k_fp, (n_atoms, input_dim), jnp.float32)
    atomic_numbers = jax.random.choice(k_an, jnp.array(elements, jnp.int32),
                                       (n_atoms,))
    image_idx = jnp.repeat(jnp.arange(n_images, dtype=jnp.int32),
                           n_atoms // n_images)
    fprimes = 0.1 * jax.random.normal(
        k_pr, (n_atoms * input_dim, 3 * n_atoms), jnp.float32)

    params = init_bpnn_params(k_par, E, input_dim, hidden, num_layers)

    # ElementMask: Embedding(100, E) with one-hot rows at the element numbers.
    table = jnp.zeros((100, E), jnp.float32)
    table = table.at[jnp.array(elements), jnp.arange(E)].set(1.0)
    mask = table[atomic_numbers]                                     # (N, E)
    imgT = jax.nn.one_hot(image_idx, n_images, dtype=jnp.float32).T  # (n_img, N)

    fwd = jax.jit(bpnn_forward)        # defaults: tile_n=256, tile_k=2048, tile_c=512
    energy, forces = fwd(fingerprints, mask, imgT, fprimes, params)
    jax.block_until_ready((energy, forces))

    # pure-JAX f32 reference for sanity
    def ref_energy(fp):
        w1, b1, wh, bh, wo, bo = params
        outs = []
        for e in range(E):
            h = jnp.tanh(fp @ w1[e].T + b1[e])
            for i in range(wh.shape[1]):
                h = jnp.tanh(h @ wh[e, i].T + bh[e, i])
            outs.append(h @ wo[e].T + bo[e])
        o = jnp.sum(mask * jnp.concatenate(outs, axis=1), axis=1)
        return jax.ops.segment_sum(o, image_idx, num_segments=n_images)

    en_ref = ref_energy(fingerprints)
    grad_ref = jax.grad(lambda fp: jnp.sum(ref_energy(fp)))(fingerprints)
    forces_ref = (-(fprimes.T @ grad_ref.reshape(-1, 1))).reshape(-1, 3)

    assert np.allclose(np.asarray(energy), np.asarray(en_ref),
                       rtol=2e-2, atol=2e-2)
    assert np.allclose(np.asarray(forces), np.asarray(forces_ref),
                       rtol=2e-2, atol=2e-2)
    print("KERNEL_OK")
</pallas_src>

<mosaic_0001>
module attributes {stable_mosaic.version = 11 : i64} {
  func.func @_bpnn_kernel(%arg0: i32, %arg1: memref<32x128xbf16, #tpu.memory_space<vmem>>, %arg2: memref<2x32x1xf32, #tpu.memory_space<vmem>>, %arg3: memref<2x128x128xbf16, #tpu.memory_space<vmem>>, %arg4: memref<2x128x128xf32, #tpu.memory_space<vmem>>, %arg5: memref<2x1x128xf32, #tpu.memory_space<vmem>>, %arg6: memref<2x2x128x128xbf16, #tpu.memory_space<vmem>>, %arg7: memref<2x2x128x128xf32, #tpu.memory_space<vmem>>, %arg8: memref<2x2x1x128xf32, #tpu.memory_space<vmem>>, %arg9: memref<2x1x128xf32, #tpu.memory_space<vmem>>, %arg10: memref<2x1x1xf32, #tpu.memory_space<vmem>>, %arg11: memref<32x1xf32, #tpu.memory_space<vmem>>, %arg12: memref<32x128xbf16, #tpu.memory_space<vmem>>) attributes {dimension_semantics = [#tpu.dimension_semantics<parallel>], iteration_bounds = array<i64: 2>, scalar_prefetch = 0 : i64, scratch_operands = 0 : i64, tpu.core_type = #tpu.core_type<tc>, window_params = [{transform_indices = @transform_0, window_bounds = array<i64: 32, 128>}, {transform_indices = @transform_1, window_bounds = array<i64: 2, 32, 1>}, {pipeline_mode = #tpu.pipeline_mode<synchronous>, transform_indices = @transform_2, window_bounds = array<i64: 2, 128, 128>}, {pipeline_mode = #tpu.pipeline_mode<synchronous>, transform_indices = @transform_3, window_bounds = array<i64: 2, 128, 128>}, {pipeline_mode = #tpu.pipeline_mode<synchronous>, transform_indices = @transform_4, window_bounds = array<i64: 2, 1, 128>}, {pipeline_mode = #tpu.pipeline_mode<synchronous>, transform_indices = @transform_5, window_bounds = array<i64: 2, 2, 128, 128>}, {pipeline_mode = #tpu.pipeline_mode<synchronous>, transform_indices = @transform_6, window_bounds = array<i64: 2, 2, 128, 128>}, {pipeline_mode = #tpu.pipeline_mode<synchronous>, transform_indices = @transform_7, window_bounds = array<i64: 2, 2, 1, 128>}, {pipeline_mode = #tpu.pipeline_mode<synchronous>, transform_indices = @transform_8, window_bounds = array<i64: 2, 1, 128>}, {pipeline_mode = #tpu.pipeline_mode<synchronous>, transform_indices = @transform_9, window_bounds = array<i64: 2, 1, 1>}, {transform_indices = @transform_10, window_bounds = array<i64: 32, 1>}, {transform_indices = @transform_11, window_bounds = array<i64: 32, 128>}]} {
    %c0 = arith.constant 0 : index
    %c0_0 = arith.constant 0 : index
    %0 = vector.load %arg1[%c0, %c0_0] : memref<32x128xbf16, #tpu.memory_space<vmem>>, vector<32x128xbf16>
    %cst = arith.constant 0.000000e+00 : f32
    %1 = vector.broadcast %cst : f32 to vector<32x1xf32>
    %cst_1 = arith.constant 0.000000e+00 : f32
    %2 = vector.broadcast %cst_1 : f32 to vector<32x128xf32>
    %c0_2 = arith.constant 0 : index
    %c0_3 = arith.constant 0 : index
    %c0_4 = arith.constant 0 : index
    %3 = vector.load %arg2[%c0_2, %c0_3, %c0_4] : memref<2x32x1xf32, #tpu.memory_space<vmem>>, vector<1x32x1xf32>
    %4 = vector.shape_cast %3 : vector<1x32x1xf32> to vector<32x1xf32>
    %c0_5 = arith.constant 0 : index
    %c0_6 = arith.constant 0 : index
    %c0_7 = arith.constant 0 : index
    %5 = vector.load %arg9[%c0_5, %c0_6, %c0_7] : memref<2x1x128xf32, #tpu.memory_space<vmem>>, vector<1x1x128xf32>
    %6 = vector.shape_cast %5 : vector<1x1x128xf32> to vector<1x128xf32>
    %c0_8 = arith.constant 0 : index
    %c0_9 = arith.constant 0 : index
    %c0_10 = arith.constant 0 : index
    %7 = vector.load %arg3[%c0_8, %c0_9, %c0_10] : memref<2x128x128xbf16, #tpu.memory_space<vmem>>, vector<1x128x128xbf16>
    %8 = vector.shape_cast %7 : vector<1x128x128xbf16> to vector<128x128xbf16>
    %cst_11 = arith.constant dense<0.000000e+00> : vector<32x128xf32>
    %9 = tpu.matmul %0, %8, %cst_11 {dimension_numbers = #tpu.dot_dimension_numbers<[1], [0], [0], [1], [0, 0, 1, 1], [], []>} : vector<32x128xbf16>, vector<128x128xbf16>, vector<32x128xf32> -> vector<32x128xf32>
    %c0_12 = arith.constant 0 : index
    %c0_13 = arith.constant 0 : index
    %c0_14 = arith.constant 0 : index
    %10 = vector.load %arg5[%c0_12, %c0_13, %c0_14] : memref<2x1x128xf32, #tpu.memory_space<vmem>>, vector<1x1x128xf32>
    %11 = vector.shape_cast %10 : vector<1x1x128xf32> to vector<1x128xf32>
    %12 = vector.broadcast %11 : vector<1x128xf32> to vector<32x128xf32>
    %13 = arith.addf %9, %12 : vector<32x128xf32>
    %14 = math.tanh %13 : vector<32x128xf32>
    %15 = arith.truncf %14 : vector<32x128xf32> to vector<32x128xbf16>
    %c0_15 = arith.constant 0 : index
    %c0_16 = arith.constant 0 : index
    %c0_17 = arith.constant 0 : index
    %c0_18 = arith.constant 0 : index
    %16 = vector.load %arg6[%c0_15, %c0_16, %c0_17, %c0_18] : memref<2x2x128x128xbf16, #tpu.memory_space<vmem>>, vector<1x1x128x128xbf16>
    %17 = vector.shape_cast %16 : vector<1x1x128x128xbf16> to vector<128x128xbf16>
    %cst_19 = arith.constant dense<0.000000e+00> : vector<32x128xf32>
    %18 = tpu.matmul %15, %17, %cst_19 {dimension_numbers = #tpu.dot_dimension_numbers<[1], [0], [0], [1], [0, 0, 1, 1], [], []>} : vector<32x128xbf16>, vector<128x128xbf16>, vector<32x128xf32> -> vector<32x128xf32>
    %c0_20 = arith.constant 0 : index
    %c0_21 = arith.constant 0 : index
    %c0_22 = arith.constant 0 : index
    %c0_23 = arith.constant 0 : index
    %19 = vector.load %arg8[%c0_20, %c0_21, %c0_22, %c0_23] : memref<2x2x1x128xf32, #tpu.memory_space<vmem>>, vector<1x1x1x128xf32>
    %20 = vector.shape_cast %19 : vector<1x1x1x128xf32> to vector<1x128xf32>
    %21 = vector.broadcast %20 : vector<1x128xf32> to vector<32x128xf32>
    %22 = arith.addf %18, %21 : vector<32x128xf32>
    %23 = math.tanh %22 : vector<32x128xf32>
    %24 = arith.truncf %23 : vector<32x128xf32> to vector<32x128xbf16>
    %c0_24 = arith.constant 0 : index
    %c1 = arith.constant 1 : index
    %c0_25 = arith.constant 0 : index
    %c0_26 = arith.constant 0 : index
    %25 = vector.load %arg6[%c0_24, %c1, %c0_25, %c0_26] : memref<2x2x128x128xbf16, #tpu.memory_space<vmem>>, vector<1x1x128x128xbf16>
    %26 = vector.shape_cast %25 : vector<1x1x128x128xbf16> to vector<128x128xbf16>
    %cst_27 = arith.constant dense<0.000000e+00> : vector<32x128xf32>
    %27 = tpu.matmul %24, %26, %cst_27 {dimension_numbers = #tpu.dot_dimension_numbers<[1], [0], [0], [1], [0, 0, 1, 1], [], []>} : vector<32x128xbf16>, vector<128x128xbf16>, vector<32x128xf32> -> vector<32x128xf32>
    %c0_28 = arith.constant 0 : index
    %c1_29 = arith.constant 1 : index
    %c0_30 = arith.constant 0 : index
    %c0_31 = arith.constant 0 : index
    %28 = vector.load %arg8[%c0_28, %c1_29, %c0_30, %c0_31] : memref<2x2x1x128xf32, #tpu.memory_space<vmem>>, vector<1x1x1x128xf32>
    %29 = vector.shape_cast %28 : vector<1x1x1x128xf32> to vector<1x128xf32>
    %30 = vector.broadcast %29 : vector<1x128xf32> to vector<32x128xf32>
    %31 = arith.addf %27, %30 : vector<32x128xf32>
    %32 = math.tanh %31 : vector<32x128xf32>
    %33 = vector.broadcast %6 : vector<1x128xf32> to vector<32x128xf32>
    %34 = arith.mulf %32, %33 : vector<32x128xf32>
    %cst_32 = arith.constant dense<0.000000e+00> : vector<32xf32>
    %35 = vector.multi_reduction <add>, %34, %cst_32 [1] : vector<32x128xf32> to vector<32xf32>
    %36 = vector.shape_cast %35 : vector<32xf32> to vector<32x1xf32>
    %c0_33 = arith.constant 0 : index
    %c0_34 = arith.constant 0 : index
    %c0_35 = arith.constant 0 : index
    %37 = vector.load %arg10[%c0_33, %c0_34, %c0_35] : memref<2x1x1xf32, #tpu.memory_space<vmem>>, vector<1x1x1xf32>
    %38 = vector.shape_cast %37 : vector<1x1x1xf32> to vector<1x1xf32>
    %39 = vector.broadcast %38 : vector<1x1xf32> to vector<32x1xf32>
    %40 = arith.addf %36, %39 : vector<32x1xf32>
    %41 = arith.mulf %4, %40 : vector<32x1xf32>
    %42 = arith.addf %1, %41 : vector<32x1xf32>
    %43 = vector.broadcast %4 : vector<32x1xf32> to vector<32x128xf32>
    %44 = vector.broadcast %6 : vector<1x128xf32> to vector<32x128xf32>
    %45 = arith.mulf %43, %44 : vector<32x128xf32>
    %46 = arith.mulf %32, %32 : vector<32x128xf32>
    %cst_36 = arith.constant 1.000000e+00 : f32
    %47 = vector.broadcast %cst_36 : f32 to vector<32x128xf32>
    %48 = arith.subf %47, %46 : vector<32x128xf32>
    %49 = arith.mulf %45, %48 : vector<32x128xf32>
    %c0_37 = arith.constant 0 : index
    %c1_38 = arith.constant 1 : index
    %c0_39 = arith.constant 0 : index
    %c0_40 = arith.constant 0 : index
    %50 = vector.load %arg7[%c0_37, %c1_38, %c0_39, %c0_40] : memref<2x2x128x128xf32, #tpu.memory_space<vmem>>, vector<1x1x128x128xf32>
    %51 = vector.shape_cast %50 : vector<1x1x128x128xf32> to vector<128x128xf32>
    %cst_41 = arith.constant dense<0.000000e+00> : vector<32x128xf32>
    %52 = tpu.matmul %49, %51, %cst_41 {dimension_numbers = #tpu.dot_dimension_numbers<[1], [0], [0], [1], [0, 0, 1, 1], [], []>} : vector<32x128xf32>, vector<128x128xf32>, vector<32x128xf32> -> vector<32x128xf32>
    %53 = arith.mulf %23, %23 : vector<32x128xf32>
    %cst_42 = arith.constant 1.000000e+00 : f32
    %54 = vector.broadcast %cst_42 : f32 to vector<32x128xf32>
    %55 = arith.subf %54, %53 : vector<32x128xf32>
    %56 = arith.mulf %52, %55 : vector<32x128xf32>
    %c0_43 = arith.constant 0 : index
    %c0_44 = arith.constant 0 : index
    %c0_45 = arith.constant 0 : index
    %c0_46 = arith.constant 0 : index
    %57 = vector.load %arg7[%c0_43, %c0_44, %c0_45, %c0_46] : memref<2x2x128x128xf32, #tpu.memory_space<vmem>>, vector<1x1x128x128xf32>
    %58 = vector.shape_cast %57 : vector<1x1x128x128xf32> to vector<128x128xf32>
    %cst_47 = arith.constant dense<0.000000e+00> : vector<32x128xf32>
    %59 = tpu.matmul %56, %58, %cst_47 {dimension_numbers = #tpu.dot_dimension_numbers<[1], [0], [0], [1], [0, 0, 1, 1], [], []>} : vector<32x128xf32>, vector<128x128xf32>, vector<32x128xf32> -> vector<32x128xf32>
    %60 = arith.mulf %14, %14 : vector<32x128xf32>
    %cst_48 = arith.constant 1.000000e+00 : f32
    %61 = vector.broadcast %cst_48 : f32 to vector<32x128xf32>
    %62 = arith.subf %61, %60 : vector<32x128xf32>
    %63 = arith.mulf %59, %62 : vector<32x128xf32>
    %c0_49 = arith.constant 0 : index
    %c0_50 = arith.constant 0 : index
    %c0_51 = arith.constant 0 : index
    %64 = vector.load %arg4[%c0_49, %c0_50, %c0_51] : memref<2x128x128xf32, #tpu.memory_space<vmem>>, vector<1x128x128xf32>
    %65 = vector.shape_cast %64 : vector<1x128x128xf32> to vector<128x128xf32>
    %cst_52 = arith.constant dense<0.000000e+00> : vector<32x128xf32>
    %66 = tpu.matmul %63, %65, %cst_52 {dimension_numbers = #tpu.dot_dimension_numbers<[1], [0], [0], [1], [0, 0, 1, 1], [], []>} : vector<32x128xf32>, vector<128x128xf32>, vector<32x128xf32> -> vector<32x128xf32>
    %67 = arith.addf %2, %66 : vector<32x128xf32>
    %c1_53 = arith.constant 1 : index
    %c0_54 = arith.constant 0 : index
    %c0_55 = arith.constant 0 : index
    %68 = vector.load %arg2[%c1_53, %c0_54, %c0_55] : memref<2x32x1xf32, #tpu.memory_space<vmem>>, vector<1x32x1xf32>
    %69 = vector.shape_cast %68 : vector<1x32x1xf32> to vector<32x1xf32>
    %c1_56 = arith.constant 1 : index
    %c0_57 = arith.constant 0 : index
    %c0_58 = arith.constant 0 : index
    %70 = vector.load %arg9[%c1_56, %c0_57, %c0_58] : memref<2x1x128xf32, #tpu.memory_space<vmem>>, vector<1x1x128xf32>
    %71 = vector.shape_cast %70 : vector<1x1x128xf32> to vector<1x128xf32>
    %c1_59 = arith.constant 1 : index
    %c0_60 = arith.constant 0 : index
    %c0_61 = arith.constant 0 : index
    %72 = vector.load %arg3[%c1_59, %c0_60, %c0_61] : memref<2x128x128xbf16, #tpu.memory_space<vmem>>, vector<1x128x128xbf16>
    %73 = vector.shape_cast %72 : vector<1x128x128xbf16> to vector<128x128xbf16>
    %cst_62 = arith.constant dense<0.000000e+00> : vector<32x128xf32>
    %74 = tpu.matmul %0, %73, %cst_62 {dimension_numbers = #tpu.dot_dimension_numbers<[1], [0], [0], [1], [0, 0, 1, 1], [], []>} : vector<32x128xbf16>, vector<128x128xbf16>, vector<32x128xf32> -> vector<32x128xf32>
    %c1_63 = arith.constant 1 : index
    %c0_64 = arith.constant 0 : index
    %c0_65 = arith.constant 0 : index
    %75 = vector.load %arg5[%c1_63, %c0_64, %c0_65] : memref<2x1x128xf32, #tpu.memory_space<vmem>>, vector<1x1x128xf32>
    %76 = vector.shape_cast %75 : vector<1x1x128xf32> to vector<1x128xf32>
    %77 = vector.broadcast %76 : vector<1x128xf32> to vector<32x128xf32>
    %78 = arith.addf %74, %77 : vector<32x128xf32>
    %79 = math.tanh %78 : vector<32x128xf32>
    %80 = arith.truncf %79 : vector<32x128xf32> to vector<32x128xbf16>
    %c1_66 = arith.constant 1 : index
    %c0_67 = arith.constant 0 : index
    %c0_68 = arith.constant 0 : index
    %c0_69 = arith.constant 0 : index
    %81 = vector.load %arg6[%c1_66, %c0_67, %c0_68, %c0_69] : memref<2x2x128x128xbf16, #tpu.memory_space<vmem>>, vector<1x1x128x128xbf16>
    %82 = vector.shape_cast %81 : vector<1x1x128x128xbf16> to vector<128x128xbf16>
    %cst_70 = arith.constant dense<0.000000e+00> : vector<32x128xf32>
    %83 = tpu.matmul %80, %82, %cst_70 {dimension_numbers = #tpu.dot_dimension_numbers<[1], [0], [0], [1], [0, 0, 1, 1], [], []>} : vector<32x128xbf16>, vector<128x128xbf16>, vector<32x128xf32> -> vector<32x128xf32>
    %c1_71 = arith.constant 1 : index
    %c0_72 = arith.constant 0 : index
    %c0_73 = arith.constant 0 : index
    %c0_74 = arith.constant 0 : index
    %84 = vector.load %arg8[%c1_71, %c0_72, %c0_73, %c0_74] : memref<2x2x1x128xf32, #tpu.memory_space<vmem>>, vector<1x1x1x128xf32>
    %85 = vector.shape_cast %84 : vector<1x1x1x128xf32> to vector<1x128xf32>
    %86 = vector.broadcast %85 : vector<1x128xf32> to vector<32x128xf32>
    %87 = arith.addf %83, %86 : vector<32x128xf32>
    %88 = math.tanh %87 : vector<32x128xf32>
    %89 = arith.truncf %88 : vector<32x128xf32> to vector<32x128xbf16>
    %c1_75 = arith.constant 1 : index
    %c1_76 = arith.constant 1 : index
    %c0_77 = arith.constant 0 : index
    %c0_78 = arith.constant 0 : index
    %90 = vector.load %arg6[%c1_75, %c1_76, %c0_77, %c0_78] : memref<2x2x128x128xbf16, #tpu.memory_space<vmem>>, vector<1x1x128x128xbf16>
    %91 = vector.shape_cast %90 : vector<1x1x128x128xbf16> to vector<128x128xbf16>
    %cst_79 = arith.constant dense<0.000000e+00> : vector<32x128xf32>
    %92 = tpu.matmul %89, %91, %cst_79 {dimension_numbers = #tpu.dot_dimension_numbers<[1], [0], [0], [1], [0, 0, 1, 1], [], []>} : vector<32x128xbf16>, vector<128x128xbf16>, vector<32x128xf32> -> vector<32x128xf32>
    %c1_80 = arith.constant 1 : index
    %c1_81 = arith.constant 1 : index
    %c0_82 = arith.constant 0 : index
    %c0_83 = arith.constant 0 : index
    %93 = vector.load %arg8[%c1_80, %c1_81, %c0_82, %c0_83] : memref<2x2x1x128xf32, #tpu.memory_space<vmem>>, vector<1x1x1x128xf32>
    %94 = vector.shape_cast %93 : vector<1x1x1x128xf32> to vector<1x128xf32>
    %95 = vector.broadcast %94 : vector<1x128xf32> to vector<32x128xf32>
    %96 = arith.addf %92, %95 : vector<32x128xf32>
    %97 = math.tanh %96 : vector<32x128xf32>
    %98 = vector.broadcast %71 : vector<1x128xf32> to vector<32x128xf32>
    %99 = arith.mulf %97, %98 : vector<32x128xf32>
    %cst_84 = arith.constant dense<0.000000e+00> : vector<32xf32>
    %100 = vector.multi_reduction <add>, %99, %cst_84 [1] : vector<32x128xf32> to vector<32xf32>
    %101 = vector.shape_cast %100 : vector<32xf32> to vector<32x1xf32>
    %c1_85 = arith.constant 1 : index
    %c0_86 = arith.constant 0 : index
    %c0_87 = arith.constant 0 : index
    %102 = vector.load %arg10[%c1_85, %c0_86, %c0_87] : memref<2x1x1xf32, #tpu.memory_space<vmem>>, vector<1x1x1xf32>
    %103 = vector.shape_cast %102 : vector<1x1x1xf32> to vector<1x1xf32>
    %104 = vector.broadcast %103 : vector<1x1xf32> to vector<32x1xf32>
    %105 = arith.addf %101, %104 : vector<32x1xf32>
    %106 = arith.mulf %69, %105 : vector<32x1xf32>
    %107 = arith.addf %42, %106 : vector<32x1xf32>
    %108 = vector.broadcast %69 : vector<32x1xf32> to vector<32x128xf32>
    %109 = vector.broadcast %71 : vector<1x128xf32> to vector<32x128xf32>
    %110 = arith.mulf %108, %109 : vector<32x128xf32>
    %111 = arith.mulf %97, %97 : vector<32x128xf32>
    %cst_88 = arith.constant 1.000000e+00 : f32
    %112 = vector.broadcast %cst_88 : f32 to vector<32x128xf32>
    %113 = arith.subf %112, %111 : vector<32x128xf32>
    %114 = arith.mulf %110, %113 : vector<32x128xf32>
    %c1_89 = arith.constant 1 : index
    %c1_90 = arith.constant 1 : index
    %c0_91 = arith.constant 0 : index
    %c0_92 = arith.constant 0 : index
    %115 = vector.load %arg7[%c1_89, %c1_90, %c0_91, %c0_92] : memref<2x2x128x128xf32, #tpu.memory_space<vmem>>, vector<1x1x128x128xf32>
    %116 = vector.shape_cast %115 : vector<1x1x128x128xf32> to vector<128x128xf32>
    %cst_93 = arith.constant dense<0.000000e+00> : vector<32x128xf32>
    %117 = tpu.matmul %114, %116, %cst_93 {dimension_numbers = #tpu.dot_dimension_numbers<[1], [0], [0], [1], [0, 0, 1, 1], [], []>} : vector<32x128xf32>, vector<128x128xf32>, vector<32x128xf32> -> vector<32x128xf32>
    %118 = arith.mulf %88, %88 : vector<32x128xf32>
    %cst_94 = arith.constant 1.000000e+00 : f32
    %119 = vector.broadcast %cst_94 : f32 to vector<32x128xf32>
    %120 = arith.subf %119, %118 : vector<32x128xf32>
    %121 = arith.mulf %117, %120 : vector<32x128xf32>
    %c1_95 = arith.constant 1 : index
    %c0_96 = arith.constant 0 : index
    %c0_97 = arith.constant 0 : index
    %c0_98 = arith.constant 0 : index
    %122 = vector.load %arg7[%c1_95, %c0_96, %c0_97, %c0_98] : memref<2x2x128x128xf32, #tpu.memory_space<vmem>>, vector<1x1x128x128xf32>
    %123 = vector.shape_cast %122 : vector<1x1x128x128xf32> to vector<128x128xf32>
    %cst_99 = arith.constant dense<0.000000e+00> : vector<32x128xf32>
    %124 = tpu.matmul %121, %123, %cst_99 {dimension_numbers = #tpu.dot_dimension_numbers<[1], [0], [0], [1], [0, 0, 1, 1], [], []>} : vector<32x128xf32>, vector<128x128xf32>, vector<32x128xf32> -> vector<32x128xf32>
    %125 = arith.mulf %79, %79 : vector<32x128xf32>
    %cst_100 = arith.constant 1.000000e+00 : f32
    %126 = vector.broadcast %cst_100 : f32 to vector<32x128xf32>
    %127 = arith.subf %126, %125 : vector<32x128xf32>
    %128 = arith.mulf %124, %127 : vector<32x128xf32>
    %c1_101 = arith.constant 1 : index
    %c0_102 = arith.constant 0 : index
    %c0_103 = arith.constant 0 : index
    %129 = vector.load %arg4[%c1_101, %c0_102, %c0_103] : memref<2x128x128xf32, #tpu.memory_space<vmem>>, vector<1x128x128xf32>
    %130 = vector.shape_cast %129 : vector<1x128x128xf32> to vector<128x128xf32>
    %cst_104 = arith.constant dense<0.000000e+00> : vector<32x128xf32>
    %131 = tpu.matmul %128, %130, %cst_104 {dimension_numbers = #tpu.dot_dimension_numbers<[1], [0], [0], [1], [0, 0, 1, 1], [], []>} : vector<32x128xf32>, vector<128x128xf32>, vector<32x128xf32> -> vector<32x128xf32>
    %132 = arith.addf %67, %131 : vector<32x128xf32>
    %c0_105 = arith.constant 0 : index
    %c0_106 = arith.constant 0 : index
    %133 = vector.load %arg11[%c0_105, %c0_106] : memref<32x1xf32, #tpu.memory_space<vmem>>, vector<32x1xf32>
    tpu.vector_store %arg11[%c0_105, %c0_106], %107 {strides = array<i32>} : memref<32x1xf32, #tpu.memory_space<vmem>>, vector<32x1xf32>,
    %134 = arith.truncf %132 : vector<32x128xf32> to vector<32x128xbf16>
    %c0_107 = arith.constant 0 : index
    %c0_108 = arith.constant 0 : index
    %135 = vector.load %arg12[%c0_107, %c0_108] : memref<32x128xbf16, #tpu.memory_space<vmem>>, vector<32x128xbf16>
    tpu.vector_store %arg12[%c0_107, %c0_108], %134 {strides = array<i32>} : memref<32x128xbf16, #tpu.memory_space<vmem>>, vector<32x128xbf16>,
    return
  }
  func.func @transform_0(%arg0: i32) -> (i32, i32) {
    %c0_i32 = arith.constant 0 : i32
    %c0_i32_0 = arith.constant 0 : i32
    return %arg0, %c0_i32 : i32, i32
  }
  func.func @transform_1(%arg0: i32) -> (i32, i32, i32) {
    %c0_i32 = arith.constant 0 : i32
    %c0_i32_0 = arith.constant 0 : i32
    %c0_i32_1 = arith.constant 0 : i32
    return %c0_i32, %arg0, %c0_i32_0 : i32, i32, i32
  }
  func.func @transform_2(%arg0: i32) -> (i32, i32, i32) {
    %c0_i32 = arith.constant 0 : i32
    %c0_i32_0 = arith.constant 0 : i32
    %c0_i32_1 = arith.constant 0 : i32
    %c0_i32_2 = arith.constant 0 : i32
    return %c0_i32, %c0_i32_0, %c0_i32_1 : i32, i32, i32
  }
  func.func @transform_3(%arg0: i32) -> (i32, i32, i32) {
    %c0_i32 = arith.constant 0 : i32
    %c0_i32_0 = arith.constant 0 : i32
    %c0_i32_1 = arith.constant 0 : i32
    %c0_i32_2 = arith.constant 0 : i32
    return %c0_i32, %c0_i32_0, %c0_i32_1 : i32, i32, i32
  }
  func.func @transform_4(%arg0: i32) -> (i32, i32, i32) {
    %c0_i32 = arith.constant 0 : i32
    %c0_i32_0 = arith.constant 0 : i32
    %c0_i32_1 = arith.constant 0 : i32
    %c0_i32_2 = arith.constant 0 : i32
    return %c0_i32, %c0_i32_0, %c0_i32_1 : i32, i32, i32
  }
  func.func @transform_5(%arg0: i32) -> (i32, i32, i32, i32) {
    %c0_i32 = arith.constant 0 : i32
    %c0_i32_0 = arith.constant 0 : i32
    %c0_i32_1 = arith.constant 0 : i32
    %c0_i32_2 = arith.constant 0 : i32
    %c0_i32_3 = arith.constant 0 : i32
    return %c0_i32, %c0_i32_0, %c0_i32_1, %c0_i32_2 : i32, i32, i32, i32
  }
  func.func @transform_6(%arg0: i32) -> (i32, i32, i32, i32) {
    %c0_i32 = arith.constant 0 : i32
    %c0_i32_0 = arith.constant 0 : i32
    %c0_i32_1 = arith.constant 0 : i32
    %c0_i32_2 = arith.constant 0 : i32
    %c0_i32_3 = arith.constant 0 : i32
    return %c0_i32, %c0_i32_0, %c0_i32_1, %c0_i32_2 : i32, i32, i32, i32
  }
  func.func @transform_7(%arg0: i32) -> (i32, i32, i32, i32) {
    %c0_i32 = arith.constant 0 : i32
    %c0_i32_0 = arith.constant 0 : i32
    %c0_i32_1 = arith.constant 0 : i32
    %c0_i32_2 = arith.constant 0 : i32
    %c0_i32_3 = arith.constant 0 : i32
    return %c0_i32, %c0_i32_0, %c0_i32_1, %c0_i32_2 : i32, i32, i32, i32
  }
  func.func @transform_8(%arg0: i32) -> (i32, i32, i32) {
    %c0_i32 = arith.constant 0 : i32
    %c0_i32_0 = arith.constant 0 : i32
    %c0_i32_1 = arith.constant 0 : i32
    %c0_i32_2 = arith.constant 0 : i32
    return %c0_i32, %c0_i32_0, %c0_i32_1 : i32, i32, i32
  }
  func.func @transform_9(%arg0: i32) -> (i32, i32, i32) {
    %c0_i32 = arith.constant 0 : i32
    %c0_i32_0 = arith.constant 0 : i32
    %c0_i32_1 = arith.constant 0 : i32
    %c0_i32_2 = arith.constant 0 : i32
    return %c0_i32, %c0_i32_0, %c0_i32_1 : i32, i32, i32
  }
  func.func @transform_10(%arg0: i32) -> (i32, i32) {
    %c0_i32 = arith.constant 0 : i32
    %c0_i32_0 = arith.constant 0 : i32
    return %arg0, %c0_i32 : i32, i32
  }
  func.func @transform_11(%arg0: i32) -> (i32, i32) {
    %c0_i32 = arith.constant 0 : i32
    %c0_i32_0 = arith.constant 0 : i32
    return %arg0, %c0_i32 : i32, i32
  }
}

module attributes {stable_mosaic.version = 11 : i64} {
  func.func @_forces_kernel(%arg0: i32, %arg1: i32, %arg2: memref<1x2048xbf16, #tpu.memory_space<vmem>>, %arg3: memref<2048x128xbf16, #tpu.memory_space<vmem>>, %arg4: memref<1x128xf32, #tpu.memory_space<vmem>>, %arg5: memref<1x128xf32, #tpu.memory_space<vmem>>) attributes {dimension_semantics = [#tpu.dimension_semantics<parallel>, #tpu.dimension_semantics<arbitrary>], iteration_bounds = array<i64: 2, 4>, scalar_prefetch = 0 : i64, scratch_operands = 1 : i64, tpu.core_type = #tpu.core_type<tc>, window_params = [{transform_indices = @transform_0, window_bounds = array<i64: 1, 2048>}, {transform_indices = @transform_1, window_bounds = array<i64: 2048, 128>}, {transform_indices = @transform_2, window_bounds = array<i64: 1, 128>}]} {
    %c0_i32 = arith.constant 0 : i32
    %0 = arith.cmpi eq, %arg1, %c0_i32 : i32
    %1 = arith.extui %0 : i1 to i32
    %c0_i32_0 = arith.constant 0 : i32
    %2 = arith.cmpi ne, %1, %c0_i32_0 : i32
    scf.if %2 {
      %cst_9 = arith.constant 0.000000e+00 : f32
      %12 = vector.broadcast %cst_9 : f32 to vector<1x128xf32>
      %c0_10 = arith.constant 0 : index
      %c0_11 = arith.constant 0 : index
      %13 = vector.load %arg5[%c0_10, %c0_11] : memref<1x128xf32, #tpu.memory_space<vmem>>, vector<1x128xf32>
      tpu.vector_store %arg5[%c0_10, %c0_11], %12 {strides = array<i32>} : memref<1x128xf32, #tpu.memory_space<vmem>>, vector<1x128xf32>,
    } else {
    }
    %c0 = arith.constant 0 : index
    %c0_1 = arith.constant 0 : index
    %3 = vector.load %arg5[%c0, %c0_1] : memref<1x128xf32, #tpu.memory_space<vmem>>, vector<1x128xf32>
    %c0_2 = arith.constant 0 : index
    %c0_3 = arith.constant 0 : index
    %4 = vector.load %arg2[%c0_2, %c0_3] : memref<1x2048xbf16, #tpu.memory_space<vmem>>, vector<1x2048xbf16>
    %c0_4 = arith.constant 0 : index
    %c0_5 = arith.constant 0 : index
    %5 = vector.load %arg3[%c0_4, %c0_5] : memref<2048x128xbf16, #tpu.memory_space<vmem>>, vector<2048x128xbf16>
    %cst = arith.constant dense<0.000000e+00> : vector<1x128xf32>
    %6 = tpu.matmul %4, %5, %cst {dimension_numbers = #tpu.dot_dimension_numbers<[1], [0], [0], [1], [0, 0, 1, 1], [], []>} : vector<1x2048xbf16>, vector<2048x128xbf16>, vector<1x128xf32> -> vector<1x128xf32>
    %7 = arith.addf %3, %6 : vector<1x128xf32>
    %c0_6 = arith.constant 0 : index
    %c0_7 = arith.constant 0 : index
    %8 = vector.load %arg5[%c0_6, %c0_7] : memref<1x128xf32, #tpu.memory_space<vmem>>, vector<1x128xf32>
    tpu.vector_store %arg5[%c0_6, %c0_7], %7 {strides = array<i32>} : memref<1x128xf32, #tpu.memory_space<vmem>>, vector<1x128xf32>,
    %c3_i32 = arith.constant 3 : i32
    %9 = arith.cmpi eq, %arg1, %c3_i32 : i32
    %10 = arith.extui %9 : i1 to i32
    %c0_i32_8 = arith.constant 0 : i32
    %11 = arith.cmpi ne, %10, %c0_i32_8 : i32
    scf.if %11 {
      %c0_9 = arith.constant 0 : index
      %c0_10 = arith.constant 0 : index
      %12 = vector.load %arg5[%c0_9, %c0_10] : memref<1x128xf32, #tpu.memory_space<vmem>>, vector<1x128xf32>
      %cst_11 = arith.constant 0.000000e+00 : f32
      %13 = vector.broadcast %cst_11 : f32 to vector<1x128xf32>
      %14 = arith.subf %13, %12 : vector<1x128xf32>
      %c0_12 = arith.constant 0 : index
      %c0_13 = arith.constant 0 : index
      %15 = vector.load %arg4[%c0_12, %c0_13] : memref<1x128xf32, #tpu.memory_space<vmem>>, vector<1x128xf32>
      tpu.vector_store %arg4[%c0_12, %c0_13], %14 {strides = array<i32>} : memref<1x128xf32, #tpu.memory_space<vmem>>, vector<1x128xf32>,
    } else {
    }
    return
  }
  func.func @transform_0(%arg0: i32, %arg1: i32) -> (i32, i32) {
    %c0_i32 = arith.constant 0 : i32
    %c0_i32_0 = arith.constant 0 : i32
    return %c0_i32, %arg1 : i32, i32
  }
  func.func @transform_1(%arg0: i32, %arg1: i32) -> (i32, i32) {
    %c0_i32 = arith.constant 0 : i32
    return %arg1, %arg0 : i32, i32
  }
  func.func @transform_2(%arg0: i32, %arg1: i32) -> (i32, i32) {
    %c0_i32 = arith.constant 0 : i32
    %c0_i32_0 = arith.constant 0 : i32
    return %c0_i32, %arg0 : i32, i32
  }
}

</mosaic_0001>

<llo_original>
// kernel: bpnn_forward.2
$region0: #{bpnn_forward.2}
  #allocation0 [shape = 'u32[]', space=smem, size = 0x4, offset = 0x4, fixed_abs, tag = 'smem constant byte address 0x4 - core index']
  #allocation1 [shape = 'u32[144,128]{1,0:T(1,128)}', space=vmem, size = 0x12000, scoped, tag = 'internal scratch']
  %s0 = inlined_call_operand.vmem [shape: bf16[64,128], index: 0, kind: input, shape index: {}]
  %s1 = inlined_call_operand.vmem [shape: f32[2,64,1], index: 1, kind: input, shape index: {}]
  %s2 = inlined_call_operand.vmem [shape: bf16[2,128,128], index: 2, kind: input, shape index: {}]
  %s3 = inlined_call_operand.hbm [shape: f32[2,128,128], index: 3, kind: input, shape index: {}]
  %s4 = inlined_call_operand.hbm [shape: f32[2,1,128], index: 4, kind: input, shape index: {}]
  %s5 = inlined_call_operand.vmem [shape: bf16[2,2,128,128], index: 5, kind: input, shape index: {}]
  %s6 = inlined_call_operand.hbm [shape: f32[2,2,128,128], index: 6, kind: input, shape index: {}]
  %s7 = inlined_call_operand.hbm [shape: f32[2,2,1,128], index: 7, kind: input, shape index: {}]
  %s8 = inlined_call_operand.hbm [shape: f32[2,1,128], index: 8, kind: input, shape index: {}]
  %s9 = inlined_call_operand.vmem [shape: f32[2,1,1], index: 9, kind: input, shape index: {}]
  %s10 = inlined_call_operand.vmem [shape: f32[64,1], index: 10, kind: output, shape index: {0}]
  %s11 = inlined_call_operand.vmem [shape: bf16[64,128], index: 11, kind: output, shape index: {1}]
  %12 = xla_tuple %s10, %s11
  %s13 = sld [smem:[#allocation0]]
  $region139: #{bpnn_forward.2} parent=0
    _
  %s15 = ssub.s32 1, %s13
  %s16 = scalar_select 0, %s15, %s13
  $region1: #{bpnn_forward.2} parent=0
    #allocation2 [shape = 'u8[65536]{0}', space=vmem, size = 0x10000, scoped, tag = 'input window, operand 1']
    #allocation3 [shape = 'u8[131072]{0}', space=vmem, size = 0x20000, scoped, tag = 'input window, operand 3, single buffered']
    #allocation4 [shape = 's32[2]{0}', space=sflag, size = 0x8, scoped, tag = 'scoped memory for bpnn_forward.2']
    #allocation5 [shape = 'u8[1024]{0}', space=vmem, size = 0x400, scoped, tag = 'input window, operand 4, single buffered']
    #allocation6 [shape = 's32[1]{0}', space=sflag, size = 0x4, scoped, tag = 'scoped memory for bpnn_forward.2']
    #allocation7 [shape = 'u8[262144]{0}', space=vmem, size = 0x40000, scoped, tag = 'input window, operand 6, single buffered']
    #allocation8 [shape = 'u8[2048]{0}', space=vmem, size = 0x800, scoped, tag = 'input window, operand 7, single buffered']
    #allocation9 [shape = 's32[1]{0}', space=sflag, size = 0x4, scoped, tag = 'scoped memory for bpnn_forward.2']
    #allocation10 [shape = 'u8[1024]{0}', space=vmem, size = 0x400, scoped, tag = 'input window, operand 8, single buffered']
    %17 = vsyncpa [#allocation4], 0
    %18 = vsyncpa [#allocation6], 0
    %19 = vsyncpa [#allocation9], 0
    loop: start=0, step=1, limit=4
    $region2: #{bpnn_forward.2} parent=1 // loop_pre_header
      _
    $region3: #{bpnn_forward.2} parent=1 // loop_header
      %s21 = sphi 0, %s25
      %p22 = scmp.ge.s32.totalorder %s21, 4
      %s31 = sphi 0, %s33
      %s34 = sphi 0, %s31
      %s35 = sphi 0, %s34
      %s51 = sphi 0, %s35
      %s57 = sphi 0, %s59
      %s60 = sphi 0, %s57
      %s61 = sphi 0, %s60
      %s77 = sphi 0, %s61
      %s81 = sphi 0, %s81
      %s83 = sphi 0, %s81
      %s84 = sphi 0, %s83
      %s98 = sphi 0, %s84
      %s102 = sphi 0, %s102
      %s104 = sphi 0, %s102
      %s105 = sphi 0, %s104
      %s119 = sphi 0, %s105
      %s123 = sphi 0, %s123
      %s125 = sphi 0, %s123
      %s126 = sphi 0, %s125
      %s140 = sphi 0, %s126
      %s144 = sphi 0, %s144
      %s146 = sphi 0, %s144
      %s147 = sphi 0, %s146
      %s161 = sphi 0, %s147
      %s165 = sphi 0, %s165
      %s167 = sphi 0, %s165
      %s168 = sphi 0, %s167
      %s182 = sphi 0, %s168
      %s186 = sphi 0, %s186
      %s188 = sphi 0, %s186
      %s189 = sphi 0, %s188
      %s203 = sphi 0, %s189
      %s207 = sphi 0, %s207
      %s209 = sphi 0, %s207
      %s210 = sphi 0, %s209
      %s224 = sphi 0, %s210
      %s228 = sphi 0, %s228
      %s230 = sphi 0, %s228
      %s231 = sphi 0, %s230
      %s245 = sphi 0, %s231
      %s251 = sphi 0, %s253
      %s254 = sphi 0, %s251
      %s255 = sphi 0, %s254
      %s271 = sphi 0, %s255
      %s277 = sphi 0, %s279
      %s280 = sphi 0, %s277
      %s281 = sphi 0, %s280
      %s297 = sphi 0, %s281
    $region4: #{bpnn_forward.2} parent=1 // loop_header_branch
      %24 = sbr.rel (%p22) target = $region8
    $region5: #{bpnn_forward.2} parent=1 // loop_body
      %s26 = ssub.s32 %s21, 1
      %s27 = ssub.s32 %s21, 2
      %s28 = sadd.s32 %s21, 1
      %s29 = ssub.s32 %s21, %s28
      %p30 = scmp.eq.s32.totalorder %s29, 0
      %s32 = sadd.s32 %s31, 1
      %s33 = scalar_select %p30, %s31, %s32
      %p36 = pneg %p30
      %p37 = scmp.eq.s32.totalorder %s21, 1
      %p38 = por %p36, %p37
      %p39 = scmp.ne.s32.totalorder %s31, %s34
      %p40 = scmp.eq.s32.totalorder %s21, 0
      %p41 = por %p39, %p40
      %p42 = scmp.ne.s32.totalorder %s31, %s34
      %p43 = scmp.eq.s32.totalorder %s26, 1
      %p44 = por %p42, %p43
      %p45 = scmp.ne.s32.totalorder %s34, %s35
      %p46 = scmp.eq.s32.totalorder %s26, 0
      %p47 = por %p45, %p46
      %p48 = scmp.ne.s32.totalorder %s34, %s35
      %p49 = scmp.eq.s32.totalorder %s27, 1
      %p50 = por %p48, %p49
      %p52 = scmp.ne.s32.totalorder %s35, %s51
      %p53 = scmp.eq.s32.totalorder %s27, 0
      %p54 = por %p52, %p53
      %s55 = ssub.s32 %s21, %s28
      %p56 = scmp.eq.s32.totalorder %s55, 0
      %s58 = sadd.s32 %s57, 1
      %s59 = scalar_select %p56, %s57, %s58
      %p62 = pneg %p56
      %p63 = scmp.eq.s32.totalorder %s21, 1
      %p64 = por %p62, %p63
      %p65 = scmp.ne.s32.totalorder %s57, %s60
      %p66 = scmp.eq.s32.totalorder %s21, 0
      %p67 = por %p65, %p66
      %p68 = scmp.ne.s32.totalorder %s57, %s60
      %p69 = scmp.eq.s32.totalorder %s26, 1
      %p70 = por %p68, %p69
      %p71 = scmp.ne.s32.totalorder %s60, %s61
      %p72 = scmp.eq.s32.totalorder %s26, 0
      %p73 = por %p71, %p72
      %p74 = scmp.ne.s32.totalorder %s60, %s61
      %p75 = scmp.eq.s32.totalorder %s27, 1
      %p76 = por %p74, %p75
      %p78 = scmp.ne.s32.totalorder %s61, %s77
      %p79 = scmp.eq.s32.totalorder %s27, 0
      %p80 = por %p78, %p79
      %s82 = sadd.s32 %s81, 1
      %p85 = scmp.eq.s32.totalorder %s21, 1
      %p86 = scmp.ne.s32.totalorder %s81, %s83
      %p87 = scmp.eq.s32.totalorder %s21, 0
      %p88 = por %p86, %p87
      %p89 = scmp.ne.s32.totalorder %s81, %s83
      %p90 = scmp.eq.s32.totalorder %s26, 1
      %p91 = por %p89, %p90
      %p92 = scmp.ne.s32.totalorder %s83, %s84
      %p93 = scmp.eq.s32.totalorder %s26, 0
      %p94 = por %p92, %p93
      %p95 = scmp.ne.s32.totalorder %s83, %s84
      %p96 = scmp.eq.s32.totalorder %s27, 1
      %p97 = por %p95, %p96
      %p99 = scmp.ne.s32.totalorder %s84, %s98
      %p100 = scmp.eq.s32.totalorder %s27, 0
      %p101 = por %p99, %p100
      %s103 = sadd.s32 %s102, 1
      %p106 = scmp.eq.s32.totalorder %s21, 1
      %p107 = scmp.ne.s32.totalorder %s102, %s104
      %p108 = scmp.eq.s32.totalorder %s21, 0
      %p109 = por %p107, %p108
      %p110 = scmp.ne.s32.totalorder %s102, %s104
      %p111 = scmp.eq.s32.totalorder %s26, 1
      %p112 = por %p110, %p111
      %p113 = scmp.ne.s32.totalorder %s104, %s105
      %p114 = scmp.eq.s32.totalorder %s26, 0
      %p115 = por %p113, %p114
      %p116 = scmp.ne.s32.totalorder %s104, %s105
      %p117 = scmp.eq.s32.totalorder %s27, 1
      %p118 = por %p116, %p117
      %p120 = scmp.ne.s32.totalorder %s105, %s119
      %p121 = scmp.eq.s32.totalorder %s27, 0
      %p122 = por %p120, %p121
      %s124 = sadd.s32 %s123, 1
      %p127 = scmp.eq.s32.totalorder %s21, 1
      %p128 = scmp.ne.s32.totalorder %s123, %s125
      %p129 = scmp.eq.s32.totalorder %s21, 0
      %p130 = por %p128, %p129
      %p131 = scmp.ne.s32.totalorder %s123, %s125
      %p132 = scmp.eq.s32.totalorder %s26, 1
      %p133 = por %p131, %p132
      %p134 = scmp.ne.s32.totalorder %s125, %s126
      %p135 = scmp.eq.s32.totalorder %s26, 0
      %p136 = por %p134, %p135
      %p137 = scmp.ne.s32.totalorder %s125, %s126
      %p138 = scmp.eq.s32.totalorder %s27, 1
      %p139 = por %p137, %p138
      %p141 = scmp.ne.s32.totalorder %s126, %s140
      %p142 = scmp.eq.s32.totalorder %s27, 0
      %p143 = por %p141, %p142
      %s145 = sadd.s32 %s144, 1
      %p148 = scmp.eq.s32.totalorder %s21, 1
      %p149 = scmp.ne.s32.totalorder %s144, %s146
      %p150 = scmp.eq.s32.totalorder %s21, 0
      %p151 = por %p149, %p150
      %p152 = scmp.ne.s32.totalorder %s144, %s146
      %p153 = scmp.eq.s32.totalorder %s26, 1
      %p154 = por %p152, %p153
      %p155 = scmp.ne.s32.totalorder %s146, %s147
      %p156 = scmp.eq.s32.totalorder %s26, 0
      %p157 = por %p155, %p156
      %p158 = scmp.ne.s32.totalorder %s146, %s147
      %p159 = scmp.eq.s32.totalorder %s27, 1
      %p160 = por %p158, %p159
      %p162 = scmp.ne.s32.totalorder %s147, %s161
      %p163 = scmp.eq.s32.totalorder %s27, 0
      %p164 = por %p162, %p163
      %s166 = sadd.s32 %s165, 1
      %p169 = scmp.eq.s32.totalorder %s21, 1
      %p170 = scmp.ne.s32.totalorder %s165, %s167
      %p171 = scmp.eq.s32.totalorder %s21, 0
      %p172 = por %p170, %p171
      %p173 = scmp.ne.s32.totalorder %s165, %s167
      %p174 = scmp.eq.s32.totalorder %s26, 1
      %p175 = por %p173, %p174
      %p176 = scmp.ne.s32.totalorder %s167, %s168
      %p177 = scmp.eq.s32.totalorder %s26, 0
      %p178 = por %p176, %p177
      %p179 = scmp.ne.s32.totalorder %s167, %s168
      %p180 = scmp.eq.s32.totalorder %s27, 1
      %p181 = por %p179, %p180
      %p183 = scmp.ne.s32.totalorder %s168, %s182
      %p184 = scmp.eq.s32.totalorder %s27, 0
      %p185 = por %p183, %p184
      %s187 = sadd.s32 %s186, 1
      %p190 = scmp.eq.s32.totalorder %s21, 1
      %p191 = scmp.ne.s32.totalorder %s186, %s188
      %p192 = scmp.eq.s32.totalorder %s21, 0
      %p193 = por %p191, %p192
      %p194 = scmp.ne.s32.totalorder %s186, %s188
      %p195 = scmp.eq.s32.totalorder %s26, 1
      %p196 = por %p194, %p195
      %p197 = scmp.ne.s32.totalorder %s188, %s189
      %p198 = scmp.eq.s32.totalorder %s26, 0
      %p199 = por %p197, %p198
      %p200 = scmp.ne.s32.totalorder %s188, %s189
      %p201 = scmp.eq.s32.totalorder %s27, 1
      %p202 = por %p200, %p201
      %p204 = scmp.ne.s32.totalorder %s189, %s203
      %p205 = scmp.eq.s32.totalorder %s27, 0
      %p206 = por %p204, %p205
      %s208 = sadd.s32 %s207, 1
      %p211 = scmp.eq.s32.totalorder %s21, 1
      %p212 = scmp.ne.s32.totalorder %s207, %s209
      %p213 = scmp.eq.s32.totalorder %s21, 0
      %p214 = por %p212, %p213
      %p215 = scmp.ne.s32.totalorder %s207, %s209
      %p216 = scmp.eq.s32.totalorder %s26, 1
      %p217 = por %p215, %p216
      %p218 = scmp.ne.s32.totalorder %s209, %s210
      %p219 = scmp.eq.s32.totalorder %s26, 0
      %p220 = por %p218, %p219
      %p221 = scmp.ne.s32.totalorder %s209, %s210
      %p222 = scmp.eq.s32.totalorder %s27, 1
      %p223 = por %p221, %p222
      %p225 = scmp.ne.s32.totalorder %s210, %s224
      %p226 = scmp.eq.s32.totalorder %s27, 0
      %p227 = por %p225, %p226
      %s229 = sadd.s32 %s228, 1
      %p232 = scmp.eq.s32.totalorder %s21, 1
      %p233 = scmp.ne.s32.totalorder %s228, %s230
      %p234 = scmp.eq.s32.totalorder %s21, 0
      %p235 = por %p233, %p234
      %p236 = scmp.ne.s32.totalorder %s228, %s230
      %p237 = scmp.eq.s32.totalorder %s26, 1
      %p238 = por %p236, %p237
      %p239 = scmp.ne.s32.totalorder %s230, %s231
      %p240 = scmp.eq.s32.totalorder %s26, 0
      %p241 = por %p239, %p240
      %p242 = scmp.ne.s32.totalorder %s230, %s231
      %p243 = scmp.eq.s32.totalorder %s27, 1
      %p244 = por %p242, %p243
      %p246 = scmp.ne.s32.totalorder %s231, %s245
      %p247 = scmp.eq.s32.totalorder %s27, 0
      %p248 = por %p246, %p247
      %s249 = ssub.s32 %s21, %s28
      %p250 = scmp.eq.s32.totalorder %s249, 0
      %s252 = sadd.s32 %s251, 1
      %s253 = scalar_select %p250, %s251, %s252
      %p256 = pneg %p250
      %p257 = scmp.eq.s32.totalorder %s21, 1
      %p258 = por %p256, %p257
      %p259 = scmp.ne.s32.totalorder %s251, %s254
      %p260 = scmp.eq.s32.totalorder %s21, 0
      %p261 = por %p259, %p260
      %p262 = scmp.ne.s32.totalorder %s251, %s254
      %p263 = scmp.eq.s32.totalorder %s26, 1
      %p264 = por %p262, %p263
      %p265 = scmp.ne.s32.totalorder %s254, %s255
      %p266 = scmp.eq.s32.totalorder %s26, 0
      %p267 = por %p265, %p266
      %p268 = scmp.ne.s32.totalorder %s254, %s255
      %p269 = scmp.eq.s32.totalorder %s27, 1
      %p270 = por %p268, %p269
      %p272 = scmp.ne.s32.totalorder %s255, %s271
      %p273 = scmp.eq.s32.totalorder %s27, 0
      %p274 = por %p272, %p273
      %s275 = ssub.s32 %s21, %s28
      %p276 = scmp.eq.s32.totalorder %s275, 0
      %s278 = sadd.s32 %s277, 1
      %s279 = scalar_select %p276, %s277, %s278
      %p282 = pneg %p276
      %p283 = scmp.eq.s32.totalorder %s21, 1
      %p284 = por %p282, %p283
      %p285 = scmp.ne.s32.totalorder %s277, %s280
      %p286 = scmp.eq.s32.totalorder %s21, 0
      %p287 = por %p285, %p286
      %p288 = scmp.ne.s32.totalorder %s277, %s280
      %p289 = scmp.eq.s32.totalorder %s26, 1
      %p290 = por %p288, %p289
      %p291 = scmp.ne.s32.totalorder %s280, %s281
      %p292 = scmp.eq.s32.totalorder %s26, 0
      %p293 = por %p291, %p292
      %p294 = scmp.ne.s32.totalorder %s280, %s281
      %p295 = scmp.eq.s32.totalorder %s27, 1
      %p296 = por %p294, %p295
      %p298 = scmp.ne.s32.totalorder %s281, %s297
      %p299 = scmp.eq.s32.totalorder %s27, 0
      %p300 = por %p298, %p299
      %p301 = scmp.le.s32.totalorder 1, %s21
      %p302 = scmp.lt.s32.totalorder %s21, 3
      %p303 = pnand %p301, %p302
      %p304 = pneg %p303
      // Predicated region
      $region9: #{bpnn_forward.2} parent=5 // pred_check
        _
      $region10: #{bpnn_forward.2} parent=5 // pred_check_branch
        %306 = sbr.rel (%p303) target = $region12
      $region11: #{bpnn_forward.2} parent=5 // pred_region
        %s307 = ssub.s32 %s21, 1
        // Predicated region
        $region13: #{bpnn_forward.2} parent=11 // pred_check
          %p308 = pneg %p94
        $region14: #{bpnn_forward.2} parent=11 // pred_check_branch
          %310 = sbr.rel (%p308) target = $region16
        $region15: #{bpnn_forward.2} parent=11 // pred_region
          _
        $region16: #{bpnn_forward.2} parent=11 // pred_fallthru
          _
        // Predicated region
        $region17: #{bpnn_forward.2} parent=11 // pred_check
          %p311 = pneg %p115
        $region18: #{bpnn_forward.2} parent=11 // pred_check_branch
          %313 = sbr.rel (%p311) target = $region20
        $region19: #{bpnn_forward.2} parent=11 // pred_region
          %s315 = ssub.s32 4096, 4096
          %316 = vsyncadd [#allocation4], %s315
          %s317 = sshll.u32 [#allocation3], 4
          %s318 = int_to_ptr.vmem [resolvable:$true] %s317
          %323 = dma.hbm_to_vmem [thread:$0]  %s3, 4096, %s318, [#allocation4], 128, 128, 8
        $region20: #{bpnn_forward.2} parent=11 // pred_fallthru
          _
        // Predicated region
        $region21: #{bpnn_forward.2} parent=11 // pred_check
          %p324 = pneg %p136
        $region22: #{bpnn_forward.2} parent=11 // pred_check_branch
          %326 = sbr.rel (%p324) target = $region24
        $region23: #{bpnn_forward.2} parent=11 // pred_region
          %s328 = ssub.s32 32, 32
          %329 = vsyncadd [#allocation6], %s328
          %s330 = sshll.u32 [#allocation5], 4
          %s331 = int_to_ptr.vmem [resolvable:$true] %s330
          %336 = dma.hbm_to_vmem [thread:$0]  %s4, 32, %s331, [#allocation6], 16, 16, 1
        $region24: #{bpnn_forward.2} parent=11 // pred_fallthru
          _
        // Predicated region
        $region25: #{bpnn_forward.2} parent=11 // pred_check
          %p337 = pneg %p157
        $region26: #{bpnn_forward.2} parent=11 // pred_check_branch
          %339 = sbr.rel (%p337) target = $region28
        $region27: #{bpnn_forward.2} parent=11 // pred_region
          _
        $region28: #{bpnn_forward.2} parent=11 // pred_fallthru
          _
        // Predicated region
        $region29: #{bpnn_forward.2} parent=11 // pred_check
          %p340 = pneg %p178
        $region30: #{bpnn_forward.2} parent=11 // pred_check_branch
          %342 = sbr.rel (%p340) target = $region32
        $region31: #{bpnn_forward.2} parent=11 // pred_region
          %s344 = ssub.s32 8192, 8192
          %345 = vsyncadd [#allocation6], %s344
          %s346 = sshll.u32 [#allocation7], 4
          %s347 = int_to_ptr.vmem [resolvable:$true] %s346
          %352 = dma.hbm_to_vmem [thread:$0]  %s6, 8192, %s347, [#allocation6], 128, 128, 8
        $region32: #{bpnn_forward.2} parent=11 // pred_fallthru
          _
        // Predicated region
        $region33: #{bpnn_forward.2} parent=11 // pred_check
          %p353 = pneg %p199
        $region34: #{bpnn_forward.2} parent=11 // pred_check_branch
          %355 = sbr.rel (%p353) target = $region36
        $region35: #{bpnn_forward.2} parent=11 // pred_region
          %s357 = ssub.s32 64, 64
          %358 = vsyncadd [#allocation9], %s357
          %s359 = sshll.u32 [#allocation8], 4
          %s360 = int_to_ptr.vmem [resolvable:$true] %s359
          %365 = dma.hbm_to_vmem [thread:$0]  %s7, 64, %s360, [#allocation9], 16, 16, 1
        $region36: #{bpnn_forward.2} parent=11 // pred_fallthru
          _
        // Predicated region
        $region37: #{bpnn_forward.2} parent=11 // pred_check
          %p366 = pneg %p220
        $region38: #{bpnn_forward.2} parent=11 // pred_check_branch
          %368 = sbr.rel (%p366) target = $region40
        $region39: #{bpnn_forward.2} parent=11 // pred_region
          %s370 = ssub.s32 32, 32
          %371 = vsyncadd [#allocation9], %s370
          %s372 = sshll.u32 [#allocation10], 4
          %s373 = int_to_ptr.vmem [resolvable:$true] %s372
          %378 = dma.hbm_to_vmem [thread:$0]  %s8, 32, %s373, [#allocation9], 16, 16, 1
        $region40: #{bpnn_forward.2} parent=11 // pred_fallthru
          _
        // Predicated region
        $region41: #{bpnn_forward.2} parent=11 // pred_check
          %p379 = pneg %p241
        $region42: #{bpnn_forward.2} parent=11 // pred_check_branch
          %381 = sbr.rel (%p379) target = $region44
        $region43: #{bpnn_forward.2} parent=11 // pred_region
          _
        $region44: #{bpnn_forward.2} parent=11 // pred_fallthru
          _
      $region12: #{bpnn_forward.2} parent=5 // pred_fallthru
        _
      %p382 = scmp.lt.s32.totalorder %s21, 2
      // Predicated region
      $region45: #{bpnn_forward.2} parent=5 // pred_check
        %p383 = pneg %p382
      $region46: #{bpnn_forward.2} parent=5 // pred_check_branch
        %385 = sbr.rel (%p383) target = $region48
      $region47: #{bpnn_forward.2} parent=5 // pred_region
        // Predicated region
        $region49: #{bpnn_forward.2} parent=47 // pred_check
          %p386 = pneg %p41
        $region50: #{bpnn_forward.2} parent=47 // pred_check_branch
          %388 = sbr.rel (%p386) target = $region52
        $region51: #{bpnn_forward.2} parent=47 // pred_region
          %s389 = smul.u32 4, %s21
          %p390 = scmp.lt.s32.totalorder %s389, 7
          %s391 = scalar_select %p390, %s389, 7
          %s392 = smul.addr %s391, 4
          %s393 = scalar_lea.vmem %s0, %s392
          %s394 = smul.u32 4, %s21
        $region52: #{bpnn_forward.2} parent=47 // pred_fallthru
          _
        // Predicated region
        $region53: #{bpnn_forward.2} parent=47 // pred_check
          %p395 = pneg %p67
        $region54: #{bpnn_forward.2} parent=47 // pred_check_branch
          %397 = sbr.rel (%p395) target = $region56
        $region55: #{bpnn_forward.2} parent=47 // pred_region
          %s398 = sand.u32 %s57, 1
          %s399 = sand.u32 %s57, 1
          %s400 = smul.addr %s399, 64
          %s401 = scalar_lea.vmem [#allocation2], %s400
          %s402 = smul.u32 4, %s21
          %s403 = smul.addr %s402, 8
          %s404 = scalar_lea.vmem %s1, %s403
          // Predicated region
          $region57: #{bpnn_forward.2} parent=55 // pred_check
            _
          $region58: #{bpnn_forward.2} parent=55 // pred_check_branch
            %406 = sbr.rel (0) target = $region60
          $region59: #{bpnn_forward.2} parent=55 // pred_region
            // Predicated region
            $region61: #{bpnn_forward.2} parent=59 // pred_check
              _
            $region62: #{bpnn_forward.2} parent=59 // pred_check_branch
              %408 = sbr.rel (0) target = $region64
            $region63: #{bpnn_forward.2} parent=59 // pred_region
              // Predicated region
              $region76: #{bpnn_forward.2} parent=63 // pred_check
                _
              $region77: #{bpnn_forward.2} parent=63 // pred_check_branch
                %438 = sbr.rel (0) target = $region79
              $region78: #{bpnn_forward.2} parent=63 // pred_region
                loop: start=0, step=1, limit=1
                $region80: #{bpnn_forward.2} parent=78 // loop_pre_header
                  _
                $region81: #{bpnn_forward.2} parent=78 // loop_header
                  %s440 = sphi 0, %s444
                  %p441 = scmp.ge.s32.totalorder %s440, 1
                  %s445 = sphi %s404, %s404
                  %s446 = sphi %s401, %s401
                $region82: #{bpnn_forward.2} parent=78 // loop_header_branch
                  %443 = sbr.rel (%p441) target = $region86
                $region83: #{bpnn_forward.2} parent=78 // loop_body
                  %v447 = vld [vmem:[%s445] sm:$0xff]
                  %448 = vst [vmem:[%s446] sm:$0xff] %v447
                  %v449 = vld [vmem:[%s445 + $0x8] sm:$0xff]
                  %450 = vst [vmem:[%s446 + $0x8] sm:$0xff] %v449
                  %v451 = vld [vmem:[%s445 + $0x10] sm:$0xff]
                  %452 = vst [vmem:[%s446 + $0x10] sm:$0xff] %v451
                  %v453 = vld [vmem:[%s445 + $0x18] sm:$0xff]
                  %454 = vst [vmem:[%s446 + $0x18] sm:$0xff] %v453
                  %v455 = vld [vmem:[%s445 + $0x40] sm:$0xff]
                  %456 = vst [vmem:[%s446 + $0x20] sm:$0xff] %v455
                  %v457 = vld [vmem:[%s445 + $0x48] sm:$0xff]
                  %458 = vst [vmem:[%s446 + $0x28] sm:$0xff] %v457
                  %v459 = vld [vmem:[%s445 + $0x50] sm:$0xff]
                  %460 = vst [vmem:[%s446 + $0x30] sm:$0xff] %v459
                  %v461 = vld [vmem:[%s445 + $0x58] sm:$0xff]
                  %462 = vst [vmem:[%s446 + $0x38] sm:$0xff] %v461
                $region84: #{bpnn_forward.2} parent=78 // loop_footer
                  %s444 = sadd.s32 1, %s440
                $region85: #{bpnn_forward.2} parent=78 // loop_footer_branch
                  %439 = sbr.rel target = $region81
                $region86: #{bpnn_forward.2} parent=78 // loop_exit
                  _
              $region79: #{bpnn_forward.2} parent=63 // pred_fallthru
                _
              // Predicated region
              $region87: #{bpnn_forward.2} parent=63 // pred_check
                _
              $region88: #{bpnn_forward.2} parent=63 // pred_check_branch
                %464 = sbr.rel target = $region90
              $region89: #{bpnn_forward.2} parent=63 // pred_region
                _
              $region90: #{bpnn_forward.2} parent=63 // pred_fallthru
                _
            $region64: #{bpnn_forward.2} parent=59 // pred_fallthru
              _
            // Predicated region
            $region65: #{bpnn_forward.2} parent=59 // pred_check
              _
            $region66: #{bpnn_forward.2} parent=59 // pred_check_branch
              %410 = sbr.rel target = $region68
            $region67: #{bpnn_forward.2} parent=59 // pred_region
              %s412 = ssub.s32 256, 1
              loop: start=0, step=1, limit=1
              $region69: #{bpnn_forward.2} parent=67 // loop_pre_header
                _
              $region70: #{bpnn_forward.2} parent=67 // loop_header
                %s414 = sphi 0, %s418
                %p415 = scmp.ge.s32.totalorder %s414, 1
                %s419 = sphi %s404, %s404
                %s420 = sphi %s401, %s401
              $region71: #{bpnn_forward.2} parent=67 // loop_header_branch
                %417 = sbr.rel (%p415) target = $region75
              $region72: #{bpnn_forward.2} parent=67 // loop_body
                %v421 = vld [vmem:[%s419] sm:%s412]
                %422 = vst [vmem:[%s420] sm:%s412] %v421
                %v423 = vld [vmem:[%s419 + $0x8] sm:%s412]
                %424 = vst [vmem:[%s420 + $0x8] sm:%s412] %v423
                %v425 = vld [vmem:[%s419 + $0x10] sm:%s412]
                %426 = vst [vmem:[%s420 + $0x10] sm:%s412] %v425
                %v427 = vld [vmem:[%s419 + $0x18] sm:%s412]
                %428 = vst [vmem:[%s420 + $0x18] sm:%s412] %v427
                %v429 = vld [vmem:[%s419 + $0x40] sm:%s412]
                %430 = vst [vmem:[%s420 + $0x20] sm:%s412] %v429
                %v431 = vld [vmem:[%s419 + $0x48] sm:%s412]
                %432 = vst [vmem:[%s420 + $0x28] sm:%s412] %v431
                %v433 = vld [vmem:[%s419 + $0x50] sm:%s412]
                %434 = vst [vmem:[%s420 + $0x30] sm:%s412] %v433
                %v435 = vld [vmem:[%s419 + $0x58] sm:%s412]
                %436 = vst [vmem:[%s420 + $0x38] sm:%s412] %v435
              $region73: #{bpnn_forward.2} parent=67 // loop_footer
                %s418 = sadd.s32 1, %s414
              $region74: #{bpnn_forward.2} parent=67 // loop_footer_branch
                %413 = sbr.rel target = $region70
              $region75: #{bpnn_forward.2} parent=67 // loop_exit
                _
            $region68: #{bpnn_forward.2} parent=59 // pred_fallthru
              _
          $region60: #{bpnn_forward.2} parent=55 // pred_fallthru
            _
          %465 = vnop
        $region56: #{bpnn_forward.2} parent=47 // pred_fallthru
          _
      $region48: #{bpnn_forward.2} parent=5 // pred_fallthru
        _
      %p466 = scmp.le.s32.totalorder 1, %s21
      %p467 = scmp.lt.s32.totalorder %s21, 3
      %p468 = pnand %p466, %p467
      %p469 = pneg %p468
      // Predicated region
      $region91: #{bpnn_forward.2} parent=5 // pred_check
        _
      $region92: #{bpnn_forward.2} parent=5 // pred_check_branch
        %471 = sbr.rel (%p468) target = $region94
      $region93: #{bpnn_forward.2} parent=5 // pred_region
        %s472 = ssub.s32 %s21, 1
        %s473 = sand.u32 %s60, 1
        %s474 = sand.u32 %s60, 1
        %s475 = smul.addr %s474, 64
        %s476 = scalar_lea.vmem [#allocation2], %s475
        // Predicated region
        $region95: #{bpnn_forward.2} parent=93 // pred_check
          %p477 = pneg %p73
        $region96: #{bpnn_forward.2} parent=93 // pred_check_branch
          %479 = sbr.rel (%p477) target = $region98
        $region97: #{bpnn_forward.2} parent=93 // pred_region
          _
        $region98: #{bpnn_forward.2} parent=93 // pred_fallthru
          _
        // Predicated region
        $region99: #{bpnn_forward.2} parent=93 // pred_check
          %p480 = pneg %p115
        $region100: #{bpnn_forward.2} parent=93 // pred_check_branch
          %482 = sbr.rel (%p480) target = $region102
        $region101: #{bpnn_forward.2} parent=93 // pred_region
          %483 = dma.done [#allocation4], 4096
        $region102: #{bpnn_forward.2} parent=93 // pred_fallthru
          _
        // Predicated region
        $region103: #{bpnn_forward.2} parent=93 // pred_check
          %p484 = pneg %p136
        $region104: #{bpnn_forward.2} parent=93 // pred_check_branch
          %486 = sbr.rel (%p484) target = $region106
        $region105: #{bpnn_forward.2} parent=93 // pred_region
          %487 = dma.done [#allocation6], 32
        $region106: #{bpnn_forward.2} parent=93 // pred_fallthru
          _
        // Predicated region
        $region107: #{bpnn_forward.2} parent=93 // pred_check
          %p488 = pneg %p178
        $region108: #{bpnn_forward.2} parent=93 // pred_check_branch
          %490 = sbr.rel (%p488) target = $region110
        $region109: #{bpnn_forward.2} parent=93 // pred_region
          %491 = dma.done [#allocation6], 8192
        $region110: #{bpnn_forward.2} parent=93 // pred_fallthru
          _
        // Predicated region
        $region111: #{bpnn_forward.2} parent=93 // pred_check
          %p492 = pneg %p199
        $region112: #{bpnn_forward.2} parent=93 // pred_check_branch
          %494 = sbr.rel (%p492) target = $region114
        $region113: #{bpnn_forward.2} parent=93 // pred_region
          %495 = dma.done [#allocation9], 64
        $region114: #{bpnn_forward.2} parent=93 // pred_fallthru
          _
        // Predicated region
        $region115: #{bpnn_forward.2} parent=93 // pred_check
          %p496 = pneg %p220
        $region116: #{bpnn_forward.2} parent=93 // pred_check_branch
          %498 = sbr.rel (%p496) target = $region118
        $region117: #{bpnn_forward.2} parent=93 // pred_region
          %499 = dma.done [#allocation9], 32
        $region118: #{bpnn_forward.2} parent=93 // pred_fallthru
          _
        %s500 = smul.u32 4, %s26
        %p501 = scmp.lt.s32.totalorder %s500, 7
        %s502 = scalar_select %p501, %s500, 7
        %s503 = smul.addr %s502, 4
        %s504 = scalar_lea.vmem %s0, %s503
        %p505 = pneg %p47
        %p506 = pneg %p44
        %s507 = sand.u32 %s60, 1
        %s508 = sand.u32 %s60, 1
        %s509 = smul.addr %s508, 64
        %s510 = scalar_lea.vmem [#allocation2], %s509
        %p511 = pneg %p73
        %p512 = pneg %p70
        %p513 = pneg %p94
        %p514 = pneg %p91
        %p515 = pneg %p115
        %p516 = pneg %p112
        %p517 = pneg %p136
        %p518 = pneg %p133
        %p519 = pneg %p157
        %p520 = pneg %p154
        %p521 = pneg %p178
        %p522 = pneg %p175
        %p523 = pneg %p199
        %p524 = pneg %p196
        %p525 = pneg %p220
        %p526 = pneg %p217
        %p527 = pneg %p241
        %p528 = pneg %p238
        %p529 = pneg %p267
        %p530 = pneg %p264
        %s531 = smul.u32 4, %s26
        %p532 = scmp.lt.s32.totalorder %s531, 7
        %s533 = scalar_select %p532, %s531, 7
        %s534 = smul.addr %s533, 8
        %s535 = scalar_lea.vmem %s10, %s534
        %p536 = pneg %p293
        %p537 = pneg %p290
        %s538 = smul.u32 4, %s26
        %p539 = scmp.lt.s32.totalorder %s538, 7
        %s540 = scalar_select %p539, %s538, 7
        %s541 = smul.addr %s540, 4
        %s542 = scalar_lea.vmem %s11, %s541
        %s543 = smul.u32 4, %s26
        %p544 = scmp.lt.s32.totalorder %s543, 7
        %s545 = scalar_select %p544, %s543, 7
        %s546 = smul.addr %s545, 4
        %s547 = scalar_lea.vmem %s0, %s546
        %s548 = smul.u32 4, %s26
        %s549 = smul.u32 4, %s26
        %s550 = smul.u32 4, %s26
        %p551 = scmp.lt.s32.totalorder %s550, 7
        %s552 = scalar_select %p551, %s550, 7
        %s553 = smul.addr %s552, 8
        %s554 = scalar_lea.vmem %s10, %s553
        %s555 = smul.u32 4, %s26
        %s556 = smul.u32 4, %s26
        %p557 = scmp.lt.s32.totalorder %s556, 7
        %s558 = scalar_select %p557, %s556, 7
        %s559 = smul.addr %s558, 4
        %s560 = scalar_lea.vmem %s11, %s559
        %s561 = smul.u32 4, %s26
        %v563 = vld [vmem:[%s547] sm:$0xf]
        %v564 = vld [vmem:[%s547 + $0x4] sm:$0xf]
        %v565 = vld [vmem:[%s547 + $0x8] sm:$0xf]
        %v566 = vld [vmem:[%s547 + $0xc] sm:$0xf]
        %v567 = vld [vmem:[%s476] sm:$0xff]
        %v568 = vld [vmem:[%s476 + $0x8] sm:$0xff]
        %v569 = vld [vmem:[%s476 + $0x10] sm:$0xff]
        %v570 = vld [vmem:[%s476 + $0x18] sm:$0xff]
        %v571 = vld [vmem:[#allocation10] sm:$0x1]
        %v572 = vld [vmem:[%s2] sm:$0xf]
        %v573 = vld [vmem:[%s2 + $0x4] sm:$0xf]
        %v574 = vld [vmem:[%s2 + $0x8] sm:$0xf]
        %v575 = vld [vmem:[%s2 + $0xc] sm:$0xf]
        %v576 = vld [vmem:[%s2 + $0x10] sm:$0xf]
        %v577 = vld [vmem:[%s2 + $0x14] sm:$0xf]
        %v578 = vld [vmem:[%s2 + $0x18] sm:$0xf]
        %v579 = vld [vmem:[%s2 + $0x1c] sm:$0xf]
        %v580 = vld [vmem:[%s2 + $0x20] sm:$0xf]
        %v581 = vld [vmem:[%s2 + $0x24] sm:$0xf]
        %v582 = vld [vmem:[%s2 + $0x28] sm:$0xf]
        %v583 = vld [vmem:[%s2 + $0x2c] sm:$0xf]
        %v584 = vld [vmem:[%s2 + $0x30] sm:$0xf]
        %v585 = vld [vmem:[%s2 + $0x34] sm:$0xf]
        %v586 = vld [vmem:[%s2 + $0x38] sm:$0xf]
        %v587 = vld [vmem:[%s2 + $0x3c] sm:$0xf]
        %v588 = vld [vmem:[#allocation5] sm:$0x1]
        %v590 = vlaneseq
        %v591 = vshrl.u32 %v590, 7
        %v592 = vsub.s32 0, %v591
        %v593 = vrot.slane %v588, %v592
        %v599 = vunpack.c.l.b16 %v563
        %v600 = vunpack.c.l.b16 %v564
        %v601 = vunpack.c.l.b16 %v565
        %v602 = vunpack.c.l.b16 %v566
        %v603 = vpack.c.b16 %v600, %v599
        %v604 = vpack.c.b16 %v602, %v601
        %v623 = vunpack.c.l.b16 %v572
        %v624 = vunpack.c.l.b16 %v573
        %v625 = vunpack.c.l.b16 %v574
        %v626 = vunpack.c.l.b16 %v575
        %v627 = vunpack.c.l.b16 %v576
        %v628 = vunpack.c.l.b16 %v577
        %v629 = vunpack.c.l.b16 %v578
        %v630 = vunpack.c.l.b16 %v579
        %v631 = vunpack.c.l.b16 %v580
        %v632 = vunpack.c.l.b16 %v581
        %v633 = vunpack.c.l.b16 %v582
        %v634 = vunpack.c.l.b16 %v583
        %v635 = vunpack.c.l.b16 %v584
        %v636 = vunpack.c.l.b16 %v585
        %v637 = vunpack.c.l.b16 %v586
        %v638 = vunpack.c.l.b16 %v587
        %v639 = vpack.c.b16 %v624, %v623
        %v640 = vpack.c.b16 %v626, %v625
        %v641 = vpack.c.b16 %v628, %v627
        %v642 = vpack.c.b16 %v630, %v629
        %v643 = vpack.c.b16 %v632, %v631
        %v644 = vpack.c.b16 %v634, %v633
        %v645 = vpack.c.b16 %v636, %v635
        %v646 = vpack.c.b16 %v638, %v637
        %655 = vmatprep.subr.bf16.mxu0 0
        %656 = vmatpush1.bf16.msra.mxu0 %v646
        %657 = vmatprep.subr.bf16.mxu0 0
        %658 = vmatpush1.bf16.msra.mxu0 %v645
        %659 = vmatprep.subr.bf16.mxu0 0
        %660 = vmatpush1.bf16.msra.mxu0 %v644
        %661 = vmatprep.subr.bf16.mxu0 0
        %662 = vmatpush1.bf16.msra.mxu0 %v643
        %663 = vmatprep.subr.bf16.mxu0 0
        %664 = vmatpush1.bf16.msra.mxu0 %v642
        %665 = vmatprep.subr.bf16.mxu0 0
        %666 = vmatpush1.bf16.msra.mxu0 %v641
        %667 = vmatprep.subr.bf16.mxu0 0
        %668 = vmatpush1.bf16.msra.mxu0 %v640
        %669 = vmatprep.subr.bf16.mxu0 0
        %670 = vmatpush1.bf16.msra.mxu0 %v639
        %671 = vmatprep.subr.bf16.mxu0 0
        %672 = vmatpush2.bf16.msra.mxu0 0
        %673 = vmatprep.subr.bf16.mxu0 0
        %674 = vmatpush2.bf16.msra.mxu0 0
        %675 = vmatprep.subr.bf16.mxu0 0
        %676 = vmatpush2.bf16.msra.mxu0 0
        %677 = vmatprep.subr.bf16.mxu0 0
        %678 = vmatpush2.bf16.msra.mxu0 0
        %679 = vmatprep.subr.bf16.mxu0 0
        %680 = vmatpush2.bf16.msra.mxu0 0
        %681 = vmatprep.subr.bf16.mxu0 0
        %682 = vmatpush2.bf16.msra.mxu0 0
        %683 = vmatprep.subr.bf16.mxu0 0
        %684 = vmatpush2.bf16.msra.mxu0 0
        %685 = vmatprep.subr.bf16.mxu0 0
        %686 = vmatpush2.bf16.msra.mxu0 0
        %687 = vmatprep.mubr.bf16.mxu0 0
        %688 = vmatmul.mubr.bf16.gmra.mxu0 %v603
        %v689 = vpop.f32.mrf.mxu0
        %v690 = vadd.f32 %v593, %v689
        %v691 = vpop.f32.mrf.mxu0
        %v692 = vpop.f32.mrf.mxu0
        %v693 = vadd.f32 %v593, %v692
        %v694 = vpop.f32.mrf.mxu0
        %695 = vmatprep.mubr.bf16.mxu0 0
        %696 = vmatmul.mubr.bf16.gmra.mxu0 %v604
        %v697 = vpop.f32.mrf.mxu0
        %v698 = vadd.f32 %v593, %v697
        %v699 = vpop.f32.mrf.mxu0
        %v700 = vpop.f32.mrf.mxu0
        %v701 = vadd.f32 %v593, %v700
        %v702 = vpop.f32.mrf.mxu0
        %703 = vdwg.mxu0
        %v704 = vtanh.pop %v690
        %v705 = vtanh.pop %v693
        %v706 = vtanh.pop %v698
        %v707 = vtanh.pop %v701
        %v708 = vpack.c.bf16 %v705, %v704
        %v709 = vpack.c.bf16 %v707, %v706
        %v710 = vld [vmem:[%s5] sm:$0xf]
        %v711 = vld [vmem:[%s5 + $0x4] sm:$0xf]
        %v712 = vld [vmem:[%s5 + $0x8] sm:$0xf]
        %v713 = vld [vmem:[%s5 + $0xc] sm:$0xf]
        %v714 = vld [vmem:[%s5 + $0x10] sm:$0xf]
        %v715 = vld [vmem:[%s5 + $0x14] sm:$0xf]
        %v716 = vld [vmem:[%s5 + $0x18] sm:$0xf]
        %v717 = vld [vmem:[%s5 + $0x1c] sm:$0xf]
        %v718 = vld [vmem:[%s5 + $0x20] sm:$0xf]
        %v719 = vld [vmem:[%s5 + $0x24] sm:$0xf]
        %v720 = vld [vmem:[%s5 + $0x28] sm:$0xf]
        %v721 = vld [vmem:[%s5 + $0x2c] sm:$0xf]
        %v722 = vld [vmem:[%s5 + $0x30] sm:$0xf]
        %v723 = vld [vmem:[%s5 + $0x34] sm:$0xf]
        %v724 = vld [vmem:[%s5 + $0x38] sm:$0xf]
        %v725 = vld [vmem:[%s5 + $0x3c] sm:$0xf]
        %v726 = vld [vmem:[#allocation8] sm:$0x1]
        %v728 = vlaneseq
        %v729 = vshrl.u32 %v728, 7
        %v730 = vsub.s32 0, %v729
        %v731 = vrot.slane %v726, %v730
        %v749 = vunpack.c.l.b16 %v710
        %v750 = vunpack.c.l.b16 %v711
        %v751 = vunpack.c.l.b16 %v712
        %v752 = vunpack.c.l.b16 %v713
        %v753 = vunpack.c.l.b16 %v714
        %v754 = vunpack.c.l.b16 %v715
        %v755 = vunpack.c.l.b16 %v716
        %v756 = vunpack.c.l.b16 %v717
        %v757 = vunpack.c.l.b16 %v718
        %v758 = vunpack.c.l.b16 %v719
        %v759 = vunpack.c.l.b16 %v720
        %v760 = vunpack.c.l.b16 %v721
        %v761 = vunpack.c.l.b16 %v722
        %v762 = vunpack.c.l.b16 %v723
        %v763 = vunpack.c.l.b16 %v724
        %v764 = vunpack.c.l.b16 %v725
        %v765 = vpack.c.b16 %v750, %v749
        %v766 = vpack.c.b16 %v752, %v751
        %v767 = vpack.c.b16 %v754, %v753
        %v768 = vpack.c.b16 %v756, %v755
        %v769 = vpack.c.b16 %v758, %v757
        %v770 = vpack.c.b16 %v760, %v759
        %v771 = vpack.c.b16 %v762, %v761
        %v772 = vpack.c.b16 %v764, %v763
        %781 = vmatprep.subr.bf16.mxu0 0
        %782 = vmatpush1.bf16.msra.mxu0 %v772
        %783 = vmatprep.subr.bf16.mxu0 0
        %784 = vmatpush1.bf16.msra.mxu0 %v771
        %785 = vmatprep.subr.bf16.mxu0 0
        %786 = vmatpush1.bf16.msra.mxu0 %v770
        %787 = vmatprep.subr.bf16.mxu0 0
        %788 = vmatpush1.bf16.msra.mxu0 %v769
        %789 = vmatprep.subr.bf16.mxu0 0
        %790 = vmatpush1.bf16.msra.mxu0 %v768
        %791 = vmatprep.subr.bf16.mxu0 0
        %792 = vmatpush1.bf16.msra.mxu0 %v767
        %793 = vmatprep.subr.bf16.mxu0 0
        %794 = vmatpush1.bf16.msra.mxu0 %v766
        %795 = vmatprep.subr.bf16.mxu0 0
        %796 = vmatpush1.bf16.msra.mxu0 %v765
        %797 = vmatprep.subr.bf16.mxu0 0
        %798 = vmatpush2.bf16.msra.mxu0 0
        %799 = vmatprep.subr.bf16.mxu0 0
        %800 = vmatpush2.bf16.msra.mxu0 0
        %801 = vmatprep.subr.bf16.mxu0 0
        %802 = vmatpush2.bf16.msra.mxu0 0
        %803 = vmatprep.subr.bf16.mxu0 0
        %804 = vmatpush2.bf16.msra.mxu0 0
        %805 = vmatprep.subr.bf16.mxu0 0
        %806 = vmatpush2.bf16.msra.mxu0 0
        %807 = vmatprep.subr.bf16.mxu0 0
        %808 = vmatpush2.bf16.msra.mxu0 0
        %809 = vmatprep.subr.bf16.mxu0 0
        %810 = vmatpush2.bf16.msra.mxu0 0
        %811 = vmatprep.subr.bf16.mxu0 0
        %812 = vmatpush2.bf16.msra.mxu0 0
        %813 = vmatprep.mubr.bf16.mxu0 0
        %814 = vmatmul.mubr.bf16.gmra.mxu0 %v708
        %v815 = vpop.f32.mrf.mxu0
        %v816 = vadd.f32 %v731, %v815
        %v817 = vpop.f32.mrf.mxu0
        %v818 = vpop.f32.mrf.mxu0
        %v819 = vadd.f32 %v731, %v818
        %v820 = vpop.f32.mrf.mxu0
        %821 = vmatprep.mubr.bf16.mxu0 0
        %822 = vmatmul.mubr.bf16.gmra.mxu0 %v709
        %v823 = vpop.f32.mrf.mxu0
        %v824 = vadd.f32 %v731, %v823
        %v825 = vpop.f32.mrf.mxu0
        %v826 = vpop.f32.mrf.mxu0
        %v827 = vadd.f32 %v731, %v826
        %v828 = vpop.f32.mrf.mxu0
        %829 = vdwg.mxu0
        %v830 = vtanh.pop %v816
        %v831 = vtanh.pop %v819
        %v832 = vtanh.pop %v824
        %v833 = vtanh.pop %v827
        %v834 = vpack.c.bf16 %v831, %v830
        %v835 = vpack.c.bf16 %v833, %v832
        %s836 = scalar_lea.vmem %s5, 64
        %v837 = vld [vmem:[%s836] sm:$0xf]
        %v838 = vld [vmem:[%s836 + $0x4] sm:$0xf]
        %v839 = vld [vmem:[%s836 + $0x8] sm:$0xf]
        %v840 = vld [vmem:[%s836 + $0xc] sm:$0xf]
        %v841 = vld [vmem:[%s836 + $0x10] sm:$0xf]
        %v842 = vld [vmem:[%s836 + $0x14] sm:$0xf]
        %v843 = vld [vmem:[%s836 + $0x18] sm:$0xf]
        %v844 = vld [vmem:[%s836 + $0x1c] sm:$0xf]
        %v845 = vld [vmem:[%s836 + $0x20] sm:$0xf]
        %v846 = vld [vmem:[%s836 + $0x24] sm:$0xf]
        %v847 = vld [vmem:[%s836 + $0x28] sm:$0xf]
        %v848 = vld [vmem:[%s836 + $0x2c] sm:$0xf]
        %v849 = vld [vmem:[%s836 + $0x30] sm:$0xf]
        %v850 = vld [vmem:[%s836 + $0x34] sm:$0xf]
        %v851 = vld [vmem:[%s836 + $0x38] sm:$0xf]
        %v852 = vld [vmem:[%s836 + $0x3c] sm:$0xf]
        %s853 = scalar_lea.vmem [#allocation8], 1
        %v854 = vld [vmem:[%s853] sm:$0x1]
        %v856 = vlaneseq
        %v857 = vshrl.u32 %v856, 7
        %v858 = vsub.s32 0, %v857
        %v859 = vrot.slane %v854, %v858
        %v877 = vunpack.c.l.b16 %v837
        %v878 = vunpack.c.l.b16 %v838
        %v879 = vunpack.c.l.b16 %v839
        %v880 = vunpack.c.l.b16 %v840
        %v881 = vunpack.c.l.b16 %v841
        %v882 = vunpack.c.l.b16 %v842
        %v883 = vunpack.c.l.b16 %v843
        %v884 = vunpack.c.l.b16 %v844
        %v885 = vunpack.c.l.b16 %v845
        %v886 = vunpack.c.l.b16 %v846
        %v887 = vunpack.c.l.b16 %v847
        %v888 = vunpack.c.l.b16 %v848
        %v889 = vunpack.c.l.b16 %v849
        %v890 = vunpack.c.l.b16 %v850
        %v891 = vunpack.c.l.b16 %v851
        %v892 = vunpack.c.l.b16 %v852
        %v893 = vpack.c.b16 %v878, %v877
        %v894 = vpack.c.b16 %v880, %v879
        %v895 = vpack.c.b16 %v882, %v881
        %v896 = vpack.c.b16 %v884, %v883
        %v897 = vpack.c.b16 %v886, %v885
        %v898 = vpack.c.b16 %v888, %v887
        %v899 = vpack.c.b16 %v890, %v889
        %v900 = vpack.c.b16 %v892, %v891
        %909 = vmatprep.subr.bf16.mxu0 0
        %910 = vmatpush1.bf16.msra.mxu0 %v900
        %911 = vmatprep.subr.bf16.mxu0 0
        %912 = vmatpush1.bf16.msra.mxu0 %v899
        %913 = vmatprep.subr.bf16.mxu0 0
        %914 = vmatpush1.bf16.msra.mxu0 %v898
        %915 = vmatprep.subr.bf16.mxu0 0
        %916 = vmatpush1.bf16.msra.mxu0 %v897
        %917 = vmatprep.subr.bf16.mxu0 0
        %918 = vmatpush1.bf16.msra.mxu0 %v896
        %919 = vmatprep.subr.bf16.mxu0 0
        %920 = vmatpush1.bf16.msra.mxu0 %v895
        %921 = vmatprep.subr.bf16.mxu0 0
        %922 = vmatpush1.bf16.msra.mxu0 %v894
        %923 = vmatprep.subr.bf16.mxu0 0
        %924 = vmatpush1.bf16.msra.mxu0 %v893
        %925 = vmatprep.subr.bf16.mxu0 0
        %926 = vmatpush2.bf16.msra.mxu0 0
        %927 = vmatprep.subr.bf16.mxu0 0
        %928 = vmatpush2.bf16.msra.mxu0 0
        %929 = vmatprep.subr.bf16.mxu0 0
        %930 = vmatpush2.bf16.msra.mxu0 0
        %931 = vmatprep.subr.bf16.mxu0 0
        %932 = vmatpush2.bf16.msra.mxu0 0
        %933 = vmatprep.subr.bf16.mxu0 0
        %934 = vmatpush2.bf16.msra.mxu0 0
        %935 = vmatprep.subr.bf16.mxu0 0
        %936 = vmatpush2.bf16.msra.mxu0 0
        %937 = vmatprep.subr.bf16.mxu0 0
        %938 = vmatpush2.bf16.msra.mxu0 0
        %939 = vmatprep.subr.bf16.mxu0 0
        %940 = vmatpush2.bf16.msra.mxu0 0
        %941 = vmatprep.mubr.bf16.mxu0 0
        %942 = vmatmul.mubr.bf16.gmra.mxu0 %v834
        %v943 = vpop.f32.mrf.mxu0
        %v944 = vadd.f32 %v859, %v943
        %v945 = vpop.f32.mrf.mxu0
        %v946 = vpop.f32.mrf.mxu0
        %v947 = vadd.f32 %v859, %v946
        %v948 = vpop.f32.mrf.mxu0
        %949 = vmatprep.mubr.bf16.mxu0 0
        %950 = vmatmul.mubr.bf16.gmra.mxu0 %v835
        %v951 = vpop.f32.mrf.mxu0
        %v952 = vadd.f32 %v859, %v951
        %v953 = vpop.f32.mrf.mxu0
        %v954 = vpop.f32.mrf.mxu0
        %v955 = vadd.f32 %v859, %v954
        %v956 = vpop.f32.mrf.mxu0
        %957 = vdwg.mxu0
        %v958 = vtanh.pop %v944
        %v959 = vtanh.pop %v947
        %v960 = vtanh.pop %v952
        %v961 = vtanh.pop %v955
        %v963 = vlaneseq
        %v964 = vshrl.u32 %v963, 7
        %v965 = vsub.s32 0, %v964
        %v966 = vrot.slane %v571, %v965
        %v968 = vmul.f32 %v958, %v966
        %v969 = vmul.f32 %v959, %v966
        %v970 = vmul.f32 %v960, %v966
        %v971 = vmul.f32 %v961, %v966
        %972 = vadd.xlane.f32.xlu0 %v968
        %v973 = vpop.xlane.xlu0 %972
        %974 = vadd.xlane.f32.xlu0 %v969
        %v975 = vpop.xlane.xlu0 %974
        %976 = vadd.xlane.f32.xlu0 %v970
        %v977 = vpop.xlane.xlu0 %976
        %978 = vadd.xlane.f32.xlu0 %v971
        %v979 = vpop.xlane.xlu0 %978
        %v980 = vld [vmem:[%s9] sm:$0x1]
        %v982 = vlaneseq
        %v983 = vshrl.u32 %v982, 7
        %v984 = vsub.s32 0, %v983
        %v985 = vrot.slane %v980, %v984
        %v987 = vadd.f32 %v973, %v985
        %v988 = vadd.f32 %v975, %v985
        %v989 = vadd.f32 %v977, %v985
        %v990 = vadd.f32 %v979, %v985
        %v991 = vmul.f32 %v567, %v987
        %v992 = vmul.f32 %v568, %v988
        %v993 = vmul.f32 %v569, %v989
        %v994 = vmul.f32 %v570, %v990
        %v995 = vadd.f32 %v991, 0.0
        %v996 = vadd.f32 %v992, 0.0
        %v997 = vadd.f32 %v993, 0.0
        %v998 = vadd.f32 %v994, 0.0
        %1000 = vset.pattern.permute.xlu0 0
        %1001 = vperm.xlu0 %1000, %v567
        %v1002 = vpop.permute.xlu0 %1001
        %1005 = vset.pattern.permute.xlu0 0
        %1006 = vperm.xlu0 %1005, %v568
        %v1007 = vpop.permute.xlu0 %1006
        %1010 = vset.pattern.permute.xlu0 0
        %1011 = vperm.xlu0 %1010, %v569
        %v1012 = vpop.permute.xlu0 %1011
        %1015 = vset.pattern.permute.xlu0 0
        %1016 = vperm.xlu0 %1015, %v570
        %v1017 = vpop.permute.xlu0 %1016
        %v1019 = vmul.f32 %v1002, %v966
        %v1020 = vmul.f32 %v1007, %v966
        %v1021 = vmul.f32 %v1012, %v966
        %v1022 = vmul.f32 %v1017, %v966
        %v1023 = vmul.f32 %v958, %v958
        %v1024 = vmul.f32 %v959, %v959
        %v1025 = vmul.f32 %v960, %v960
        %v1026 = vmul.f32 %v961, %v961
        %v1027 = vsub.f32 1.0, %v1023
        %v1028 = vsub.f32 1.0, %v1024
        %v1029 = vsub.f32 1.0, %v1025
        %v1030 = vsub.f32 1.0, %v1026
        %v1031 = vmul.f32 %v1019, %v1027
        %v1032 = vmul.f32 %v1020, %v1028
        %v1033 = vmul.f32 %v1021, %v1029
        %v1034 = vmul.f32 %v1022, %v1030
        %s1035 = scalar_lea.vmem [#allocation7], 128
        %v1036 = vld [vmem:[%s1035] sm:$0xff]
        %v1037 = vld [vmem:[%s1035 + $0x8] sm:$0xff]
        %v1038 = vld [vmem:[%s1035 + $0x10] sm:$0xff]
        %v1039 = vld [vmem:[%s1035 + $0x18] sm:$0xff]
        %v1040 = vld [vmem:[%s1035 + $0x20] sm:$0xff]
        %v1041 = vld [vmem:[%s1035 + $0x28] sm:$0xff]
        %v1042 = vld [vmem:[%s1035 + $0x30] sm:$0xff]
        %v1043 = vld [vmem:[%s1035 + $0x38] sm:$0xff]
        %v1044 = vld [vmem:[%s1035 + $0x40] sm:$0xff]
        %v1045 = vld [vmem:[%s1035 + $0x48] sm:$0xff]
        %v1046 = vld [vmem:[%s1035 + $0x50] sm:$0xff]
        %v1047 = vld [vmem:[%s1035 + $0x58] sm:$0xff]
        %v1048 = vld [vmem:[%s1035 + $0x60] sm:$0xff]
        %v1049 = vld [vmem:[%s1035 + $0x68] sm:$0xff]
        %v1050 = vld [vmem:[%s1035 + $0x70] sm:$0xff]
        %v1051 = vld [vmem:[%s1035 + $0x78] sm:$0xff]
        %1052 = vmatprep.subr.mxu0 0.0
        %1053 = vmatpush1.msra.mxu0 %v1051
        %1054 = vmatprep.subr.mxu0 0.0
        %1055 = vmatpush1.msra.mxu0 %v1050
        %1056 = vmatprep.subr.mxu0 0.0
        %1057 = vmatpush1.msra.mxu0 %v1049
        %1058 = vmatprep.subr.mxu0 0.0
        %1059 = vmatpush1.msra.mxu0 %v1048
        %1060 = vmatprep.subr.mxu0 0.0
        %1061 = vmatpush1.msra.mxu0 %v1047
        %1062 = vmatprep.subr.mxu0 0.0
        %1063 = vmatpush1.msra.mxu0 %v1046
        %1064 = vmatprep.subr.mxu0 0.0
        %1065 = vmatpush1.msra.mxu0 %v1045
        %1066 = vmatprep.subr.mxu0 0.0
        %1067 = vmatpush1.msra.mxu0 %v1044
        %1068 = vmatprep.subr.mxu0 0.0
        %1069 = vmatpush1.msra.mxu0 %v1043
        %1070 = vmatprep.subr.mxu0 0.0
        %1071 = vmatpush1.msra.mxu0 %v1042
        %1072 = vmatprep.subr.mxu0 0.0
        %1073 = vmatpush1.msra.mxu0 %v1041
        %1074 = vmatprep.subr.mxu0 0.0
        %1075 = vmatpush1.msra.mxu0 %v1040
        %1076 = vmatprep.subr.mxu0 0.0
        %1077 = vmatpush1.msra.mxu0 %v1039
        %1078 = vmatprep.subr.mxu0 0.0
        %1079 = vmatpush1.msra.mxu0 %v1038
        %1080 = vmatprep.subr.mxu0 0.0
        %1081 = vmatpush1.msra.mxu0 %v1037
        %1082 = vmatprep.subr.mxu0 0.0
        %1083 = vmatpush1.msra.mxu0 %v1036
        %1084 = vmatprep.subr.mxu0 0.0
        %1085 = vmatpush2.msra.mxu0 0.0
        %1086 = vmatprep.subr.mxu0 0.0
        %1087 = vmatpush2.msra.mxu0 0.0
        %1088 = vmatprep.subr.mxu0 0.0
        %1089 = vmatpush2.msra.mxu0 0.0
        %1090 = vmatprep.subr.mxu0 0.0
        %1091 = vmatpush2.msra.mxu0 0.0
        %1092 = vmatprep.subr.mxu0 0.0
        %1093 = vmatpush2.msra.mxu0 0.0
        %1094 = vmatprep.subr.mxu0 0.0
        %1095 = vmatpush2.msra.mxu0 0.0
        %1096 = vmatprep.subr.mxu0 0.0
        %1097 = vmatpush2.msra.mxu0 0.0
        %1098 = vmatprep.subr.mxu0 0.0
        %1099 = vmatpush2.msra.mxu0 0.0
        %1100 = vmatprep.subr.mxu0 0.0
        %1101 = vmatpush2.msra.mxu0 0.0
        %1102 = vmatprep.subr.mxu0 0.0
        %1103 = vmatpush2.msra.mxu0 0.0
        %1104 = vmatprep.subr.mxu0 0.0
        %1105 = vmatpush2.msra.mxu0 0.0
        %1106 = vmatprep.subr.mxu0 0.0
        %1107 = vmatpush2.msra.mxu0 0.0
        %1108 = vmatprep.subr.mxu0 0.0
        %1109 = vmatpush2.msra.mxu0 0.0
        %1110 = vmatprep.subr.mxu0 0.0
        %1111 = vmatpush2.msra.mxu0 0.0
        %1112 = vmatprep.subr.mxu0 0.0
        %1113 = vmatpush2.msra.mxu0 0.0
        %1114 = vmatprep.subr.mxu0 0.0
        %1115 = vmatpush2.msra.mxu0 0.0
        %1116 = vmatprep.mubr.f32.mxu0 0.0
        %1117 = vmatmul.mubr.f32.gmra.mxu0 %v1031
        %v1118 = vpop.f32.mrf.mxu0
        %v1119 = vadd.f32 0.0, %v1118
        %v1120 = vpop.f32.mrf.mxu0
        %1121 = vmatprep.mubr.f32.mxu0 0.0
        %1122 = vmatmul.mubr.f32.gmra.mxu0 %v1032
        %v1123 = vpop.f32.mrf.mxu0
        %v1124 = vadd.f32 0.0, %v1123
        %v1125 = vpop.f32.mrf.mxu0
        %1126 = vmatprep.mubr.f32.mxu0 0.0
        %1127 = vmatmul.mubr.f32.gmra.mxu0 %v1033
        %v1128 = vpop.f32.mrf.mxu0
        %v1129 = vadd.f32 0.0, %v1128
        %v1130 = vpop.f32.mrf.mxu0
        %1131 = vmatprep.mubr.f32.mxu0 0.0
        %1132 = vmatmul.mubr.f32.gmra.mxu0 %v1034
        %v1133 = vpop.f32.mrf.mxu0
        %v1134 = vadd.f32 0.0, %v1133
        %v1135 = vpop.f32.mrf.mxu0
        %1136 = vdwg.mxu0
        %v1137 = vmul.f32 %v830, %v830
        %v1138 = vmul.f32 %v831, %v831
        %v1139 = vmul.f32 %v832, %v832
        %v1140 = vmul.f32 %v833, %v833
        %v1141 = vsub.f32 1.0, %v1137
        %v1142 = vsub.f32 1.0, %v1138
        %v1143 = vsub.f32 1.0, %v1139
        %v1144 = vsub.f32 1.0, %v1140
        %v1145 = vmul.f32 %v1119, %v1141
        %v1146 = vmul.f32 %v1124, %v1142
        %v1147 = vmul.f32 %v1129, %v1143
        %v1148 = vmul.f32 %v1134, %v1144
        %v1149 = vld [vmem:[#allocation7] sm:$0xff]
        %v1150 = vld [vmem:[#allocation7 + $0x8] sm:$0xff]
        %v1151 = vld [vmem:[#allocation7 + $0x10] sm:$0xff]
        %v1152 = vld [vmem:[#allocation7 + $0x18] sm:$0xff]
        %v1153 = vld [vmem:[#allocation7 + $0x20] sm:$0xff]
        %v1154 = vld [vmem:[#allocation7 + $0x28] sm:$0xff]
        %v1155 = vld [vmem:[#allocation7 + $0x30] sm:$0xff]
        %v1156 = vld [vmem:[#allocation7 + $0x38] sm:$0xff]
        %v1157 = vld [vmem:[#allocation7 + $0x40] sm:$0xff]
        %v1158 = vld [vmem:[#allocation7 + $0x48] sm:$0xff]
        %v1159 = vld [vmem:[#allocation7 + $0x50] sm:$0xff]
        %v1160 = vld [vmem:[#allocation7 + $0x58] sm:$0xff]
        %v1161 = vld [vmem:[#allocation7 + $0x60] sm:$0xff]
        %v1162 = vld [vmem:[#allocation7 + $0x68] sm:$0xff]
        %v1163 = vld [vmem:[#allocation7 + $0x70] sm:$0xff]
        %v1164 = vld [vmem:[#allocation7 + $0x78] sm:$0xff]
        %1165 = vmatprep.subr.mxu0 0.0
        %1166 = vmatpush1.msra.mxu0 %v1164
        %1167 = vmatprep.subr.mxu0 0.0
        %1168 = vmatpush1.msra.mxu0 %v1163
        %1169 = vmatprep.subr.mxu0 0.0
        %1170 = vmatpush1.msra.mxu0 %v1162
        %1171 = vmatprep.subr.mxu0 0.0
        %1172 = vmatpush1.msra.mxu0 %v1161
        %1173 = vmatprep.subr.mxu0 0.0
        %1174 = vmatpush1.msra.mxu0 %v1160
        %1175 = vmatprep.subr.mxu0 0.0
        %1176 = vmatpush1.msra.mxu0 %v1159
        %1177 = vmatprep.subr.mxu0 0.0
        %1178 = vmatpush1.msra.mxu0 %v1158
        %1179 = vmatprep.subr.mxu0 0.0
        %1180 = vmatpush1.msra.mxu0 %v1157
        %1181 = vmatprep.subr.mxu0 0.0
        %1182 = vmatpush1.msra.mxu0 %v1156
        %1183 = vmatprep.subr.mxu0 0.0
        %1184 = vmatpush1.msra.mxu0 %v1155
        %1185 = vmatprep.subr.mxu0 0.0
        %1186 = vmatpush1.msra.mxu0 %v1154
        %1187 = vmatprep.subr.mxu0 0.0
        %1188 = vmatpush1.msra.mxu0 %v1153
        %1189 = vmatprep.subr.mxu0 0.0
        %1190 = vmatpush1.msra.mxu0 %v1152
        %1191 = vmatprep.subr.mxu0 0.0
        %1192 = vmatpush1.msra.mxu0 %v1151
        %1193 = vmatprep.subr.mxu0 0.0
        %1194 = vmatpush1.msra.mxu0 %v1150
        %1195 = vmatprep.subr.mxu0 0.0
        %1196 = vmatpush1.msra.mxu0 %v1149
        %1197 = vmatprep.subr.mxu0 0.0
        %1198 = vmatpush2.msra.mxu0 0.0
        %1199 = vmatprep.subr.mxu0 0.0
        %1200 = vmatpush2.msra.mxu0 0.0
        %1201 = vmatprep.subr.mxu0 0.0
        %1202 = vmatpush2.msra.mxu0 0.0
        %1203 = vmatprep.subr.mxu0 0.0
        %1204 = vmatpush2.msra.mxu0 0.0
        %1205 = vmatprep.subr.mxu0 0.0
        %1206 = vmatpush2.msra.mxu0 0.0
        %1207 = vmatprep.subr.mxu0 0.0
        %1208 = vmatpush2.msra.mxu0 0.0
        %1209 = vmatprep.subr.mxu0 0.0
        %1210 = vmatpush2.msra.mxu0 0.0
        %1211 = vmatprep.subr.mxu0 0.0
        %1212 = vmatpush2.msra.mxu0 0.0
        %1213 = vmatprep.subr.mxu0 0.0
        %1214 = vmatpush2.msra.mxu0 0.0
        %1215 = vmatprep.subr.mxu0 0.0
        %1216 = vmatpush2.msra.mxu0 0.0
        %1217 = vmatprep.subr.mxu0 0.0
        %1218 = vmatpush2.msra.mxu0 0.0
        %1219 = vmatprep.subr.mxu0 0.0
        %1220 = vmatpush2.msra.mxu0 0.0
        %1221 = vmatprep.subr.mxu0 0.0
        %1222 = vmatpush2.msra.mxu0 0.0
        %1223 = vmatprep.subr.mxu0 0.0
        %1224 = vmatpush2.msra.mxu0 0.0
        %1225 = vmatprep.subr.mxu0 0.0
        %1226 = vmatpush2.msra.mxu0 0.0
        %1227 = vmatprep.subr.mxu0 0.0
        %1228 = vmatpush2.msra.mxu0 0.0
        %1229 = vmatprep.mubr.f32.mxu0 0.0
        %1230 = vmatmul.mubr.f32.gmra.mxu0 %v1145
        %v1231 = vpop.f32.mrf.mxu0
        %v1232 = vadd.f32 0.0, %v1231
        %v1233 = vpop.f32.mrf.mxu0
        %1234 = vmatprep.mubr.f32.mxu0 0.0
        %1235 = vmatmul.mubr.f32.gmra.mxu0 %v1146
        %v1236 = vpop.f32.mrf.mxu0
        %v1237 = vadd.f32 0.0, %v1236
        %v1238 = vpop.f32.mrf.mxu0
        %1239 = vmatprep.mubr.f32.mxu0 0.0
        %1240 = vmatmul.mubr.f32.gmra.mxu0 %v1147
        %v1241 = vpop.f32.mrf.mxu0
        %v1242 = vadd.f32 0.0, %v1241
        %v1243 = vpop.f32.mrf.mxu0
        %1244 = vmatprep.mubr.f32.mxu0 0.0
        %1245 = vmatmul.mubr.f32.gmra.mxu0 %v1148
        %v1246 = vpop.f32.mrf.mxu0
        %v1247 = vadd.f32 0.0, %v1246
        %v1248 = vpop.f32.mrf.mxu0
        %1249 = vdwg.mxu0
        %v1250 = vmul.f32 %v704, %v704
        %v1251 = vmul.f32 %v705, %v705
        %v1252 = vmul.f32 %v706, %v706
        %v1253 = vmul.f32 %v707, %v707
        %v1254 = vsub.f32 1.0, %v1250
        %v1255 = vsub.f32 1.0, %v1251
        %v1256 = vsub.f32 1.0, %v1252
        %v1257 = vsub.f32 1.0, %v1253
        %v1258 = vmul.f32 %v1232, %v1254
        %v1259 = vmul.f32 %v1237, %v1255
        %v1260 = vmul.f32 %v1242, %v1256
        %v1261 = vmul.f32 %v1247, %v1257
        %v1262 = vld [vmem:[#allocation3] sm:$0xff]
        %v1263 = vld [vmem:[#allocation3 + $0x8] sm:$0xff]
        %v1264 = vld [vmem:[#allocation3 + $0x10] sm:$0xff]
        %v1265 = vld [vmem:[#allocation3 + $0x18] sm:$0xff]
        %v1266 = vld [vmem:[#allocation3 + $0x20] sm:$0xff]
        %v1267 = vld [vmem:[#allocation3 + $0x28] sm:$0xff]
        %v1268 = vld [vmem:[#allocation3 + $0x30] sm:$0xff]
        %v1269 = vld [vmem:[#allocation3 + $0x38] sm:$0xff]
        %v1270 = vld [vmem:[#allocation3 + $0x40] sm:$0xff]
        %v1271 = vld [vmem:[#allocation3 + $0x48] sm:$0xff]
        %v1272 = vld [vmem:[#allocation3 + $0x50] sm:$0xff]
        %v1273 = vld [vmem:[#allocation3 + $0x58] sm:$0xff]
        %v1274 = vld [vmem:[#allocation3 + $0x60] sm:$0xff]
        %v1275 = vld [vmem:[#allocation3 + $0x68] sm:$0xff]
        %v1276 = vld [vmem:[#allocation3 + $0x70] sm:$0xff]
        %v1277 = vld [vmem:[#allocation3 + $0x78] sm:$0xff]
        %s1278 = scalar_lea.vmem %s476, 32 [#allocation2]
        %v1279 = vld [vmem:[%s1278] sm:$0xff]
        %v1280 = vld [vmem:[%s1278 + $0x8] sm:$0xff]
        %v1281 = vld [vmem:[%s1278 + $0x10] sm:$0xff]
        %v1282 = vld [vmem:[%s1278 + $0x18] sm:$0xff]
        %s1283 = scalar_lea.vmem [#allocation10], 1
        %v1284 = vld [vmem:[%s1283] sm:$0x1]
        %s1285 = scalar_lea.vmem %s2, 64
        %v1286 = vld [vmem:[%s1285] sm:$0xf]
        %v1287 = vld [vmem:[%s1285 + $0x4] sm:$0xf]
        %v1288 = vld [vmem:[%s1285 + $0x8] sm:$0xf]
        %v1289 = vld [vmem:[%s1285 + $0xc] sm:$0xf]
        %v1290 = vld [vmem:[%s1285 + $0x10] sm:$0xf]
        %v1291 = vld [vmem:[%s1285 + $0x14] sm:$0xf]
        %v1292 = vld [vmem:[%s1285 + $0x18] sm:$0xf]
        %v1293 = vld [vmem:[%s1285 + $0x1c] sm:$0xf]
        %v1294 = vld [vmem:[%s1285 + $0x20] sm:$0xf]
        %v1295 = vld [vmem:[%s1285 + $0x24] sm:$0xf]
        %v1296 = vld [vmem:[%s1285 + $0x28] sm:$0xf]
        %v1297 = vld [vmem:[%s1285 + $0x2c] sm:$0xf]
        %v1298 = vld [vmem:[%s1285 + $0x30] sm:$0xf]
        %v1299 = vld [vmem:[%s1285 + $0x34] sm:$0xf]
        %v1300 = vld [vmem:[%s1285 + $0x38] sm:$0xf]
        %v1301 = vld [vmem:[%s1285 + $0x3c] sm:$0xf]
        %s1302 = scalar_lea.vmem [#allocation5], 1
        %v1303 = vld [vmem:[%s1302] sm:$0x1]
        %v1305 = vlaneseq
        %v1306 = vshrl.u32 %v1305, 7
        %v1307 = vsub.s32 0, %v1306
        %v1308 = vrot.slane %v1303, %v1307
        %v1326 = vunpack.c.l.b16 %v1286
        %v1327 = vunpack.c.l.b16 %v1287
        %v1328 = vunpack.c.l.b16 %v1288
        %v1329 = vunpack.c.l.b16 %v1289
        %v1330 = vunpack.c.l.b16 %v1290
        %v1331 = vunpack.c.l.b16 %v1291
        %v1332 = vunpack.c.l.b16 %v1292
        %v1333 = vunpack.c.l.b16 %v1293
        %v1334 = vunpack.c.l.b16 %v1294
        %v1335 = vunpack.c.l.b16 %v1295
        %v1336 = vunpack.c.l.b16 %v1296
        %v1337 = vunpack.c.l.b16 %v1297
        %v1338 = vunpack.c.l.b16 %v1298
        %v1339 = vunpack.c.l.b16 %v1299
        %v1340 = vunpack.c.l.b16 %v1300
        %v1341 = vunpack.c.l.b16 %v1301
        %v1342 = vpack.c.b16 %v1327, %v1326
        %v1343 = vpack.c.b16 %v1329, %v1328
        %v1344 = vpack.c.b16 %v1331, %v1330
        %v1345 = vpack.c.b16 %v1333, %v1332
        %v1346 = vpack.c.b16 %v1335, %v1334
        %v1347 = vpack.c.b16 %v1337, %v1336
        %v1348 = vpack.c.b16 %v1339, %v1338
        %v1349 = vpack.c.b16 %v1341, %v1340
        %1358 = vmatprep.subr.bf16.mxu0 0
        %1359 = vmatpush1.bf16.msra.mxu0 %v1349
        %1360 = vmatprep.subr.bf16.mxu0 0
        %1361 = vmatpush1.bf16.msra.mxu0 %v1348
        %1362 = vmatprep.subr.bf16.mxu0 0
        %1363 = vmatpush1.bf16.msra.mxu0 %v1347
        %1364 = vmatprep.subr.bf16.mxu0 0
        %1365 = vmatpush1.bf16.msra.mxu0 %v1346
        %1366 = vmatprep.subr.bf16.mxu0 0
        %1367 = vmatpush1.bf16.msra.mxu0 %v1345
        %1368 = vmatprep.subr.bf16.mxu0 0
        %1369 = vmatpush1.bf16.msra.mxu0 %v1344
        %1370 = vmatprep.subr.bf16.mxu0 0
        %1371 = vmatpush1.bf16.msra.mxu0 %v1343
        %1372 = vmatprep.subr.bf16.mxu0 0
        %1373 = vmatpush1.bf16.msra.mxu0 %v1342
        %1374 = vmatprep.subr.bf16.mxu0 0
        %1375 = vmatpush2.bf16.msra.mxu0 0
        %1376 = vmatprep.subr.bf16.mxu0 0
        %1377 = vmatpush2.bf16.msra.mxu0 0
        %1378 = vmatprep.subr.bf16.mxu0 0
        %1379 = vmatpush2.bf16.msra.mxu0 0
        %1380 = vmatprep.subr.bf16.mxu0 0
        %1381 = vmatpush2.bf16.msra.mxu0 0
        %1382 = vmatprep.subr.bf16.mxu0 0
        %1383 = vmatpush2.bf16.msra.mxu0 0
        %1384 = vmatprep.subr.bf16.mxu0 0
        %1385 = vmatpush2.bf16.msra.mxu0 0
        %1386 = vmatprep.subr.bf16.mxu0 0
        %1387 = vmatpush2.bf16.msra.mxu0 0
        %1388 = vmatprep.subr.bf16.mxu0 0
        %1389 = vmatpush2.bf16.msra.mxu0 0
        %1390 = vmatprep.mubr.bf16.mxu0 0
        %1391 = vmatmul.mubr.bf16.gmra.mxu0 %v603
        %v1392 = vpop.f32.mrf.mxu0
        %v1393 = vadd.f32 %v1308, %v1392
        %v1394 = vpop.f32.mrf.mxu0
        %v1395 = vpop.f32.mrf.mxu0
        %v1396 = vadd.f32 %v1308, %v1395
        %v1397 = vpop.f32.mrf.mxu0
        %1398 = vmatprep.mubr.bf16.mxu0 0
        %1399 = vmatmul.mubr.bf16.gmra.mxu0 %v604
        %v1400 = vpop.f32.mrf.mxu0
        %v1401 = vadd.f32 %v1308, %v1400
        %v1402 = vpop.f32.mrf.mxu0
        %v1403 = vpop.f32.mrf.mxu0
        %v1404 = vadd.f32 %v1308, %v1403
        %v1405 = vpop.f32.mrf.mxu0
        %1406 = vdwg.mxu0
        %v1407 = vtanh.pop %v1393
        %v1408 = vtanh.pop %v1396
        %v1409 = vtanh.pop %v1401
        %v1410 = vtanh.pop %v1404
        %v1411 = vpack.c.bf16 %v1408, %v1407
        %v1412 = vpack.c.bf16 %v1410, %v1409
        %s1413 = scalar_lea.vmem %s5, 128
        %v1414 = vld [vmem:[%s1413] sm:$0xf]
        %v1415 = vld [vmem:[%s1413 + $0x4] sm:$0xf]
        %v1416 = vld [vmem:[%s1413 + $0x8] sm:$0xf]
        %v1417 = vld [vmem:[%s1413 + $0xc] sm:$0xf]
        %v1418 = vld [vmem:[%s1413 + $0x10] sm:$0xf]
        %v1419 = vld [vmem:[%s1413 + $0x14] sm:$0xf]
        %v1420 = vld [vmem:[%s1413 + $0x18] sm:$0xf]
        %v1421 = vld [vmem:[%s1413 + $0x1c] sm:$0xf]
        %v1422 = vld [vmem:[%s1413 + $0x20] sm:$0xf]
        %v1423 = vld [vmem:[%s1413 + $0x24] sm:$0xf]
        %v1424 = vld [vmem:[%s1413 + $0x28] sm:$0xf]
        %v1425 = vld [vmem:[%s1413 + $0x2c] sm:$0xf]
        %v1426 = vld [vmem:[%s1413 + $0x30] sm:$0xf]
        %v1427 = vld [vmem:[%s1413 + $0x34] sm:$0xf]
        %v1428 = vld [vmem:[%s1413 + $0x38] sm:$0xf]
        %v1429 = vld [vmem:[%s1413 + $0x3c] sm:$0xf]
        %s1430 = scalar_lea.vmem [#allocation8], 2
        %v1431 = vld [vmem:[%s1430] sm:$0x1]
        %v1433 = vlaneseq
        %v1434 = vshrl.u32 %v1433, 7
        %v1435 = vsub.s32 0, %v1434
        %v1436 = vrot.slane %v1431, %v1435
        %v1454 = vunpack.c.l.b16 %v1414
        %v1455 = vunpack.c.l.b16 %v1415
        %v1456 = vunpack.c.l.b16 %v1416
        %v1457 = vunpack.c.l.b16 %v1417
        %v1458 = vunpack.c.l.b16 %v1418
        %v1459 = vunpack.c.l.b16 %v1419
        %v1460 = vunpack.c.l.b16 %v1420
        %v1461 = vunpack.c.l.b16 %v1421
        %v1462 = vunpack.c.l.b16 %v1422
        %v1463 = vunpack.c.l.b16 %v1423
        %v1464 = vunpack.c.l.b16 %v1424
        %v1465 = vunpack.c.l.b16 %v1425
        %v1466 = vunpack.c.l.b16 %v1426
        %v1467 = vunpack.c.l.b16 %v1427
        %v1468 = vunpack.c.l.b16 %v1428
        %v1469 = vunpack.c.l.b16 %v1429
        %v1470 = vpack.c.b16 %v1455, %v1454
        %v1471 = vpack.c.b16 %v1457, %v1456
        %v1472 = vpack.c.b16 %v1459, %v1458
        %v1473 = vpack.c.b16 %v1461, %v1460
        %v1474 = vpack.c.b16 %v1463, %v1462
        %v1475 = vpack.c.b16 %v1465, %v1464
        %v1476 = vpack.c.b16 %v1467, %v1466
        %v1477 = vpack.c.b16 %v1469, %v1468
        %1486 = vmatprep.subr.bf16.mxu0 0
        %1487 = vmatpush1.bf16.msra.mxu0 %v1477
        %1488 = vmatprep.subr.bf16.mxu0 0
        %1489 = vmatpush1.bf16.msra.mxu0 %v1476
        %1490 = vmatprep.subr.bf16.mxu0 0
        %1491 = vmatpush1.bf16.msra.mxu0 %v1475
        %1492 = vmatprep.subr.bf16.mxu0 0
        %1493 = vmatpush1.bf16.msra.mxu0 %v1474
        %1494 = vmatprep.subr.bf16.mxu0 0
        %1495 = vmatpush1.bf16.msra.mxu0 %v1473
        %1496 = vmatprep.subr.bf16.mxu0 0
        %1497 = vmatpush1.bf16.msra.mxu0 %v1472
        %1498 = vmatprep.subr.bf16.mxu0 0
        %1499 = vmatpush1.bf16.msra.mxu0 %v1471
        %1500 = vmatprep.subr.bf16.mxu0 0
        %1501 = vmatpush1.bf16.msra.mxu0 %v1470
        %1502 = vmatprep.subr.bf16.mxu0 0
        %1503 = vmatpush2.bf16.msra.mxu0 0
        %1504 = vmatprep.subr.bf16.mxu0 0
        %1505 = vmatpush2.bf16.msra.mxu0 0
        %1506 = vmatprep.subr.bf16.mxu0 0
        %1507 = vmatpush2.bf16.msra.mxu0 0
        %1508 = vmatprep.subr.bf16.mxu0 0
        %1509 = vmatpush2.bf16.msra.mxu0 0
        %1510 = vmatprep.subr.bf16.mxu0 0
        %1511 = vmatpush2.bf16.msra.mxu0 0
        %1512 = vmatprep.subr.bf16.mxu0 0
        %1513 = vmatpush2.bf16.msra.mxu0 0
        %1514 = vmatprep.subr.bf16.mxu0 0
        %1515 = vmatpush2.bf16.msra.mxu0 0
        %1516 = vmatprep.subr.bf16.mxu0 0
        %1517 = vmatpush2.bf16.msra.mxu0 0
        %1518 = vmatprep.mubr.bf16.mxu0 0
        %1519 = vmatmul.mubr.bf16.gmra.mxu0 %v1411
        %v1520 = vpop.f32.mrf.mxu0
        %v1521 = vadd.f32 %v1436, %v1520
        %v1522 = vpop.f32.mrf.mxu0
        %v1523 = vpop.f32.mrf.mxu0
        %v1524 = vadd.f32 %v1436, %v1523
        %v1525 = vpop.f32.mrf.mxu0
        %1526 = vmatprep.mubr.bf16.mxu0 0
        %1527 = vmatmul.mubr.bf16.gmra.mxu0 %v1412
        %v1528 = vpop.f32.mrf.mxu0
        %v1529 = vadd.f32 %v1436, %v1528
        %v1530 = vpop.f32.mrf.mxu0
        %v1531 = vpop.f32.mrf.mxu0
        %v1532 = vadd.f32 %v1436, %v1531
        %v1533 = vpop.f32.mrf.mxu0
        %1534 = vdwg.mxu0
        %v1535 = vtanh.pop %v1521
        %v1536 = vtanh.pop %v1524
        %v1537 = vtanh.pop %v1529
        %v1538 = vtanh.pop %v1532
        %v1539 = vpack.c.bf16 %v1536, %v1535
        %v1540 = vpack.c.bf16 %v1538, %v1537
        %s1541 = scalar_lea.vmem %s5, 192
        %v1542 = vld [vmem:[%s1541] sm:$0xf]
        %v1543 = vld [vmem:[%s1541 + $0x4] sm:$0xf]
        %v1544 = vld [vmem:[%s1541 + $0x8] sm:$0xf]
        %v1545 = vld [vmem:[%s1541 + $0xc] sm:$0xf]
        %v1546 = vld [vmem:[%s1541 + $0x10] sm:$0xf]
        %v1547 = vld [vmem:[%s1541 + $0x14] sm:$0xf]
        %v1548 = vld [vmem:[%s1541 + $0x18] sm:$0xf]
        %v1549 = vld [vmem:[%s1541 + $0x1c] sm:$0xf]
        %v1550 = vld [vmem:[%s1541 + $0x20] sm:$0xf]
        %v1551 = vld [vmem:[%s1541 + $0x24] sm:$0xf]
        %v1552 = vld [vmem:[%s1541 + $0x28] sm:$0xf]
        %v1553 = vld [vmem:[%s1541 + $0x2c] sm:$0xf]
        %v1554 = vld [vmem:[%s1541 + $0x30] sm:$0xf]
        %v1555 = vld [vmem:[%s1541 + $0x34] sm:$0xf]
        %v1556 = vld [vmem:[%s1541 + $0x38] sm:$0xf]
        %v1557 = vld [vmem:[%s1541 + $0x3c] sm:$0xf]
        %s1558 = scalar_lea.vmem [#allocation8], 3
        %v1559 = vld [vmem:[%s1558] sm:$0x1]
        %v1561 = vlaneseq
        %v1562 = vshrl.u32 %v1561, 7
        %v1563 = vsub.s32 0, %v1562
        %v1564 = vrot.slane %v1559, %v1563
        %v1582 = vunpack.c.l.b16 %v1542
        %v1583 = vunpack.c.l.b16 %v1543
        %v1584 = vunpack.c.l.b16 %v1544
        %v1585 = vunpack.c.l.b16 %v1545
        %v1586 = vunpack.c.l.b16 %v1546
        %v1587 = vunpack.c.l.b16 %v1547
        %v1588 = vunpack.c.l.b16 %v1548
        %v1589 = vunpack.c.l.b16 %v1549
        %v1590 = vunpack.c.l.b16 %v1550
        %v1591 = vunpack.c.l.b16 %v1551
        %v1592 = vunpack.c.l.b16 %v1552
        %v1593 = vunpack.c.l.b16 %v1553
        %v1594 = vunpack.c.l.b16 %v1554
        %v1595 = vunpack.c.l.b16 %v1555
        %v1596 = vunpack.c.l.b16 %v1556
        %v1597 = vunpack.c.l.b16 %v1557
        %v1598 = vpack.c.b16 %v1583, %v1582
        %v1599 = vpack.c.b16 %v1585, %v1584
        %v1600 = vpack.c.b16 %v1587, %v1586
        %v1601 = vpack.c.b16 %v1589, %v1588
        %v1602 = vpack.c.b16 %v1591, %v1590
        %v1603 = vpack.c.b16 %v1593, %v1592
        %v1604 = vpack.c.b16 %v1595, %v1594
        %v1605 = vpack.c.b16 %v1597, %v1596
        %1614 = vmatprep.subr.bf16.mxu0 0
        %1615 = vmatpush1.bf16.msra.mxu0 %v1605
        %1616 = vmatprep.subr.bf16.mxu0 0
        %1617 = vmatpush1.bf16.msra.mxu0 %v1604
        %1618 = vmatprep.subr.bf16.mxu0 0
        %1619 = vmatpush1.bf16.msra.mxu0 %v1603
        %1620 = vmatprep.subr.bf16.mxu0 0
        %1621 = vmatpush1.bf16.msra.mxu0 %v1602
        %1622 = vmatprep.subr.bf16.mxu0 0
        %1623 = vmatpush1.bf16.msra.mxu0 %v1601
        %1624 = vmatprep.subr.bf16.mxu0 0
        %1625 = vmatpush1.bf16.msra.mxu0 %v1600
        %1626 = vmatprep.subr.bf16.mxu0 0
        %1627 = vmatpush1.bf16.msra.mxu0 %v1599
        %1628 = vmatprep.subr.bf16.mxu0 0
        %1629 = vmatpush1.bf16.msra.mxu0 %v1598
        %1630 = vmatprep.subr.bf16.mxu0 0
        %1631 = vmatpush2.bf16.msra.mxu0 0
        %1632 = vmatprep.subr.bf16.mxu0 0
        %1633 = vmatpush2.bf16.msra.mxu0 0
        %1634 = vmatprep.subr.bf16.mxu0 0
        %1635 = vmatpush2.bf16.msra.mxu0 0
        %1636 = vmatprep.subr.bf16.mxu0 0
        %1637 = vmatpush2.bf16.msra.mxu0 0
        %1638 = vmatprep.subr.bf16.mxu0 0
        %1639 = vmatpush2.bf16.msra.mxu0 0
        %1640 = vmatprep.subr.bf16.mxu0 0
        %1641 = vmatpush2.bf16.msra.mxu0 0
        %1642 = vmatprep.subr.bf16.mxu0 0
        %1643 = vmatpush2.bf16.msra.mxu0 0
        %1644 = vmatprep.subr.bf16.mxu0 0
        %1645 = vmatpush2.bf16.msra.mxu0 0
        %1646 = vmatprep.mubr.bf16.mxu0 0
        %1647 = vmatmul.mubr.bf16.gmra.mxu0 %v1539
        %v1648 = vpop.f32.mrf.mxu0
        %v1649 = vadd.f32 %v1564, %v1648
        %v1650 = vpop.f32.mrf.mxu0
        %v1651 = vpop.f32.mrf.mxu0
        %v1652 = vadd.f32 %v1564, %v1651
        %v1653 = vpop.f32.mrf.mxu0
        %1654 = vmatprep.mubr.bf16.mxu0 0
        %1655 = vmatmul.mubr.bf16.gmra.mxu0 %v1540
        %v1656 = vpop.f32.mrf.mxu0
        %v1657 = vadd.f32 %v1564, %v1656
        %v1658 = vpop.f32.mrf.mxu0
        %v1659 = vpop.f32.mrf.mxu0
        %v1660 = vadd.f32 %v1564, %v1659
        %v1661 = vpop.f32.mrf.mxu0
        %1662 = vdwg.mxu0
        %v1663 = vtanh.pop %v1649
        %v1664 = vtanh.pop %v1652
        %v1665 = vtanh.pop %v1657
        %v1666 = vtanh.pop %v1660
        %v1668 = vlaneseq
        %v1669 = vshrl.u32 %v1668, 7
        %v1670 = vsub.s32 0, %v1669
        %v1671 = vrot.slane %v1284, %v1670
        %v1673 = vmul.f32 %v1663, %v1671
        %v1674 = vmul.f32 %v1664, %v1671
        %v1675 = vmul.f32 %v1665, %v1671
        %v1676 = vmul.f32 %v1666, %v1671
        %1677 = vadd.xlane.f32.xlu0 %v1673
        %v1678 = vpop.xlane.xlu0 %1677
        %1679 = vadd.xlane.f32.xlu0 %v1674
        %v1680 = vpop.xlane.xlu0 %1679
        %1681 = vadd.xlane.f32.xlu0 %v1675
        %v1682 = vpop.xlane.xlu0 %1681
        %1683 = vadd.xlane.f32.xlu0 %v1676
        %v1684 = vpop.xlane.xlu0 %1683
        %s1685 = scalar_lea.vmem %s9, 1
        %v1686 = vld [vmem:[%s1685] sm:$0x1]
        %v1688 = vlaneseq
        %v1689 = vshrl.u32 %v1688, 7
        %v1690 = vsub.s32 0, %v1689
        %v1691 = vrot.slane %v1686, %v1690
        %v1693 = vadd.f32 %v1678, %v1691
        %v1694 = vadd.f32 %v1680, %v1691
        %v1695 = vadd.f32 %v1682, %v1691
        %v1696 = vadd.f32 %v1684, %v1691
        %v1697 = vmul.f32 %v1279, %v1693
        %v1698 = vmul.f32 %v1280, %v1694
        %v1699 = vmul.f32 %v1281, %v1695
        %v1700 = vmul.f32 %v1282, %v1696
        %v1701 = vadd.f32 %v995, %v1697
        %v1702 = vadd.f32 %v996, %v1698
        %v1703 = vadd.f32 %v997, %v1699
        %v1704 = vadd.f32 %v998, %v1700
        %1706 = vset.pattern.permute.xlu0 0
        %1707 = vperm.xlu0 %1706, %v1279
        %v1708 = vpop.permute.xlu0 %1707
        %1711 = vset.pattern.permute.xlu0 0
        %1712 = vperm.xlu0 %1711, %v1280
        %v1713 = vpop.permute.xlu0 %1712
        %1716 = vset.pattern.permute.xlu0 0
        %1717 = vperm.xlu0 %1716, %v1281
        %v1718 = vpop.permute.xlu0 %1717
        %1721 = vset.pattern.permute.xlu0 0
        %1722 = vperm.xlu0 %1721, %v1282
        %v1723 = vpop.permute.xlu0 %1722
        %v1725 = vmul.f32 %v1708, %v1671
        %v1726 = vmul.f32 %v1713, %v1671
        %v1727 = vmul.f32 %v1718, %v1671
        %v1728 = vmul.f32 %v1723, %v1671
        %v1729 = vmul.f32 %v1663, %v1663
        %v1730 = vmul.f32 %v1664, %v1664
        %v1731 = vmul.f32 %v1665, %v1665
        %v1732 = vmul.f32 %v1666, %v1666
        %v1733 = vsub.f32 1.0, %v1729
        %v1734 = vsub.f32 1.0, %v1730
        %v1735 = vsub.f32 1.0, %v1731
        %v1736 = vsub.f32 1.0, %v1732
        %v1737 = vmul.f32 %v1725, %v1733
        %v1738 = vmul.f32 %v1726, %v1734
        %v1739 = vmul.f32 %v1727, %v1735
        %v1740 = vmul.f32 %v1728, %v1736
        %s1741 = scalar_lea.vmem [#allocation7], 384
        %v1742 = vld [vmem:[%s1741] sm:$0xff]
        %v1743 = vld [vmem:[%s1741 + $0x8] sm:$0xff]
        %v1744 = vld [vmem:[%s1741 + $0x10] sm:$0xff]
        %v1745 = vld [vmem:[%s1741 + $0x18] sm:$0xff]
        %v1746 = vld [vmem:[%s1741 + $0x20] sm:$0xff]
        %v1747 = vld [vmem:[%s1741 + $0x28] sm:$0xff]
        %v1748 = vld [vmem:[%s1741 + $0x30] sm:$0xff]
        %v1749 = vld [vmem:[%s1741 + $0x38] sm:$0xff]
        %v1750 = vld [vmem:[%s1741 + $0x40] sm:$0xff]
        %v1751 = vld [vmem:[%s1741 + $0x48] sm:$0xff]
        %v1752 = vld [vmem:[%s1741 + $0x50] sm:$0xff]
        %v1753 = vld [vmem:[%s1741 + $0x58] sm:$0xff]
        %v1754 = vld [vmem:[%s1741 + $0x60] sm:$0xff]
        %v1755 = vld [vmem:[%s1741 + $0x68] sm:$0xff]
        %v1756 = vld [vmem:[%s1741 + $0x70] sm:$0xff]
        %v1757 = vld [vmem:[%s1741 + $0x78] sm:$0xff]
        %1758 = vmatprep.subr.mxu0 0.0
        %1759 = vmatpush1.msra.mxu0 %v1757
        %1760 = vmatprep.subr.mxu0 0.0
        %1761 = vmatpush1.msra.mxu0 %v1756
        %1762 = vmatprep.subr.mxu0 0.0
        %1763 = vmatpush1.msra.mxu0 %v1755
        %1764 = vmatprep.subr.mxu0 0.0
        %1765 = vmatpush1.msra.mxu0 %v1754
        %1766 = vmatprep.subr.mxu0 0.0
        %1767 = vmatpush1.msra.mxu0 %v1753
        %1768 = vmatprep.subr.mxu0 0.0
        %1769 = vmatpush1.msra.mxu0 %v1752
        %1770 = vmatprep.subr.mxu0 0.0
        %1771 = vmatpush1.msra.mxu0 %v1751
        %1772 = vmatprep.subr.mxu0 0.0
        %1773 = vmatpush1.msra.mxu0 %v1750
        %1774 = vmatprep.subr.mxu0 0.0
        %1775 = vmatpush1.msra.mxu0 %v1749
        %1776 = vmatprep.subr.mxu0 0.0
        %1777 = vmatpush1.msra.mxu0 %v1748
        %1778 = vmatprep.subr.mxu0 0.0
        %1779 = vmatpush1.msra.mxu0 %v1747
        %1780 = vmatprep.subr.mxu0 0.0
        %1781 = vmatpush1.msra.mxu0 %v1746
        %1782 = vmatprep.subr.mxu0 0.0
        %1783 = vmatpush1.msra.mxu0 %v1745
        %1784 = vmatprep.subr.mxu0 0.0
        %1785 = vmatpush1.msra.mxu0 %v1744
        %1786 = vmatprep.subr.mxu0 0.0
        %1787 = vmatpush1.msra.mxu0 %v1743
        %1788 = vmatprep.subr.mxu0 0.0
        %1789 = vmatpush1.msra.mxu0 %v1742
        %1790 = vmatprep.subr.mxu0 0.0
        %1791 = vmatpush2.msra.mxu0 0.0
        %1792 = vmatprep.subr.mxu0 0.0
        %1793 = vmatpush2.msra.mxu0 0.0
        %1794 = vmatprep.subr.mxu0 0.0
        %1795 = vmatpush2.msra.mxu0 0.0
        %1796 = vmatprep.subr.mxu0 0.0
        %1797 = vmatpush2.msra.mxu0 0.0
        %1798 = vmatprep.subr.mxu0 0.0
        %1799 = vmatpush2.msra.mxu0 0.0
        %1800 = vmatprep.subr.mxu0 0.0
        %1801 = vmatpush2.msra.mxu0 0.0
        %1802 = vmatprep.subr.mxu0 0.0
        %1803 = vmatpush2.msra.mxu0 0.0
        %1804 = vmatprep.subr.mxu0 0.0
        %1805 = vmatpush2.msra.mxu0 0.0
        %1806 = vmatprep.subr.mxu0 0.0
        %1807 = vmatpush2.msra.mxu0 0.0
        %1808 = vmatprep.subr.mxu0 0.0
        %1809 = vmatpush2.msra.mxu0 0.0
        %1810 = vmatprep.subr.mxu0 0.0
        %1811 = vmatpush2.msra.mxu0 0.0
        %1812 = vmatprep.subr.mxu0 0.0
        %1813 = vmatpush2.msra.mxu0 0.0
        %1814 = vmatprep.subr.mxu0 0.0
        %1815 = vmatpush2.msra.mxu0 0.0
        %1816 = vmatprep.subr.mxu0 0.0
        %1817 = vmatpush2.msra.mxu0 0.0
        %1818 = vmatprep.subr.mxu0 0.0
        %1819 = vmatpush2.msra.mxu0 0.0
        %1820 = vmatprep.subr.mxu0 0.0
        %1821 = vmatpush2.msra.mxu0 0.0
        %1822 = vmatprep.mubr.f32.mxu0 0.0
        %1823 = vmatmul.mubr.f32.gmra.mxu0 %v1737
        %v1824 = vpop.f32.mrf.mxu0
        %v1825 = vadd.f32 0.0, %v1824
        %v1826 = vpop.f32.mrf.mxu0
        %1827 = vmatprep.mubr.f32.mxu0 0.0
        %1828 = vmatmul.mubr.f32.gmra.mxu0 %v1738
        %v1829 = vpop.f32.mrf.mxu0
        %v1830 = vadd.f32 0.0, %v1829
        %v1831 = vpop.f32.mrf.mxu0
        %1832 = vmatprep.mubr.f32.mxu0 0.0
        %1833 = vmatmul.mubr.f32.gmra.mxu0 %v1739
        %v1834 = vpop.f32.mrf.mxu0
        %v1835 = vadd.f32 0.0, %v1834
        %v1836 = vpop.f32.mrf.mxu0
        %1837 = vmatprep.mubr.f32.mxu0 0.0
        %1838 = vmatmul.mubr.f32.gmra.mxu0 %v1740
        %v1839 = vpop.f32.mrf.mxu0
        %v1840 = vadd.f32 0.0, %v1839
        %v1841 = vpop.f32.mrf.mxu0
        %1842 = vdwg.mxu0
        %v1843 = vmul.f32 %v1535, %v1535
        %v1844 = vmul.f32 %v1536, %v1536
        %v1845 = vmul.f32 %v1537, %v1537
        %v1846 = vmul.f32 %v1538, %v1538
        %v1847 = vsub.f32 1.0, %v1843
        %v1848 = vsub.f32 1.0, %v1844
        %v1849 = vsub.f32 1.0, %v1845
        %v1850 = vsub.f32 1.0, %v1846
        %v1851 = vmul.f32 %v1825, %v1847
        %v1852 = vmul.f32 %v1830, %v1848
        %v1853 = vmul.f32 %v1835, %v1849
        %v1854 = vmul.f32 %v1840, %v1850
        %s1855 = scalar_lea.vmem [#allocation7], 256
        %v1856 = vld [vmem:[%s1855] sm:$0xff]
        %v1857 = vld [vmem:[%s1855 + $0x8] sm:$0xff]
        %v1858 = vld [vmem:[%s1855 + $0x10] sm:$0xff]
        %v1859 = vld [vmem:[%s1855 + $0x18] sm:$0xff]
        %v1860 = vld [vmem:[%s1855 + $0x20] sm:$0xff]
        %v1861 = vld [vmem:[%s1855 + $0x28] sm:$0xff]
        %v1862 = vld [vmem:[%s1855 + $0x30] sm:$0xff]
        %v1863 = vld [vmem:[%s1855 + $0x38] sm:$0xff]
        %v1864 = vld [vmem:[%s1855 + $0x40] sm:$0xff]
        %v1865 = vld [vmem:[%s1855 + $0x48] sm:$0xff]
        %v1866 = vld [vmem:[%s1855 + $0x50] sm:$0xff]
        %v1867 = vld [vmem:[%s1855 + $0x58] sm:$0xff]
        %v1868 = vld [vmem:[%s1855 + $0x60] sm:$0xff]
        %v1869 = vld [vmem:[%s1855 + $0x68] sm:$0xff]
        %v1870 = vld [vmem:[%s1855 + $0x70] sm:$0xff]
        %v1871 = vld [vmem:[%s1855 + $0x78] sm:$0xff]
        %1872 = vmatprep.subr.mxu0 0.0
        %1873 = vmatpush1.msra.mxu0 %v1871
        %1874 = vmatprep.subr.mxu0 0.0
        %1875 = vmatpush1.msra.mxu0 %v1870
        %1876 = vmatprep.subr.mxu0 0.0
        %1877 = vmatpush1.msra.mxu0 %v1869
        %1878 = vmatprep.subr.mxu0 0.0
        %1879 = vmatpush1.msra.mxu0 %v1868
        %1880 = vmatprep.subr.mxu0 0.0
        %1881 = vmatpush1.msra.mxu0 %v1867
        %1882 = vmatprep.subr.mxu0 0.0
        %1883 = vmatpush1.msra.mxu0 %v1866
        %1884 = vmatprep.subr.mxu0 0.0
        %1885 = vmatpush1.msra.mxu0 %v1865
        %1886 = vmatprep.subr.mxu0 0.0
        %1887 = vmatpush1.msra.mxu0 %v1864
        %1888 = vmatprep.subr.mxu0 0.0
        %1889 = vmatpush1.msra.mxu0 %v1863
        %1890 = vmatprep.subr.mxu0 0.0
        %1891 = vmatpush1.msra.mxu0 %v1862
        %1892 = vmatprep.subr.mxu0 0.0
        %1893 = vmatpush1.msra.mxu0 %v1861
        %1894 = vmatprep.subr.mxu0 0.0
        %1895 = vmatpush1.msra.mxu0 %v1860
        %1896 = vmatprep.subr.mxu0 0.0
        %1897 = vmatpush1.msra.mxu0 %v1859
        %1898 = vmatprep.subr.mxu0 0.0
        %1899 = vmatpush1.msra.mxu0 %v1858
        %1900 = vmatprep.subr.mxu0 0.0
        %1901 = vmatpush1.msra.mxu0 %v1857
        %1902 = vmatprep.subr.mxu0 0.0
        %1903 = vmatpush1.msra.mxu0 %v1856
        %1904 = vmatprep.subr.mxu0 0.0
        %1905 = vmatpush2.msra.mxu0 0.0
        %1906 = vmatprep.subr.mxu0 0.0
        %1907 = vmatpush2.msra.mxu0 0.0
        %1908 = vmatprep.subr.mxu0 0.0
        %1909 = vmatpush2.msra.mxu0 0.0
        %1910 = vmatprep.subr.mxu0 0.0
        %1911 = vmatpush2.msra.mxu0 0.0
        %1912 = vmatprep.subr.mxu0 0.0
        %1913 = vmatpush2.msra.mxu0 0.0
        %1914 = vmatprep.subr.mxu0 0.0
        %1915 = vmatpush2.msra.mxu0 0.0
        %1916 = vmatprep.subr.mxu0 0.0
        %1917 = vmatpush2.msra.mxu0 0.0
        %1918 = vmatprep.subr.mxu0 0.0
        %1919 = vmatpush2.msra.mxu0 0.0
        %1920 = vmatprep.subr.mxu0 0.0
        %1921 = vmatpush2.msra.mxu0 0.0
        %1922 = vmatprep.subr.mxu0 0.0
        %1923 = vmatpush2.msra.mxu0 0.0
        %1924 = vmatprep.subr.mxu0 0.0
        %1925 = vmatpush2.msra.mxu0 0.0
        %1926 = vmatprep.subr.mxu0 0.0
        %1927 = vmatpush2.msra.mxu0 0.0
        %1928 = vmatprep.subr.mxu0 0.0
        %1929 = vmatpush2.msra.mxu0 0.0
        %1930 = vmatprep.subr.mxu0 0.0
        %1931 = vmatpush2.msra.mxu0 0.0
        %1932 = vmatprep.subr.mxu0 0.0
        %1933 = vmatpush2.msra.mxu0 0.0
        %1934 = vmatprep.subr.mxu0 0.0
        %1935 = vmatpush2.msra.mxu0 0.0
        %1936 = vmatprep.mubr.f32.mxu0 0.0
        %1937 = vmatmul.mubr.f32.gmra.mxu0 %v1851
        %v1938 = vpop.f32.mrf.mxu0
        %v1939 = vadd.f32 0.0, %v1938
        %v1940 = vpop.f32.mrf.mxu0
        %1941 = vmatprep.mubr.f32.mxu0 0.0
        %1942 = vmatmul.mubr.f32.gmra.mxu0 %v1852
        %v1943 = vpop.f32.mrf.mxu0
        %v1944 = vadd.f32 0.0, %v1943
        %v1945 = vpop.f32.mrf.mxu0
        %1946 = vmatprep.mubr.f32.mxu0 0.0
        %1947 = vmatmul.mubr.f32.gmra.mxu0 %v1853
        %v1948 = vpop.f32.mrf.mxu0
        %v1949 = vadd.f32 0.0, %v1948
        %v1950 = vpop.f32.mrf.mxu0
        %1951 = vmatprep.mubr.f32.mxu0 0.0
        %1952 = vmatmul.mubr.f32.gmra.mxu0 %v1854
        %v1953 = vpop.f32.mrf.mxu0
        %v1954 = vadd.f32 0.0, %v1953
        %v1955 = vpop.f32.mrf.mxu0
        %1956 = vdwg.mxu0
        %v1957 = vmul.f32 %v1407, %v1407
        %v1958 = vmul.f32 %v1408, %v1408
        %v1959 = vmul.f32 %v1409, %v1409
        %v1960 = vmul.f32 %v1410, %v1410
        %v1961 = vsub.f32 1.0, %v1957
        %v1962 = vsub.f32 1.0, %v1958
        %v1963 = vsub.f32 1.0, %v1959
        %v1964 = vsub.f32 1.0, %v1960
        %v1965 = vmul.f32 %v1939, %v1961
        %v1966 = vmul.f32 %v1944, %v1962
        %v1967 = vmul.f32 %v1949, %v1963
        %v1968 = vmul.f32 %v1954, %v1964
        %s1969 = scalar_lea.vmem [#allocation3], 128
        %v1970 = vld [vmem:[%s1969] sm:$0xff]
        %v1971 = vld [vmem:[%s1969 + $0x8] sm:$0xff]
        %v1972 = vld [vmem:[%s1969 + $0x10] sm:$0xff]
        %v1973 = vld [vmem:[%s1969 + $0x18] sm:$0xff]
        %v1974 = vld [vmem:[%s1969 + $0x20] sm:$0xff]
        %v1975 = vld [vmem:[%s1969 + $0x28] sm:$0xff]
        %v1976 = vld [vmem:[%s1969 + $0x30] sm:$0xff]
        %v1977 = vld [vmem:[%s1969 + $0x38] sm:$0xff]
        %v1978 = vld [vmem:[%s1969 + $0x40] sm:$0xff]
        %v1979 = vld [vmem:[%s1969 + $0x48] sm:$0xff]
        %v1980 = vld [vmem:[%s1969 + $0x50] sm:$0xff]
        %v1981 = vld [vmem:[%s1969 + $0x58] sm:$0xff]
        %v1982 = vld [vmem:[%s1969 + $0x60] sm:$0xff]
        %v1983 = vld [vmem:[%s1969 + $0x68] sm:$0xff]
        %v1984 = vld [vmem:[%s1969 + $0x70] sm:$0xff]
        %v1985 = vld [vmem:[%s1969 + $0x78] sm:$0xff]
        %1986 = vmatprep.subr.mxu0 0.0
        %1987 = vmatpush1.msra.mxu0 %v1985
        %1988 = vmatprep.subr.mxu0 0.0
        %1989 = vmatpush1.msra.mxu0 %v1984
        %1990 = vmatprep.subr.mxu0 0.0
        %1991 = vmatpush1.msra.mxu0 %v1983
        %1992 = vmatprep.subr.mxu0 0.0
        %1993 = vmatpush1.msra.mxu0 %v1982
        %1994 = vmatprep.subr.mxu0 0.0
        %1995 = vmatpush1.msra.mxu0 %v1981
        %1996 = vmatprep.subr.mxu0 0.0
        %1997 = vmatpush1.msra.mxu0 %v1980
        %1998 = vmatprep.subr.mxu0 0.0
        %1999 = vmatpush1.msra.mxu0 %v1979
        %2000 = vmatprep.subr.mxu0 0.0
        %2001 = vmatpush1.msra.mxu0 %v1978
        %2002 = vmatprep.subr.mxu0 0.0
        %2003 = vmatpush1.msra.mxu0 %v1977
        %2004 = vmatprep.subr.mxu0 0.0
        %2005 = vmatpush1.msra.mxu0 %v1976
        %2006 = vmatprep.subr.mxu0 0.0
        %2007 = vmatpush1.msra.mxu0 %v1975
        %2008 = vmatprep.subr.mxu0 0.0
        %2009 = vmatpush1.msra.mxu0 %v1974
        %2010 = vmatprep.subr.mxu0 0.0
        %2011 = vmatpush1.msra.mxu0 %v1973
        %2012 = vmatprep.subr.mxu0 0.0
        %2013 = vmatpush1.msra.mxu0 %v1972
        %2014 = vmatprep.subr.mxu0 0.0
        %2015 = vmatpush1.msra.mxu0 %v1971
        %2016 = vmatprep.subr.mxu0 0.0
        %2017 = vmatpush1.msra.mxu0 %v1970
        %2018 = vmatprep.subr.mxu0 0.0
        %2019 = vmatpush2.msra.mxu0 0.0
        %2020 = vmatprep.subr.mxu0 0.0
        %2021 = vmatpush2.msra.mxu0 0.0
        %2022 = vmatprep.subr.mxu0 0.0
        %2023 = vmatpush2.msra.mxu0 0.0
        %2024 = vmatprep.subr.mxu0 0.0
        %2025 = vmatpush2.msra.mxu0 0.0
        %2026 = vmatprep.subr.mxu0 0.0
        %2027 = vmatpush2.msra.mxu0 0.0
        %2028 = vmatprep.subr.mxu0 0.0
        %2029 = vmatpush2.msra.mxu0 0.0
        %2030 = vmatprep.subr.mxu0 0.0
        %2031 = vmatpush2.msra.mxu0 0.0
        %2032 = vmatprep.subr.mxu0 0.0
        %2033 = vmatpush2.msra.mxu0 0.0
        %2034 = vmatprep.subr.mxu0 0.0
        %2035 = vmatpush2.msra.mxu0 0.0
        %2036 = vmatprep.subr.mxu0 0.0
        %2037 = vmatpush2.msra.mxu0 0.0
        %2038 = vmatprep.subr.mxu0 0.0
        %2039 = vmatpush2.msra.mxu0 0.0
        %2040 = vmatprep.subr.mxu0 0.0
        %2041 = vmatpush2.msra.mxu0 0.0
        %2042 = vmatprep.subr.mxu0 0.0
        %2043 = vmatpush2.msra.mxu0 0.0
        %2044 = vmatprep.subr.mxu0 0.0
        %2045 = vmatpush2.msra.mxu0 0.0
        %2046 = vmatprep.subr.mxu0 0.0
        %2047 = vmatpush2.msra.mxu0 0.0
        %2048 = vmatprep.subr.mxu0 0.0
        %2049 = vmatpush2.msra.mxu0 0.0
        %2050 = vmatprep.mubr.f32.mxu0 0.0
        %2051 = vmatmul.mubr.f32.gmra.mxu0 %v1965
        %v2052 = vpop.f32.mrf.mxu0
        %v2053 = vadd.f32 0.0, %v2052
        %v2054 = vpop.f32.mrf.mxu0
        %2055 = vmatprep.mubr.f32.mxu0 0.0
        %2056 = vmatmul.mubr.f32.gmra.mxu0 %v1966
        %v2057 = vpop.f32.mrf.mxu0
        %v2058 = vadd.f32 0.0, %v2057
        %v2059 = vpop.f32.mrf.mxu0
        %2060 = vmatprep.mubr.f32.mxu0 0.0
        %2061 = vmatmul.mubr.f32.gmra.mxu0 %v1967
        %v2062 = vpop.f32.mrf.mxu0
        %v2063 = vadd.f32 0.0, %v2062
        %v2064 = vpop.f32.mrf.mxu0
        %2065 = vmatprep.mubr.f32.mxu0 0.0
        %2066 = vmatmul.mubr.f32.gmra.mxu0 %v1968
        %v2067 = vpop.f32.mrf.mxu0
        %v2068 = vadd.f32 0.0, %v2067
        %v2069 = vpop.f32.mrf.mxu0
        %2070 = vdwg.mxu0
        %2071 = vmatprep.subr.mxu0 0.0
        %2072 = vmatpush1.msra.mxu0 %v1277
        %2073 = vmatprep.subr.mxu0 0.0
        %2074 = vmatpush1.msra.mxu0 %v1276
        %2075 = vmatprep.subr.mxu0 0.0
        %2076 = vmatpush1.msra.mxu0 %v1275
        %2077 = vmatprep.subr.mxu0 0.0
        %2078 = vmatpush1.msra.mxu0 %v1274
        %2079 = vmatprep.subr.mxu0 0.0
        %2080 = vmatpush1.msra.mxu0 %v1273
        %2081 = vmatprep.subr.mxu0 0.0
        %2082 = vmatpush1.msra.mxu0 %v1272
        %2083 = vmatprep.subr.mxu0 0.0
        %2084 = vmatpush1.msra.mxu0 %v1271
        %2085 = vmatprep.subr.mxu0 0.0
        %2086 = vmatpush1.msra.mxu0 %v1270
        %2087 = vmatprep.subr.mxu0 0.0
        %2088 = vmatpush1.msra.mxu0 %v1269
        %2089 = vmatprep.subr.mxu0 0.0
        %2090 = vmatpush1.msra.mxu0 %v1268
        %2091 = vmatprep.subr.mxu0 0.0
        %2092 = vmatpush1.msra.mxu0 %v1267
        %2093 = vmatprep.subr.mxu0 0.0
        %2094 = vmatpush1.msra.mxu0 %v1266
        %2095 = vmatprep.subr.mxu0 0.0
        %2096 = vmatpush1.msra.mxu0 %v1265
        %2097 = vmatprep.subr.mxu0 0.0
        %2098 = vmatpush1.msra.mxu0 %v1264
        %2099 = vmatprep.subr.mxu0 0.0
        %2100 = vmatpush1.msra.mxu0 %v1263
        %2101 = vmatprep.subr.mxu0 0.0
        %2102 = vmatpush1.msra.mxu0 %v1262
        %2103 = vmatprep.subr.mxu0 0.0
        %2104 = vmatpush2.msra.mxu0 0.0
        %2105 = vmatprep.subr.mxu0 0.0
        %2106 = vmatpush2.msra.mxu0 0.0
        %2107 = vmatprep.subr.mxu0 0.0
        %2108 = vmatpush2.msra.mxu0 0.0
        %2109 = vmatprep.subr.mxu0 0.0
        %2110 = vmatpush2.msra.mxu0 0.0
        %2111 = vmatprep.subr.mxu0 0.0
        %2112 = vmatpush2.msra.mxu0 0.0
        %2113 = vmatprep.subr.mxu0 0.0
        %2114 = vmatpush2.msra.mxu0 0.0
        %2115 = vmatprep.subr.mxu0 0.0
        %2116 = vmatpush2.msra.mxu0 0.0
        %2117 = vmatprep.subr.mxu0 0.0
        %2118 = vmatpush2.msra.mxu0 0.0
        %2119 = vmatprep.subr.mxu0 0.0
        %2120 = vmatpush2.msra.mxu0 0.0
        %2121 = vmatprep.subr.mxu0 0.0
        %2122 = vmatpush2.msra.mxu0 0.0
        %2123 = vmatprep.subr.mxu0 0.0
        %2124 = vmatpush2.msra.mxu0 0.0
        %2125 = vmatprep.subr.mxu0 0.0
        %2126 = vmatpush2.msra.mxu0 0.0
        %2127 = vmatprep.subr.mxu0 0.0
        %2128 = vmatpush2.msra.mxu0 0.0
        %2129 = vmatprep.subr.mxu0 0.0
        %2130 = vmatpush2.msra.mxu0 0.0
        %2131 = vmatprep.subr.mxu0 0.0
        %2132 = vmatpush2.msra.mxu0 0.0
        %2133 = vmatprep.subr.mxu0 0.0
        %2134 = vmatpush2.msra.mxu0 0.0
        %2135 = vmatprep.mubr.f32.mxu0 0.0
        %2136 = vmatmul.mubr.f32.gmra.mxu0 %v1258
        %v2137 = vpop.f32.mrf.mxu0
        %v2138 = vadd.f32 %v2053, %v2137
        %v2139 = vpop.f32.mrf.mxu0
        %2140 = vmatprep.mubr.f32.mxu0 0.0
        %2141 = vmatmul.mubr.f32.gmra.mxu0 %v1259
        %v2142 = vpop.f32.mrf.mxu0
        %v2143 = vadd.f32 %v2058, %v2142
        %v2144 = vpop.f32.mrf.mxu0
        %2145 = vmatprep.mubr.f32.mxu0 0.0
        %2146 = vmatmul.mubr.f32.gmra.mxu0 %v1260
        %v2147 = vpop.f32.mrf.mxu0
        %v2148 = vadd.f32 %v2063, %v2147
        %v2149 = vpop.f32.mrf.mxu0
        %2150 = vmatprep.mubr.f32.mxu0 0.0
        %2151 = vmatmul.mubr.f32.gmra.mxu0 %v1261
        %v2152 = vpop.f32.mrf.mxu0
        %v2153 = vadd.f32 %v2068, %v2152
        %v2154 = vpop.f32.mrf.mxu0
        %2155 = vdwg.mxu0
        %vm2156 = vcmask 7168
        %2157 = vst.msk [vmem:[%s554] sm:$0xff] %vm2156, %v1701
        %2158 = vst.msk [vmem:[%s554 + $0x8] sm:$0xff] %vm2156, %v1702
        %2159 = vst.msk [vmem:[%s554 + $0x10] sm:$0xff] %vm2156, %v1703
        %2160 = vst.msk [vmem:[%s554 + $0x18] sm:$0xff] %vm2156, %v1704
        %v2161 = vpack.c.bf16 %v2143, %v2138
        %v2162 = vpack.c.bf16 %v2153, %v2148
        %v2165 = vunpack.c.l.b16 %v2161
        %v2166 = vunpack.c.h.b16 %v2161
        %v2167 = vunpack.c.l.b16 %v2162
        %v2168 = vunpack.c.h.b16 %v2162
        %v2169 = vpack.c.b16 %v2165, %v2165
        %v2170 = vpack.c.b16 %v2166, %v2166
        %v2171 = vpack.c.b16 %v2167, %v2167
        %v2172 = vpack.c.b16 %v2168, %v2168
        %2177 = vst [vmem:[%s560] sm:$0xf] %v2169
        %2178 = vst [vmem:[%s560 + $0x4] sm:$0xf] %v2170
        %2179 = vst [vmem:[%s560 + $0x8] sm:$0xf] %v2171
        %2180 = vst [vmem:[%s560 + $0xc] sm:$0xf] %v2172
        %s2181 = smul.u32 4, %s26
        %p2182 = scmp.lt.s32.totalorder %s2181, 7
        %s2183 = scalar_select %p2182, %s2181, 7
        %s2184 = smul.addr %s2183, 8
        %s2185 = scalar_lea.vmem %s10, %s2184
        %s2186 = smul.u32 4, %s26
        %p2187 = scmp.lt.s32.totalorder %s2186, 7
        %s2188 = scalar_select %p2187, %s2186, 7
        %s2189 = smul.addr %s2188, 4
        %s2190 = scalar_lea.vmem %s11, %s2189
        // Predicated region
        $region119: #{bpnn_forward.2} parent=93 // pred_check
          %p2191 = pneg %p264
        $region120: #{bpnn_forward.2} parent=93 // pred_check_branch
          %2193 = sbr.rel (%p2191) target = $region122
        $region121: #{bpnn_forward.2} parent=93 // pred_region
          %s2194 = smul.u32 4, %s26
        $region122: #{bpnn_forward.2} parent=93 // pred_fallthru
          _
        // Predicated region
        $region123: #{bpnn_forward.2} parent=93 // pred_check
          %p2195 = pneg %p290
        $region124: #{bpnn_forward.2} parent=93 // pred_check_branch
          %2197 = sbr.rel (%p2195) target = $region126
        $region125: #{bpnn_forward.2} parent=93 // pred_region
          %s2198 = smul.u32 4, %s26
        $region126: #{bpnn_forward.2} parent=93 // pred_fallthru
          _
      $region94: #{bpnn_forward.2} parent=5 // pred_fallthru
        _
      %p2199 = scmp.le.s32.totalorder 2, %s21
      // Predicated region
      $region127: #{bpnn_forward.2} parent=5 // pred_check
        %p2200 = pneg %p2199
      $region128: #{bpnn_forward.2} parent=5 // pred_check_branch
        %2202 = sbr.rel (%p2200) target = $region130
      $region129: #{bpnn_forward.2} parent=5 // pred_region
        %s2203 = ssub.s32 %s21, 2
        // Predicated region
        $region131: #{bpnn_forward.2} parent=129 // pred_check
          %p2204 = pneg %p270
        $region132: #{bpnn_forward.2} parent=129 // pred_check_branch
          %2206 = sbr.rel (%p2204) target = $region134
        $region133: #{bpnn_forward.2} parent=129 // pred_region
          %s2207 = smul.u32 4, %s27
          %p2208 = scmp.lt.s32.totalorder %s2207, 7
          %s2209 = scalar_select %p2208, %s2207, 7
          %s2210 = smul.addr %s2209, 8
          %s2211 = scalar_lea.vmem %s10, %s2210
        $region134: #{bpnn_forward.2} parent=129 // pred_fallthru
          _
        // Predicated region
        $region135: #{bpnn_forward.2} parent=129 // pred_check
          %p2212 = pneg %p296
        $region136: #{bpnn_forward.2} parent=129 // pred_check_branch
          %2214 = sbr.rel (%p2212) target = $region138
        $region137: #{bpnn_forward.2} parent=129 // pred_region
          %s2215 = smul.u32 4, %s27
          %p2216 = scmp.lt.s32.totalorder %s2215, 7
          %s2217 = scalar_select %p2216, %s2215, 7
          %s2218 = smul.addr %s2217, 4
          %s2219 = scalar_lea.vmem %s11, %s2218
        $region138: #{bpnn_forward.2} parent=129 // pred_fallthru
          _
      $region130: #{bpnn_forward.2} parent=5 // pred_fallthru
        _
    $region6: #{bpnn_forward.2} parent=1 // loop_footer
      %s25 = sadd.s32 1, %s21
    $region7: #{bpnn_forward.2} parent=1 // loop_footer_branch
      %20 = sbr.rel target = $region3
    $region8: #{bpnn_forward.2} parent=1 // loop_exit
      _
    %2220 = vsyncpa [#allocation4], 1
    %s2221 = scalar_lea.sflag [#allocation4], 1
    %2222 = vsyncpa %s2221, 1
    %2223 = vsyncpa [#allocation6], 1
    %2224 = vsyncpa [#allocation9], 1

// kernel: bpnn_forward.3
$region0: #{bpnn_forward.3}
  #allocation0 [shape = 'u32[]', space=smem, size = 0x4, offset = 0x4, fixed_abs, tag = 'smem constant byte address 0x4 - core index']
  #allocation1 [shape = 'u32[144,128]{1,0:T(1,128)}', space=vmem, size = 0x12000, scoped, tag = 'internal scratch']
  #allocation2 [shape = 'f32[1,128]{1,0:T(1,128)}', space=vmem, size = 0x200, scoped, tag = 'scratch operand']
  %s0 = inlined_call_operand.vmem [shape: bf16[1,8192], index: 0, kind: input, shape index: {}]
  %s1 = inlined_call_operand.vmem [shape: bf16[8192,192], index: 1, kind: input, shape index: {}]
  %s2 = inlined_call_operand.vmem [shape: f32[1,256], index: 2, kind: output, shape index: {}]
  %s3 = sld [smem:[#allocation0]]
  $region90: #{bpnn_forward.3} parent=0
    _
  %s5 = ssub.s32 1, %s3
  %s6 = scalar_select 0, %s5, %s3
  $region1: #{bpnn_forward.3} parent=0
    #allocation3 [shape = 'u8[1048576]{0}', space=vmem, size = 0x100000, scoped, tag = 'input window, operand 1']
    loop: start=0, step=1, limit=10
    $region2: #{bpnn_forward.3} parent=1 // loop_pre_header
      _
    $region3: #{bpnn_forward.3} parent=1 // loop_header
      %s8 = sphi 0, %s12
      %p9 = scmp.ge.s32.totalorder %s8, 10
      %s15 = sphi 0, %s27
      %s16 = sphi 0, %s23
      %s17 = sphi 0, %s15
      %s18 = sphi 0, %s16
      %s19 = sphi 0, %s17
      %s20 = sphi 0, %s18
      %s30 = sphi 0, %s32
      %s33 = sphi 0, %s30
      %s34 = sphi 0, %s33
      %s50 = sphi 0, %s34
      %s58 = sphi 0, %s60
      %s61 = sphi 0, %s58
      %s62 = sphi 0, %s61
      %s78 = sphi 0, %s62
      %s84 = sphi 0, %s86
      %s87 = sphi 0, %s84
      %s88 = sphi 0, %s87
      %s104 = sphi 0, %s88
    $region4: #{bpnn_forward.3} parent=1 // loop_header_branch
      %11 = sbr.rel (%p9) target = $region8
    $region5: #{bpnn_forward.3} parent=1 // loop_body
      %s13 = ssub.s32 %s8, 1
      %s14 = ssub.s32 %s8, 2
      %s21 = sadd.s32 1, %s16
      %p22 = scmp.ge.s32.totalorder %s21, 4
      %s23 = scalar_select %p22, 0, %s21
      %s24 = sadd.s32 1, %s15
      %s25 = scalar_select %p22, %s24, %s15
      %p26 = scmp.ge.s32.totalorder %s25, 2
      %s27 = scalar_select %p26, 0, %s25
      %s28 = ssub.s32 %s16, %s23
      %p29 = scmp.eq.s32.totalorder %s28, 0
      %s31 = sadd.s32 %s30, 1
      %s32 = scalar_select %p29, %s30, %s31
      %p35 = pneg %p29
      %p36 = scmp.eq.s32.totalorder %s8, 7
      %p37 = por %p35, %p36
      %p38 = scmp.ne.s32.totalorder %s30, %s33
      %p39 = scmp.eq.s32.totalorder %s8, 0
      %p40 = por %p38, %p39
      %p41 = scmp.ne.s32.totalorder %s30, %s33
      %p42 = scmp.eq.s32.totalorder %s13, 7
      %p43 = por %p41, %p42
      %p44 = scmp.ne.s32.totalorder %s33, %s34
      %p45 = scmp.eq.s32.totalorder %s13, 0
      %p46 = por %p44, %p45
      %p47 = scmp.ne.s32.totalorder %s33, %s34
      %p48 = scmp.eq.s32.totalorder %s14, 7
      %p49 = por %p47, %p48
      %p51 = scmp.ne.s32.totalorder %s34, %s50
      %p52 = scmp.eq.s32.totalorder %s14, 0
      %p53 = por %p51, %p52
      %s54 = ssub.s32 %s16, %s23
      %s55 = ssub.s32 %s15, %s27
      %s56 = sor.u32 %s54, %s55
      %p57 = scmp.eq.s32.totalorder %s56, 0
      %s59 = sadd.s32 %s58, 1
      %s60 = scalar_select %p57, %s58, %s59
      %p63 = pneg %p57
      %p64 = scmp.eq.s32.totalorder %s8, 7
      %p65 = por %p63, %p64
      %p66 = scmp.ne.s32.totalorder %s58, %s61
      %p67 = scmp.eq.s32.totalorder %s8, 0
      %p68 = por %p66, %p67
      %p69 = scmp.ne.s32.totalorder %s58, %s61
      %p70 = scmp.eq.s32.totalorder %s13, 7
      %p71 = por %p69, %p70
      %p72 = scmp.ne.s32.totalorder %s61, %s62
      %p73 = scmp.eq.s32.totalorder %s13, 0
      %p74 = por %p72, %p73
      %p75 = scmp.ne.s32.totalorder %s61, %s62
      %p76 = scmp.eq.s32.totalorder %s14, 7
      %p77 = por %p75, %p76
      %p79 = scmp.ne.s32.totalorder %s62, %s78
      %p80 = scmp.eq.s32.totalorder %s14, 0
      %p81 = por %p79, %p80
      %s82 = ssub.s32 %s15, %s27
      %p83 = scmp.eq.s32.totalorder %s82, 0
      %s85 = sadd.s32 %s84, 1
      %s86 = scalar_select %p83, %s84, %s85
      %p89 = pneg %p83
      %p90 = scmp.eq.s32.totalorder %s8, 7
      %p91 = por %p89, %p90
      %p92 = scmp.ne.s32.totalorder %s84, %s87
      %p93 = scmp.eq.s32.totalorder %s8, 0
      %p94 = por %p92, %p93
      %p95 = scmp.ne.s32.totalorder %s84, %s87
      %p96 = scmp.eq.s32.totalorder %s13, 7
      %p97 = por %p95, %p96
      %p98 = scmp.ne.s32.totalorder %s87, %s88
      %p99 = scmp.eq.s32.totalorder %s13, 0
      %p100 = por %p98, %p99
      %p101 = scmp.ne.s32.totalorder %s87, %s88
      %p102 = scmp.eq.s32.totalorder %s14, 7
      %p103 = por %p101, %p102
      %p105 = scmp.ne.s32.totalorder %s88, %s104
      %p106 = scmp.eq.s32.totalorder %s14, 0
      %p107 = por %p105, %p106
      %p108 = scmp.le.s32.totalorder 1, %s8
      %p109 = scmp.lt.s32.totalorder %s8, 9
      %p110 = pnand %p108, %p109
      %p111 = pneg %p110
      // Predicated region
      $region9: #{bpnn_forward.3} parent=5 // pred_check
        _
      $region10: #{bpnn_forward.3} parent=5 // pred_check_branch
        %113 = sbr.rel (%p110) target = $region12
      $region11: #{bpnn_forward.3} parent=5 // pred_region
        %s114 = ssub.s32 %s8, 1
      $region12: #{bpnn_forward.3} parent=5 // pred_fallthru
        _
      %p115 = scmp.lt.s32.totalorder %s8, 8
      // Predicated region
      $region13: #{bpnn_forward.3} parent=5 // pred_check
        %p116 = pneg %p115
      $region14: #{bpnn_forward.3} parent=5 // pred_check_branch
        %118 = sbr.rel (%p116) target = $region16
      $region15: #{bpnn_forward.3} parent=5 // pred_region
        // Predicated region
        $region17: #{bpnn_forward.3} parent=15 // pred_check
          %p119 = pneg %p40
        $region18: #{bpnn_forward.3} parent=15 // pred_check_branch
          %121 = sbr.rel (%p119) target = $region20
        $region19: #{bpnn_forward.3} parent=15 // pred_region
          %s122 = smul.u32 16, %s16
          %p123 = scmp.lt.s32.totalorder %s122, 63
          %s124 = scalar_select %p123, %s122, 63
          %s125 = scalar_lea.vmem %s0, %s124
          %s126 = smul.u32 16, %s16
        $region20: #{bpnn_forward.3} parent=15 // pred_fallthru
          _
        // Predicated region
        $region21: #{bpnn_forward.3} parent=15 // pred_check
          %p127 = pneg %p68
        $region22: #{bpnn_forward.3} parent=15 // pred_check_branch
          %129 = sbr.rel (%p127) target = $region24
        $region23: #{bpnn_forward.3} parent=15 // pred_region
          %s130 = sand.u32 %s58, 1
          %s131 = sand.u32 %s58, 1
          %s132 = smul.addr %s131, 1024
          %s133 = scalar_lea.vmem [#allocation3], %s132
          %s134 = smul.u32 256, %s16
          %s135 = smul.addr %s134, 2
          %s136 = sadd.s32 %s15, %s135
          %s137 = smul.addr %s136, 4
          %s138 = scalar_lea.vmem %s1, %s137
          // Predicated region
          $region25: #{bpnn_forward.3} parent=23 // pred_check
            _
          $region26: #{bpnn_forward.3} parent=23 // pred_check_branch
            %140 = sbr.rel (0) target = $region28
          $region27: #{bpnn_forward.3} parent=23 // pred_region
            // Predicated region
            $region29: #{bpnn_forward.3} parent=27 // pred_check
              _
            $region30: #{bpnn_forward.3} parent=27 // pred_check_branch
              %142 = sbr.rel target = $region32
            $region31: #{bpnn_forward.3} parent=27 // pred_region
              // Predicated region
              $region44: #{bpnn_forward.3} parent=31 // pred_check
                _
              $region45: #{bpnn_forward.3} parent=31 // pred_check_branch
                %668 = sbr.rel (0) target = $region47
              $region46: #{bpnn_forward.3} parent=31 // pred_region
                loop: start=0, step=1, limit=1
                $region48: #{bpnn_forward.3} parent=46 // loop_pre_header
                  _
                $region49: #{bpnn_forward.3} parent=46 // loop_header
                  %s670 = sphi 0, %s674
                  %p671 = scmp.ge.s32.totalorder %s670, 1
                  %s675 = sphi %s138, %s138
                  %s676 = sphi %s133, %s133
                $region50: #{bpnn_forward.3} parent=46 // loop_header_branch
                  %673 = sbr.rel (%p671) target = $region54
                $region51: #{bpnn_forward.3} parent=46 // loop_body
                  _
                $region52: #{bpnn_forward.3} parent=46 // loop_footer
                  %s674 = sadd.s32 1, %s670
                $region53: #{bpnn_forward.3} parent=46 // loop_footer_branch
                  %669 = sbr.rel target = $region49
                $region54: #{bpnn_forward.3} parent=46 // loop_exit
                  _
                %s678 = ssub.s32 16, 1
                loop: start=0, step=1, limit=1
                $region55: #{bpnn_forward.3} parent=46 // loop_pre_header
                  _
                $region56: #{bpnn_forward.3} parent=46 // loop_header
                  %s680 = sphi 0, %s684
                  %p681 = scmp.ge.s32.totalorder %s680, 1
                  %s685 = sphi %s138, %s138
                  %s686 = sphi %s133, %s133
                $region57: #{bpnn_forward.3} parent=46 // loop_header_branch
                  %683 = sbr.rel (%p681) target = $region61
                $region58: #{bpnn_forward.3} parent=46 // loop_body
                  %v687 = vld [vmem:[%s685] sm:%s678]
                  %688 = vst [vmem:[%s686] sm:%s678] %v687
                  %v689 = vld [vmem:[%s685 + $0x8] sm:%s678]
                  %690 = vst [vmem:[%s686 + $0x4] sm:%s678] %v689
                  %v691 = vld [vmem:[%s685 + $0x10] sm:%s678]
                  %692 = vst [vmem:[%s686 + $0x8] sm:%s678] %v691
                  %v693 = vld [vmem:[%s685 + $0x18] sm:%s678]
                  %694 = vst [vmem:[%s686 + $0xc] sm:%s678] %v693
                  %v695 = vld [vmem:[%s685 + $0x20] sm:%s678]
                  %696 = vst [vmem:[%s686 + $0x10] sm:%s678] %v695
                  %v697 = vld [vmem:[%s685 + $0x28] sm:%s678]
                  %698 = vst [vmem:[%s686 + $0x14] sm:%s678] %v697
                  %v699 = vld [vmem:[%s685 + $0x30] sm:%s678]
                  %700 = vst [vmem:[%s686 + $0x18] sm:%s678] %v699
                  %v701 = vld [vmem:[%s685 + $0x38] sm:%s678]
                  %702 = vst [vmem:[%s686 + $0x1c] sm:%s678] %v701
                  %v703 = vld [vmem:[%s685 + $0x40] sm:%s678]
                  %704 = vst [vmem:[%s686 + $0x20] sm:%s678] %v703
                  %v705 = vld [vmem:[%s685 + $0x48] sm:%s678]
                  %706 = vst [vmem:[%s686 + $0x24] sm:%s678] %v705
                  %v707 = vld [vmem:[%s685 + $0x50] sm:%s678]
                  %708 = vst [vmem:[%s686 + $0x28] sm:%s678] %v707
                  %v709 = vld [vmem:[%s685 + $0x58] sm:%s678]
                  %710 = vst [vmem:[%s686 + $0x2c] sm:%s678] %v709
                  %v711 = vld [vmem:[%s685 + $0x60] sm:%s678]
                  %712 = vst [vmem:[%s686 + $0x30] sm:%s678] %v711
                  %v713 = vld [vmem:[%s685 + $0x68] sm:%s678]
                  %714 = vst [vmem:[%s686 + $0x34] sm:%s678] %v713
                  %v715 = vld [vmem:[%s685 + $0x70] sm:%s678]
                  %716 = vst [vmem:[%s686 + $0x38] sm:%s678] %v715
                  %v717 = vld [vmem:[%s685 + $0x78] sm:%s678]
                  %718 = vst [vmem:[%s686 + $0x3c] sm:%s678] %v717
                  %v719 = vld [vmem:[%s685 + $0x80] sm:%s678]
                  %720 = vst [vmem:[%s686 + $0x40] sm:%s678] %v719
                  %v721 = vld [vmem:[%s685 + $0x88] sm:%s678]
                  %722 = vst [vmem:[%s686 + $0x44] sm:%s678] %v721
                  %v723 = vld [vmem:[%s685 + $0x90] sm:%s678]
                  %724 = vst [vmem:[%s686 + $0x48] sm:%s678] %v723
                  %v725 = vld [vmem:[%s685 + $0x98] sm:%s678]
                  %726 = vst [vmem:[%s686 + $0x4c] sm:%s678] %v725
                  %v727 = vld [vmem:[%s685 + $0xa0] sm:%s678]
                  %728 = vst [vmem:[%s686 + $0x50] sm:%s678] %v727
                  %v729 = vld [vmem:[%s685 + $0xa8] sm:%s678]
                  %730 = vst [vmem:[%s686 + $0x54] sm:%s678] %v729
                  %v731 = vld [vmem:[%s685 + $0xb0] sm:%s678]
                  %732 = vst [vmem:[%s686 + $0x58] sm:%s678] %v731
                  %v733 = vld [vmem:[%s685 + $0xb8] sm:%s678]
                  %734 = vst [vmem:[%s686 + $0x5c] sm:%s678] %v733
                  %v735 = vld [vmem:[%s685 + $0xc0] sm:%s678]
                  %736 = vst [vmem:[%s686 + $0x60] sm:%s678] %v735
                  %v737 = vld [vmem:[%s685 + $0xc8] sm:%s678]
                  %738 = vst [vmem:[%s686 + $0x64] sm:%s678] %v737
                  %v739 = vld [vmem:[%s685 + $0xd0] sm:%s678]
                  %740 = vst [vmem:[%s686 + $0x68] sm:%s678] %v739
                  %v741 = vld [vmem:[%s685 + $0xd8] sm:%s678]
                  %742 = vst [vmem:[%s686 + $0x6c] sm:%s678] %v741
                  %v743 = vld [vmem:[%s685 + $0xe0] sm:%s678]
                  %744 = vst [vmem:[%s686 + $0x70] sm:%s678] %v743
                  %v745 = vld [vmem:[%s685 + $0xe8] sm:%s678]
                  %746 = vst [vmem:[%s686 + $0x74] sm:%s678] %v745
                  %v747 = vld [vmem:[%s685 + $0xf0] sm:%s678]
                  %748 = vst [vmem:[%s686 + $0x78] sm:%s678] %v747
                  %v749 = vld [vmem:[%s685 + $0xf8] sm:%s678]
                  %750 = vst [vmem:[%s686 + $0x7c] sm:%s678] %v749
                  %v751 = vld [vmem:[%s685 + $0x100] sm:%s678]
                  %752 = vst [vmem:[%s686 + $0x80] sm:%s678] %v751
                  %v753 = vld [vmem:[%s685 + $0x108] sm:%s678]
                  %754 = vst [vmem:[%s686 + $0x84] sm:%s678] %v753
                  %v755 = vld [vmem:[%s685 + $0x110] sm:%s678]
                  %756 = vst [vmem:[%s686 + $0x88] sm:%s678] %v755
                  %v757 = vld [vmem:[%s685 + $0x118] sm:%s678]
                  %758 = vst [vmem:[%s686 + $0x8c] sm:%s678] %v757
                  %v759 = vld [vmem:[%s685 + $0x120] sm:%s678]
                  %760 = vst [vmem:[%s686 + $0x90] sm:%s678] %v759
                  %v761 = vld [vmem:[%s685 + $0x128] sm:%s678]
                  %762 = vst [vmem:[%s686 + $0x94] sm:%s678] %v761
                  %v763 = vld [vmem:[%s685 + $0x130] sm:%s678]
                  %764 = vst [vmem:[%s686 + $0x98] sm:%s678] %v763
                  %v765 = vld [vmem:[%s685 + $0x138] sm:%s678]
                  %766 = vst [vmem:[%s686 + $0x9c] sm:%s678] %v765
                  %v767 = vld [vmem:[%s685 + $0x140] sm:%s678]
                  %768 = vst [vmem:[%s686 + $0xa0] sm:%s678] %v767
                  %v769 = vld [vmem:[%s685 + $0x148] sm:%s678]
                  %770 = vst [vmem:[%s686 + $0xa4] sm:%s678] %v769
                  %v771 = vld [vmem:[%s685 + $0x150] sm:%s678]
                  %772 = vst [vmem:[%s686 + $0xa8] sm:%s678] %v771
                  %v773 = vld [vmem:[%s685 + $0x158] sm:%s678]
                  %774 = vst [vmem:[%s686 + $0xac] sm:%s678] %v773
                  %v775 = vld [vmem:[%s685 + $0x160] sm:%s678]
                  %776 = vst [vmem:[%s686 + $0xb0] sm:%s678] %v775
                  %v777 = vld [vmem:[%s685 + $0x168] sm:%s678]
                  %778 = vst [vmem:[%s686 + $0xb4] sm:%s678] %v777
                  %v779 = vld [vmem:[%s685 + $0x170] sm:%s678]
                  %780 = vst [vmem:[%s686 + $0xb8] sm:%s678] %v779
                  %v781 = vld [vmem:[%s685 + $0x178] sm:%s678]
                  %782 = vst [vmem:[%s686 + $0xbc] sm:%s678] %v781
                  %v783 = vld [vmem:[%s685 + $0x180] sm:%s678]
                  %784 = vst [vmem:[%s686 + $0xc0] sm:%s678] %v783
                  %v785 = vld [vmem:[%s685 + $0x188] sm:%s678]
                  %786 = vst [vmem:[%s686 + $0xc4] sm:%s678] %v785
                  %v787 = vld [vmem:[%s685 + $0x190] sm:%s678]
                  %788 = vst [vmem:[%s686 + $0xc8] sm:%s678] %v787
                  %v789 = vld [vmem:[%s685 + $0x198] sm:%s678]
                  %790 = vst [vmem:[%s686 + $0xcc] sm:%s678] %v789
                  %v791 = vld [vmem:[%s685 + $0x1a0] sm:%s678]
                  %792 = vst [vmem:[%s686 + $0xd0] sm:%s678] %v791
                  %v793 = vld [vmem:[%s685 + $0x1a8] sm:%s678]
                  %794 = vst [vmem:[%s686 + $0xd4] sm:%s678] %v793
                  %v795 = vld [vmem:[%s685 + $0x1b0] sm:%s678]
                  %796 = vst [vmem:[%s686 + $0xd8] sm:%s678] %v795
                  %v797 = vld [vmem:[%s685 + $0x1b8] sm:%s678]
                  %798 = vst [vmem:[%s686 + $0xdc] sm:%s678] %v797
                  %v799 = vld [vmem:[%s685 + $0x1c0] sm:%s678]
                  %800 = vst [vmem:[%s686 + $0xe0] sm:%s678] %v799
                  %v801 = vld [vmem:[%s685 + $0x1c8] sm:%s678]
                  %802 = vst [vmem:[%s686 + $0xe4] sm:%s678] %v801
                  %v803 = vld [vmem:[%s685 + $0x1d0] sm:%s678]
                  %804 = vst [vmem:[%s686 + $0xe8] sm:%s678] %v803
                  %v805 = vld [vmem:[%s685 + $0x1d8] sm:%s678]
                  %806 = vst [vmem:[%s686 + $0xec] sm:%s678] %v805
                  %v807 = vld [vmem:[%s685 + $0x1e0] sm:%s678]
                  %808 = vst [vmem:[%s686 + $0xf0] sm:%s678] %v807
                  %v809 = vld [vmem:[%s685 + $0x1e8] sm:%s678]
                  %810 = vst [vmem:[%s686 + $0xf4] sm:%s678] %v809
                  %v811 = vld [vmem:[%s685 + $0x1f0] sm:%s678]
                  %812 = vst [vmem:[%s686 + $0xf8] sm:%s678] %v811
                  %v813 = vld [vmem:[%s685 + $0x1f8] sm:%s678]
                  %814 = vst [vmem:[%s686 + $0xfc] sm:%s678] %v813
                  %v815 = vld [vmem:[%s685 + $0x200] sm:%s678]
                  %816 = vst [vmem:[%s686 + $0x100] sm:%s678] %v815
                  %v817 = vld [vmem:[%s685 + $0x208] sm:%s678]
                  %818 = vst [vmem:[%s686 + $0x104] sm:%s678] %v817
                  %v819 = vld [vmem:[%s685 + $0x210] sm:%s678]
                  %820 = vst [vmem:[%s686 + $0x108] sm:%s678] %v819
                  %v821 = vld [vmem:[%s685 + $0x218] sm:%s678]
                  %822 = vst [vmem:[%s686 + $0x10c] sm:%s678] %v821
                  %v823 = vld [vmem:[%s685 + $0x220] sm:%s678]
                  %824 = vst [vmem:[%s686 + $0x110] sm:%s678] %v823
                  %v825 = vld [vmem:[%s685 + $0x228] sm:%s678]
                  %826 = vst [vmem:[%s686 + $0x114] sm:%s678] %v825
                  %v827 = vld [vmem:[%s685 + $0x230] sm:%s678]
                  %828 = vst [vmem:[%s686 + $0x118] sm:%s678] %v827
                  %v829 = vld [vmem:[%s685 + $0x238] sm:%s678]
                  %830 = vst [vmem:[%s686 + $0x11c] sm:%s678] %v829
                  %v831 = vld [vmem:[%s685 + $0x240] sm:%s678]
                  %832 = vst [vmem:[%s686 + $0x120] sm:%s678] %v831
                  %v833 = vld [vmem:[%s685 + $0x248] sm:%s678]
                  %834 = vst [vmem:[%s686 + $0x124] sm:%s678] %v833
                  %v835 = vld [vmem:[%s685 + $0x250] sm:%s678]
                  %836 = vst [vmem:[%s686 + $0x128] sm:%s678] %v835
                  %v837 = vld [vmem:[%s685 + $0x258] sm:%s678]
                  %838 = vst [vmem:[%s686 + $0x12c] sm:%s678] %v837
                  %v839 = vld [vmem:[%s685 + $0x260] sm:%s678]
                  %840 = vst [vmem:[%s686 + $0x130] sm:%s678] %v839
                  %v841 = vld [vmem:[%s685 + $0x268] sm:%s678]
                  %842 = vst [vmem:[%s686 + $0x134] sm:%s678] %v841
                  %v843 = vld [vmem:[%s685 + $0x270] sm:%s678]
                  %844 = vst [vmem:[%s686 + $0x138] sm:%s678] %v843
                  %v845 = vld [vmem:[%s685 + $0x278] sm:%s678]
                  %846 = vst [vmem:[%s686 + $0x13c] sm:%s678] %v845
                  %v847 = vld [vmem:[%s685 + $0x280] sm:%s678]
                  %848 = vst [vmem:[%s686 + $0x140] sm:%s678] %v847
                  %v849 = vld [vmem:[%s685 + $0x288] sm:%s678]
                  %850 = vst [vmem:[%s686 + $0x144] sm:%s678] %v849
                  %v851 = vld [vmem:[%s685 + $0x290] sm:%s678]
                  %852 = vst [vmem:[%s686 + $0x148] sm:%s678] %v851
                  %v853 = vld [vmem:[%s685 + $0x298] sm:%s678]
                  %854 = vst [vmem:[%s686 + $0x14c] sm:%s678] %v853
                  %v855 = vld [vmem:[%s685 + $0x2a0] sm:%s678]
                  %856 = vst [vmem:[%s686 + $0x150] sm:%s678] %v855
                  %v857 = vld [vmem:[%s685 + $0x2a8] sm:%s678]
                  %858 = vst [vmem:[%s686 + $0x154] sm:%s678] %v857
                  %v859 = vld [vmem:[%s685 + $0x2b0] sm:%s678]
                  %860 = vst [vmem:[%s686 + $0x158] sm:%s678] %v859
                  %v861 = vld [vmem:[%s685 + $0x2b8] sm:%s678]
                  %862 = vst [vmem:[%s686 + $0x15c] sm:%s678] %v861
                  %v863 = vld [vmem:[%s685 + $0x2c0] sm:%s678]
                  %864 = vst [vmem:[%s686 + $0x160] sm:%s678] %v863
                  %v865 = vld [vmem:[%s685 + $0x2c8] sm:%s678]
                  %866 = vst [vmem:[%s686 + $0x164] sm:%s678] %v865
                  %v867 = vld [vmem:[%s685 + $0x2d0] sm:%s678]
                  %868 = vst [vmem:[%s686 + $0x168] sm:%s678] %v867
                  %v869 = vld [vmem:[%s685 + $0x2d8] sm:%s678]
                  %870 = vst [vmem:[%s686 + $0x16c] sm:%s678] %v869
                  %v871 = vld [vmem:[%s685 + $0x2e0] sm:%s678]
                  %872 = vst [vmem:[%s686 + $0x170] sm:%s678] %v871
                  %v873 = vld [vmem:[%s685 + $0x2e8] sm:%s678]
                  %874 = vst [vmem:[%s686 + $0x174] sm:%s678] %v873
                  %v875 = vld [vmem:[%s685 + $0x2f0] sm:%s678]
                  %876 = vst [vmem:[%s686 + $0x178] sm:%s678] %v875
                  %v877 = vld [vmem:[%s685 + $0x2f8] sm:%s678]
                  %878 = vst [vmem:[%s686 + $0x17c] sm:%s678] %v877
                  %v879 = vld [vmem:[%s685 + $0x300] sm:%s678]
                  %880 = vst [vmem:[%s686 + $0x180] sm:%s678] %v879
                  %v881 = vld [vmem:[%s685 + $0x308] sm:%s678]
                  %882 = vst [vmem:[%s686 + $0x184] sm:%s678] %v881
                  %v883 = vld [vmem:[%s685 + $0x310] sm:%s678]
                  %884 = vst [vmem:[%s686 + $0x188] sm:%s678] %v883
                  %v885 = vld [vmem:[%s685 + $0x318] sm:%s678]
                  %886 = vst [vmem:[%s686 + $0x18c] sm:%s678] %v885
                  %v887 = vld [vmem:[%s685 + $0x320] sm:%s678]
                  %888 = vst [vmem:[%s686 + $0x190] sm:%s678] %v887
                  %v889 = vld [vmem:[%s685 + $0x328] sm:%s678]
                  %890 = vst [vmem:[%s686 + $0x194] sm:%s678] %v889
                  %v891 = vld [vmem:[%s685 + $0x330] sm:%s678]
                  %892 = vst [vmem:[%s686 + $0x198] sm:%s678] %v891
                  %v893 = vld [vmem:[%s685 + $0x338] sm:%s678]
                  %894 = vst [vmem:[%s686 + $0x19c] sm:%s678] %v893
                  %v895 = vld [vmem:[%s685 + $0x340] sm:%s678]
                  %896 = vst [vmem:[%s686 + $0x1a0] sm:%s678] %v895
                  %v897 = vld [vmem:[%s685 + $0x348] sm:%s678]
                  %898 = vst [vmem:[%s686 + $0x1a4] sm:%s678] %v897
                  %v899 = vld [vmem:[%s685 + $0x350] sm:%s678]
                  %900 = vst [vmem:[%s686 + $0x1a8] sm:%s678] %v899
                  %v901 = vld [vmem:[%s685 + $0x358] sm:%s678]
                  %902 = vst [vmem:[%s686 + $0x1ac] sm:%s678] %v901
                  %v903 = vld [vmem:[%s685 + $0x360] sm:%s678]
                  %904 = vst [vmem:[%s686 + $0x1b0] sm:%s678] %v903
                  %v905 = vld [vmem:[%s685 + $0x368] sm:%s678]
                  %906 = vst [vmem:[%s686 + $0x1b4] sm:%s678] %v905
                  %v907 = vld [vmem:[%s685 + $0x370] sm:%s678]
                  %908 = vst [vmem:[%s686 + $0x1b8] sm:%s678] %v907
                  %v909 = vld [vmem:[%s685 + $0x378] sm:%s678]
                  %910 = vst [vmem:[%s686 + $0x1bc] sm:%s678] %v909
                  %v911 = vld [vmem:[%s685 + $0x380] sm:%s678]
                  %912 = vst [vmem:[%s686 + $0x1c0] sm:%s678] %v911
                  %v913 = vld [vmem:[%s685 + $0x388] sm:%s678]
                  %914 = vst [vmem:[%s686 + $0x1c4] sm:%s678] %v913
                  %v915 = vld [vmem:[%s685 + $0x390] sm:%s678]
                  %916 = vst [vmem:[%s686 + $0x1c8] sm:%s678] %v915
                  %v917 = vld [vmem:[%s685 + $0x398] sm:%s678]
                  %918 = vst [vmem:[%s686 + $0x1cc] sm:%s678] %v917
                  %v919 = vld [vmem:[%s685 + $0x3a0] sm:%s678]
                  %920 = vst [vmem:[%s686 + $0x1d0] sm:%s678] %v919
                  %v921 = vld [vmem:[%s685 + $0x3a8] sm:%s678]
                  %922 = vst [vmem:[%s686 + $0x1d4] sm:%s678] %v921
                  %v923 = vld [vmem:[%s685 + $0x3b0] sm:%s678]
                  %924 = vst [vmem:[%s686 + $0x1d8] sm:%s678] %v923
                  %v925 = vld [vmem:[%s685 + $0x3b8] sm:%s678]
                  %926 = vst [vmem:[%s686 + $0x1dc] sm:%s678] %v925
                  %v927 = vld [vmem:[%s685 + $0x3c0] sm:%s678]
                  %928 = vst [vmem:[%s686 + $0x1e0] sm:%s678] %v927
                  %v929 = vld [vmem:[%s685 + $0x3c8] sm:%s678]
                  %930 = vst [vmem:[%s686 + $0x1e4] sm:%s678] %v929
                  %v931 = vld [vmem:[%s685 + $0x3d0] sm:%s678]
                  %932 = vst [vmem:[%s686 + $0x1e8] sm:%s678] %v931
                  %v933 = vld [vmem:[%s685 + $0x3d8] sm:%s678]
                  %934 = vst [vmem:[%s686 + $0x1ec] sm:%s678] %v933
                  %v935 = vld [vmem:[%s685 + $0x3e0] sm:%s678]
                  %936 = vst [vmem:[%s686 + $0x1f0] sm:%s678] %v935
                  %v937 = vld [vmem:[%s685 + $0x3e8] sm:%s678]
                  %938 = vst [vmem:[%s686 + $0x1f4] sm:%s678] %v937
                  %v939 = vld [vmem:[%s685 + $0x3f0] sm:%s678]
                  %940 = vst [vmem:[%s686 + $0x1f8] sm:%s678] %v939
                  %v941 = vld [vmem:[%s685 + $0x3f8] sm:%s678]
                  %942 = vst [vmem:[%s686 + $0x1fc] sm:%s678] %v941
                  %v943 = vld [vmem:[%s685 + $0x400] sm:%s678]
                  %944 = vst [vmem:[%s686 + $0x200] sm:%s678] %v943
                  %v945 = vld [vmem:[%s685 + $0x408] sm:%s678]
                  %946 = vst [vmem:[%s686 + $0x204] sm:%s678] %v945
                  %v947 = vld [vmem:[%s685 + $0x410] sm:%s678]
                  %948 = vst [vmem:[%s686 + $0x208] sm:%s678] %v947
                  %v949 = vld [vmem:[%s685 + $0x418] sm:%s678]
                  %950 = vst [vmem:[%s686 + $0x20c] sm:%s678] %v949
                  %v951 = vld [vmem:[%s685 + $0x420] sm:%s678]
                  %952 = vst [vmem:[%s686 + $0x210] sm:%s678] %v951
                  %v953 = vld [vmem:[%s685 + $0x428] sm:%s678]
                  %954 = vst [vmem:[%s686 + $0x214] sm:%s678] %v953
                  %v955 = vld [vmem:[%s685 + $0x430] sm:%s678]
                  %956 = vst [vmem:[%s686 + $0x218] sm:%s678] %v955
                  %v957 = vld [vmem:[%s685 + $0x438] sm:%s678]
                  %958 = vst [vmem:[%s686 + $0x21c] sm:%s678] %v957
                  %v959 = vld [vmem:[%s685 + $0x440] sm:%s678]
                  %960 = vst [vmem:[%s686 + $0x220] sm:%s678] %v959
                  %v961 = vld [vmem:[%s685 + $0x448] sm:%s678]
                  %962 = vst [vmem:[%s686 + $0x224] sm:%s678] %v961
                  %v963 = vld [vmem:[%s685 + $0x450] sm:%s678]
                  %964 = vst [vmem:[%s686 + $0x228] sm:%s678] %v963
                  %v965 = vld [vmem:[%s685 + $0x458] sm:%s678]
                  %966 = vst [vmem:[%s686 + $0x22c] sm:%s678] %v965
                  %v967 = vld [vmem:[%s685 + $0x460] sm:%s678]
                  %968 = vst [vmem:[%s686 + $0x230] sm:%s678] %v967
                  %v969 = vld [vmem:[%s685 + $0x468] sm:%s678]
                  %970 = vst [vmem:[%s686 + $0x234] sm:%s678] %v969
                  %v971 = vld [vmem:[%s685 + $0x470] sm:%s678]
                  %972 = vst [vmem:[%s686 + $0x238] sm:%s678] %v971
                  %v973 = vld [vmem:[%s685 + $0x478] sm:%s678]
                  %974 = vst [vmem:[%s686 + $0x23c] sm:%s678] %v973
                  %v975 = vld [vmem:[%s685 + $0x480] sm:%s678]
                  %976 = vst [vmem:[%s686 + $0x240] sm:%s678] %v975
                  %v977 = vld [vmem:[%s685 + $0x488] sm:%s678]
                  %978 = vst [vmem:[%s686 + $0x244] sm:%s678] %v977
                  %v979 = vld [vmem:[%s685 + $0x490] sm:%s678]
                  %980 = vst [vmem:[%s686 + $0x248] sm:%s678] %v979
                  %v981 = vld [vmem:[%s685 + $0x498] sm:%s678]
                  %982 = vst [vmem:[%s686 + $0x24c] sm:%s678] %v981
                  %v983 = vld [vmem:[%s685 + $0x4a0] sm:%s678]
                  %984 = vst [vmem:[%s686 + $0x250] sm:%s678] %v983
                  %v985 = vld [vmem:[%s685 + $0x4a8] sm:%s678]
                  %986 = vst [vmem:[%s686 + $0x254] sm:%s678] %v985
                  %v987 = vld [vmem:[%s685 + $0x4b0] sm:%s678]
                  %988 = vst [vmem:[%s686 + $0x258] sm:%s678] %v987
                  %v989 = vld [vmem:[%s685 + $0x4b8] sm:%s678]
                  %990 = vst [vmem:[%s686 + $0x25c] sm:%s678] %v989
                  %v991 = vld [vmem:[%s685 + $0x4c0] sm:%s678]
                  %992 = vst [vmem:[%s686 + $0x260] sm:%s678] %v991
                  %v993 = vld [vmem:[%s685 + $0x4c8] sm:%s678]
                  %994 = vst [vmem:[%s686 + $0x264] sm:%s678] %v993
                  %v995 = vld [vmem:[%s685 + $0x4d0] sm:%s678]
                  %996 = vst [vmem:[%s686 + $0x268] sm:%s678] %v995
                  %v997 = vld [vmem:[%s685 + $0x4d8] sm:%s678]
                  %998 = vst [vmem:[%s686 + $0x26c] sm:%s678] %v997
                  %v999 = vld [vmem:[%s685 + $0x4e0] sm:%s678]
                  %1000 = vst [vmem:[%s686 + $0x270] sm:%s678] %v999
                  %v1001 = vld [vmem:[%s685 + $0x4e8] sm:%s678]
                  %1002 = vst [vmem:[%s686 + $0x274] sm:%s678] %v1001
                  %v1003 = vld [vmem:[%s685 + $0x4f0] sm:%s678]
                  %1004 = vst [vmem:[%s686 + $0x278] sm:%s678] %v1003
                  %v1005 = vld [vmem:[%s685 + $0x4f8] sm:%s678]
                  %1006 = vst [vmem:[%s686 + $0x27c] sm:%s678] %v1005
                  %v1007 = vld [vmem:[%s685 + $0x500] sm:%s678]
                  %1008 = vst [vmem:[%s686 + $0x280] sm:%s678] %v1007
                  %v1009 = vld [vmem:[%s685 + $0x508] sm:%s678]
                  %1010 = vst [vmem:[%s686 + $0x284] sm:%s678] %v1009
                  %v1011 = vld [vmem:[%s685 + $0x510] sm:%s678]
                  %1012 = vst [vmem:[%s686 + $0x288] sm:%s678] %v1011
                  %v1013 = vld [vmem:[%s685 + $0x518] sm:%s678]
                  %1014 = vst [vmem:[%s686 + $0x28c] sm:%s678] %v1013
                  %v1015 = vld [vmem:[%s685 + $0x520] sm:%s678]
                  %1016 = vst [vmem:[%s686 + $0x290] sm:%s678] %v1015
                  %v1017 = vld [vmem:[%s685 + $0x528] sm:%s678]
                  %1018 = vst [vmem:[%s686 + $0x294] sm:%s678] %v1017
                  %v1019 = vld [vmem:[%s685 + $0x530] sm:%s678]
                  %1020 = vst [vmem:[%s686 + $0x298] sm:%s678] %v1019
                  %v1021 = vld [vmem:[%s685 + $0x538] sm:%s678]
                  %1022 = vst [vmem:[%s686 + $0x29c] sm:%s678] %v1021
                  %v1023 = vld [vmem:[%s685 + $0x540] sm:%s678]
                  %1024 = vst [vmem:[%s686 + $0x2a0] sm:%s678] %v1023
                  %v1025 = vld [vmem:[%s685 + $0x548] sm:%s678]
                  %1026 = vst [vmem:[%s686 + $0x2a4] sm:%s678] %v1025
                  %v1027 = vld [vmem:[%s685 + $0x550] sm:%s678]
                  %1028 = vst [vmem:[%s686 + $0x2a8] sm:%s678] %v1027
                  %v1029 = vld [vmem:[%s685 + $0x558] sm:%s678]
                  %1030 = vst [vmem:[%s686 + $0x2ac] sm:%s678] %v1029
                  %v1031 = vld [vmem:[%s685 + $0x560] sm:%s678]
                  %1032 = vst [vmem:[%s686 + $0x2b0] sm:%s678] %v1031
                  %v1033 = vld [vmem:[%s685 + $0x568] sm:%s678]
                  %1034 = vst [vmem:[%s686 + $0x2b4] sm:%s678] %v1033
                  %v1035 = vld [vmem:[%s685 + $0x570] sm:%s678]
                  %1036 = vst [vmem:[%s686 + $0x2b8] sm:%s678] %v1035
                  %v1037 = vld [vmem:[%s685 + $0x578] sm:%s678]
                  %1038 = vst [vmem:[%s686 + $0x2bc] sm:%s678] %v1037
                  %v1039 = vld [vmem:[%s685 + $0x580] sm:%s678]
                  %1040 = vst [vmem:[%s686 + $0x2c0] sm:%s678] %v1039
                  %v1041 = vld [vmem:[%s685 + $0x588] sm:%s678]
                  %1042 = vst [vmem:[%s686 + $0x2c4] sm:%s678] %v1041
                  %v1043 = vld [vmem:[%s685 + $0x590] sm:%s678]
                  %1044 = vst [vmem:[%s686 + $0x2c8] sm:%s678] %v1043
                  %v1045 = vld [vmem:[%s685 + $0x598] sm:%s678]
                  %1046 = vst [vmem:[%s686 + $0x2cc] sm:%s678] %v1045
                  %v1047 = vld [vmem:[%s685 + $0x5a0] sm:%s678]
                  %1048 = vst [vmem:[%s686 + $0x2d0] sm:%s678] %v1047
                  %v1049 = vld [vmem:[%s685 + $0x5a8] sm:%s678]
                  %1050 = vst [vmem:[%s686 + $0x2d4] sm:%s678] %v1049
                  %v1051 = vld [vmem:[%s685 + $0x5b0] sm:%s678]
                  %1052 = vst [vmem:[%s686 + $0x2d8] sm:%s678] %v1051
                  %v1053 = vld [vmem:[%s685 + $0x5b8] sm:%s678]
                  %1054 = vst [vmem:[%s686 + $0x2dc] sm:%s678] %v1053
                  %v1055 = vld [vmem:[%s685 + $0x5c0] sm:%s678]
                  %1056 = vst [vmem:[%s686 + $0x2e0] sm:%s678] %v1055
                  %v1057 = vld [vmem:[%s685 + $0x5c8] sm:%s678]
                  %1058 = vst [vmem:[%s686 + $0x2e4] sm:%s678] %v1057
                  %v1059 = vld [vmem:[%s685 + $0x5d0] sm:%s678]
                  %1060 = vst [vmem:[%s686 + $0x2e8] sm:%s678] %v1059
                  %v1061 = vld [vmem:[%s685 + $0x5d8] sm:%s678]
                  %1062 = vst [vmem:[%s686 + $0x2ec] sm:%s678] %v1061
                  %v1063 = vld [vmem:[%s685 + $0x5e0] sm:%s678]
                  %1064 = vst [vmem:[%s686 + $0x2f0] sm:%s678] %v1063
                  %v1065 = vld [vmem:[%s685 + $0x5e8] sm:%s678]
                  %1066 = vst [vmem:[%s686 + $0x2f4] sm:%s678] %v1065
                  %v1067 = vld [vmem:[%s685 + $0x5f0] sm:%s678]
                  %1068 = vst [vmem:[%s686 + $0x2f8] sm:%s678] %v1067
                  %v1069 = vld [vmem:[%s685 + $0x5f8] sm:%s678]
                  %1070 = vst [vmem:[%s686 + $0x2fc] sm:%s678] %v1069
                  %v1071 = vld [vmem:[%s685 + $0x600] sm:%s678]
                  %1072 = vst [vmem:[%s686 + $0x300] sm:%s678] %v1071
                  %v1073 = vld [vmem:[%s685 + $0x608] sm:%s678]
                  %1074 = vst [vmem:[%s686 + $0x304] sm:%s678] %v1073
                  %v1075 = vld [vmem:[%s685 + $0x610] sm:%s678]
                  %1076 = vst [vmem:[%s686 + $0x308] sm:%s678] %v1075
                  %v1077 = vld [vmem:[%s685 + $0x618] sm:%s678]
                  %1078 = vst [vmem:[%s686 + $0x30c] sm:%s678] %v1077
                  %v1079 = vld [vmem:[%s685 + $0x620] sm:%s678]
                  %1080 = vst [vmem:[%s686 + $0x310] sm:%s678] %v1079
                  %v1081 = vld [vmem:[%s685 + $0x628] sm:%s678]
                  %1082 = vst [vmem:[%s686 + $0x314] sm:%s678] %v1081
                  %v1083 = vld [vmem:[%s685 + $0x630] sm:%s678]
                  %1084 = vst [vmem:[%s686 + $0x318] sm:%s678] %v1083
                  %v1085 = vld [vmem:[%s685 + $0x638] sm:%s678]
                  %1086 = vst [vmem:[%s686 + $0x31c] sm:%s678] %v1085
                  %v1087 = vld [vmem:[%s685 + $0x640] sm:%s678]
                  %1088 = vst [vmem:[%s686 + $0x320] sm:%s678] %v1087
                  %v1089 = vld [vmem:[%s685 + $0x648] sm:%s678]
                  %1090 = vst [vmem:[%s686 + $0x324] sm:%s678] %v1089
                  %v1091 = vld [vmem:[%s685 + $0x650] sm:%s678]
                  %1092 = vst [vmem:[%s686 + $0x328] sm:%s678] %v1091
                  %v1093 = vld [vmem:[%s685 + $0x658] sm:%s678]
                  %1094 = vst [vmem:[%s686 + $0x32c] sm:%s678] %v1093
                  %v1095 = vld [vmem:[%s685 + $0x660] sm:%s678]
                  %1096 = vst [vmem:[%s686 + $0x330] sm:%s678] %v1095
                  %v1097 = vld [vmem:[%s685 + $0x668] sm:%s678]
                  %1098 = vst [vmem:[%s686 + $0x334] sm:%s678] %v1097
                  %v1099 = vld [vmem:[%s685 + $0x670] sm:%s678]
                  %1100 = vst [vmem:[%s686 + $0x338] sm:%s678] %v1099
                  %v1101 = vld [vmem:[%s685 + $0x678] sm:%s678]
                  %1102 = vst [vmem:[%s686 + $0x33c] sm:%s678] %v1101
                  %v1103 = vld [vmem:[%s685 + $0x680] sm:%s678]
                  %1104 = vst [vmem:[%s686 + $0x340] sm:%s678] %v1103
                  %v1105 = vld [vmem:[%s685 + $0x688] sm:%s678]
                  %1106 = vst [vmem:[%s686 + $0x344] sm:%s678] %v1105
                  %v1107 = vld [vmem:[%s685 + $0x690] sm:%s678]
                  %1108 = vst [vmem:[%s686 + $0x348] sm:%s678] %v1107
                  %v1109 = vld [vmem:[%s685 + $0x698] sm:%s678]
                  %1110 = vst [vmem:[%s686 + $0x34c] sm:%s678] %v1109
                  %v1111 = vld [vmem:[%s685 + $0x6a0] sm:%s678]
                  %1112 = vst [vmem:[%s686 + $0x350] sm:%s678] %v1111
                  %v1113 = vld [vmem:[%s685 + $0x6a8] sm:%s678]
                  %1114 = vst [vmem:[%s686 + $0x354] sm:%s678] %v1113
                  %v1115 = vld [vmem:[%s685 + $0x6b0] sm:%s678]
                  %1116 = vst [vmem:[%s686 + $0x358] sm:%s678] %v1115
                  %v1117 = vld [vmem:[%s685 + $0x6b8] sm:%s678]
                  %1118 = vst [vmem:[%s686 + $0x35c] sm:%s678] %v1117
                  %v1119 = vld [vmem:[%s685 + $0x6c0] sm:%s678]
                  %1120 = vst [vmem:[%s686 + $0x360] sm:%s678] %v1119
                  %v1121 = vld [vmem:[%s685 + $0x6c8] sm:%s678]
                  %1122 = vst [vmem:[%s686 + $0x364] sm:%s678] %v1121
                  %v1123 = vld [vmem:[%s685 + $0x6d0] sm:%s678]
                  %1124 = vst [vmem:[%s686 + $0x368] sm:%s678] %v1123
                  %v1125 = vld [vmem:[%s685 + $0x6d8] sm:%s678]
                  %1126 = vst [vmem:[%s686 + $0x36c] sm:%s678] %v1125
                  %v1127 = vld [vmem:[%s685 + $0x6e0] sm:%s678]
                  %1128 = vst [vmem:[%s686 + $0x370] sm:%s678] %v1127
                  %v1129 = vld [vmem:[%s685 + $0x6e8] sm:%s678]
                  %1130 = vst [vmem:[%s686 + $0x374] sm:%s678] %v1129
                  %v1131 = vld [vmem:[%s685 + $0x6f0] sm:%s678]
                  %1132 = vst [vmem:[%s686 + $0x378] sm:%s678] %v1131
                  %v1133 = vld [vmem:[%s685 + $0x6f8] sm:%s678]
                  %1134 = vst [vmem:[%s686 + $0x37c] sm:%s678] %v1133
                  %v1135 = vld [vmem:[%s685 + $0x700] sm:%s678]
                  %1136 = vst [vmem:[%s686 + $0x380] sm:%s678] %v1135
                  %v1137 = vld [vmem:[%s685 + $0x708] sm:%s678]
                  %1138 = vst [vmem:[%s686 + $0x384] sm:%s678] %v1137
                  %v1139 = vld [vmem:[%s685 + $0x710] sm:%s678]
                  %1140 = vst [vmem:[%s686 + $0x388] sm:%s678] %v1139
                  %v1141 = vld [vmem:[%s685 + $0x718] sm:%s678]
                  %1142 = vst [vmem:[%s686 + $0x38c] sm:%s678] %v1141
                  %v1143 = vld [vmem:[%s685 + $0x720] sm:%s678]
                  %1144 = vst [vmem:[%s686 + $0x390] sm:%s678] %v1143
                  %v1145 = vld [vmem:[%s685 + $0x728] sm:%s678]
                  %1146 = vst [vmem:[%s686 + $0x394] sm:%s678] %v1145
                  %v1147 = vld [vmem:[%s685 + $0x730] sm:%s678]
                  %1148 = vst [vmem:[%s686 + $0x398] sm:%s678] %v1147
                  %v1149 = vld [vmem:[%s685 + $0x738] sm:%s678]
                  %1150 = vst [vmem:[%s686 + $0x39c] sm:%s678] %v1149
                  %v1151 = vld [vmem:[%s685 + $0x740] sm:%s678]
                  %1152 = vst [vmem:[%s686 + $0x3a0] sm:%s678] %v1151
                  %v1153 = vld [vmem:[%s685 + $0x748] sm:%s678]
                  %1154 = vst [vmem:[%s686 + $0x3a4] sm:%s678] %v1153
                  %v1155 = vld [vmem:[%s685 + $0x750] sm:%s678]
                  %1156 = vst [vmem:[%s686 + $0x3a8] sm:%s678] %v1155
                  %v1157 = vld [vmem:[%s685 + $0x758] sm:%s678]
                  %1158 = vst [vmem:[%s686 + $0x3ac] sm:%s678] %v1157
                  %v1159 = vld [vmem:[%s685 + $0x760] sm:%s678]
                  %1160 = vst [vmem:[%s686 + $0x3b0] sm:%s678] %v1159
                  %v1161 = vld [vmem:[%s685 + $0x768] sm:%s678]
                  %1162 = vst [vmem:[%s686 + $0x3b4] sm:%s678] %v1161
                  %v1163 = vld [vmem:[%s685 + $0x770] sm:%s678]
                  %1164 = vst [vmem:[%s686 + $0x3b8] sm:%s678] %v1163
                  %v1165 = vld [vmem:[%s685 + $0x778] sm:%s678]
                  %1166 = vst [vmem:[%s686 + $0x3bc] sm:%s678] %v1165
                  %v1167 = vld [vmem:[%s685 + $0x780] sm:%s678]
                  %1168 = vst [vmem:[%s686 + $0x3c0] sm:%s678] %v1167
                  %v1169 = vld [vmem:[%s685 + $0x788] sm:%s678]
                  %1170 = vst [vmem:[%s686 + $0x3c4] sm:%s678] %v1169
                  %v1171 = vld [vmem:[%s685 + $0x790] sm:%s678]
                  %1172 = vst [vmem:[%s686 + $0x3c8] sm:%s678] %v1171
                  %v1173 = vld [vmem:[%s685 + $0x798] sm:%s678]
                  %1174 = vst [vmem:[%s686 + $0x3cc] sm:%s678] %v1173
                  %v1175 = vld [vmem:[%s685 + $0x7a0] sm:%s678]
                  %1176 = vst [vmem:[%s686 + $0x3d0] sm:%s678] %v1175
                  %v1177 = vld [vmem:[%s685 + $0x7a8] sm:%s678]
                  %1178 = vst [vmem:[%s686 + $0x3d4] sm:%s678] %v1177
                  %v1179 = vld [vmem:[%s685 + $0x7b0] sm:%s678]
                  %1180 = vst [vmem:[%s686 + $0x3d8] sm:%s678] %v1179
                  %v1181 = vld [vmem:[%s685 + $0x7b8] sm:%s678]
                  %1182 = vst [vmem:[%s686 + $0x3dc] sm:%s678] %v1181
                  %v1183 = vld [vmem:[%s685 + $0x7c0] sm:%s678]
                  %1184 = vst [vmem:[%s686 + $0x3e0] sm:%s678] %v1183
                  %v1185 = vld [vmem:[%s685 + $0x7c8] sm:%s678]
                  %1186 = vst [vmem:[%s686 + $0x3e4] sm:%s678] %v1185
                  %v1187 = vld [vmem:[%s685 + $0x7d0] sm:%s678]
                  %1188 = vst [vmem:[%s686 + $0x3e8] sm:%s678] %v1187
                  %v1189 = vld [vmem:[%s685 + $0x7d8] sm:%s678]
                  %1190 = vst [vmem:[%s686 + $0x3ec] sm:%s678] %v1189
                  %v1191 = vld [vmem:[%s685 + $0x7e0] sm:%s678]
                  %1192 = vst [vmem:[%s686 + $0x3f0] sm:%s678] %v1191
                  %v1193 = vld [vmem:[%s685 + $0x7e8] sm:%s678]
                  %1194 = vst [vmem:[%s686 + $0x3f4] sm:%s678] %v1193
                  %v1195 = vld [vmem:[%s685 + $0x7f0] sm:%s678]
                  %1196 = vst [vmem:[%s686 + $0x3f8] sm:%s678] %v1195
                  %v1197 = vld [vmem:[%s685 + $0x7f8] sm:%s678]
                  %1198 = vst [vmem:[%s686 + $0x3fc] sm:%s678] %v1197
                $region59: #{bpnn_forward.3} parent=46 // loop_footer
                  %s684 = sadd.s32 1, %s680
                $region60: #{bpnn_forward.3} parent=46 // loop_footer_branch
                  %679 = sbr.rel target = $region56
                $region61: #{bpnn_forward.3} parent=46 // loop_exit
                  _
              $region47: #{bpnn_forward.3} parent=31 // pred_fallthru
                _
            $region32: #{bpnn_forward.3} parent=27 // pred_fallthru
              _
            // Predicated region
            $region33: #{bpnn_forward.3} parent=27 // pred_check
              _
            $region34: #{bpnn_forward.3} parent=27 // pred_check_branch
              %144 = sbr.rel (0) target = $region36
            $region35: #{bpnn_forward.3} parent=27 // pred_region
              %s146 = ssub.s32 16, 1
              loop: start=0, step=1, limit=1
              $region37: #{bpnn_forward.3} parent=35 // loop_pre_header
                _
              $region38: #{bpnn_forward.3} parent=35 // loop_header
                %s148 = sphi 0, %s152
                %p149 = scmp.ge.s32.totalorder %s148, 1
                %s153 = sphi %s138, %s138
                %s154 = sphi %s133, %s133
              $region39: #{bpnn_forward.3} parent=35 // loop_header_branch
                %151 = sbr.rel (%p149) target = $region43
              $region40: #{bpnn_forward.3} parent=35 // loop_body
                %v155 = vld [vmem:[%s153] sm:%s146]
                %156 = vst [vmem:[%s154] sm:%s146] %v155
                %v157 = vld [vmem:[%s153 + $0x8] sm:%s146]
                %158 = vst [vmem:[%s154 + $0x4] sm:%s146] %v157
                %v159 = vld [vmem:[%s153 + $0x10] sm:%s146]
                %160 = vst [vmem:[%s154 + $0x8] sm:%s146] %v159
                %v161 = vld [vmem:[%s153 + $0x18] sm:%s146]
                %162 = vst [vmem:[%s154 + $0xc] sm:%s146] %v161
                %v163 = vld [vmem:[%s153 + $0x20] sm:%s146]
                %164 = vst [vmem:[%s154 + $0x10] sm:%s146] %v163
                %v165 = vld [vmem:[%s153 + $0x28] sm:%s146]
                %166 = vst [vmem:[%s154 + $0x14] sm:%s146] %v165
                %v167 = vld [vmem:[%s153 + $0x30] sm:%s146]
                %168 = vst [vmem:[%s154 + $0x18] sm:%s146] %v167
                %v169 = vld [vmem:[%s153 + $0x38] sm:%s146]
                %170 = vst [vmem:[%s154 + $0x1c] sm:%s146] %v169
                %v171 = vld [vmem:[%s153 + $0x40] sm:%s146]
                %172 = vst [vmem:[%s154 + $0x20] sm:%s146] %v171
                %v173 = vld [vmem:[%s153 + $0x48] sm:%s146]
                %174 = vst [vmem:[%s154 + $0x24] sm:%s146] %v173
                %v175 = vld [vmem:[%s153 + $0x50] sm:%s146]
                %176 = vst [vmem:[%s154 + $0x28] sm:%s146] %v175
                %v177 = vld [vmem:[%s153 + $0x58] sm:%s146]
                %178 = vst [vmem:[%s154 + $0x2c] sm:%s146] %v177
                %v179 = vld [vmem:[%s153 + $0x60] sm:%s146]
                %180 = vst [vmem:[%s154 + $0x30] sm:%s146] %v179
                %v181 = vld [vmem:[%s153 + $0x68] sm:%s146]
                %182 = vst [vmem:[%s154 + $0x34] sm:%s146] %v181
                %v183 = vld [vmem:[%s153 + $0x70] sm:%s146]
                %184 = vst [vmem:[%s154 + $0x38] sm:%s146] %v183
                %v185 = vld [vmem:[%s153 + $0x78] sm:%s146]
                %186 = vst [vmem:[%s154 + $0x3c] sm:%s146] %v185
                %v187 = vld [vmem:[%s153 + $0x80] sm:%s146]
                %188 = vst [vmem:[%s154 + $0x40] sm:%s146] %v187
                %v189 = vld [vmem:[%s153 + $0x88] sm:%s146]
                %190 = vst [vmem:[%s154 + $0x44] sm:%s146] %v189
                %v191 = vld [vmem:[%s153 + $0x90] sm:%s146]
                %192 = vst [vmem:[%s154 + $0x48] sm:%s146] %v191
                %v193 = vld [vmem:[%s153 + $0x98] sm:%s146]
                %194 = vst [vmem:[%s154 + $0x4c] sm:%s146] %v193
                %v195 = vld [vmem:[%s153 + $0xa0] sm:%s146]
                %196 = vst [vmem:[%s154 + $0x50] sm:%s146] %v195
                %v197 = vld [vmem:[%s153 + $0xa8] sm:%s146]
                %198 = vst [vmem:[%s154 + $0x54] sm:%s146] %v197
                %v199 = vld [vmem:[%s153 + $0xb0] sm:%s146]
                %200 = vst [vmem:[%s154 + $0x58] sm:%s146] %v199
                %v201 = vld [vmem:[%s153 + $0xb8] sm:%s146]
                %202 = vst [vmem:[%s154 + $0x5c] sm:%s146] %v201
                %v203 = vld [vmem:[%s153 + $0xc0] sm:%s146]
                %204 = vst [vmem:[%s154 + $0x60] sm:%s146] %v203
                %v205 = vld [vmem:[%s153 + $0xc8] sm:%s146]
                %206 = vst [vmem:[%s154 + $0x64] sm:%s146] %v205
                %v207 = vld [vmem:[%s153 + $0xd0] sm:%s146]
                %208 = vst [vmem:[%s154 + $0x68] sm:%s146] %v207
                %v209 = vld [vmem:[%s153 + $0xd8] sm:%s146]
                %210 = vst [vmem:[%s154 + $0x6c] sm:%s146] %v209
                %v211 = vld [vmem:[%s153 + $0xe0] sm:%s146]
                %212 = vst [vmem:[%s154 + $0x70] sm:%s146] %v211
                %v213 = vld [vmem:[%s153 + $0xe8] sm:%s146]
                %214 = vst [vmem:[%s154 + $0x74] sm:%s146] %v213
                %v215 = vld [vmem:[%s153 + $0xf0] sm:%s146]
                %216 = vst [vmem:[%s154 + $0x78] sm:%s146] %v215
                %v217 = vld [vmem:[%s153 + $0xf8] sm:%s146]
                %218 = vst [vmem:[%s154 + $0x7c] sm:%s146] %v217
                %v219 = vld [vmem:[%s153 + $0x100] sm:%s146]
                %220 = vst [vmem:[%s154 + $0x80] sm:%s146] %v219
                %v221 = vld [vmem:[%s153 + $0x108] sm:%s146]
                %222 = vst [vmem:[%s154 + $0x84] sm:%s146] %v221
                %v223 = vld [vmem:[%s153 + $0x110] sm:%s146]
                %224 = vst [vmem:[%s154 + $0x88] sm:%s146] %v223
                %v225 = vld [vmem:[%s153 + $0x118] sm:%s146]
                %226 = vst [vmem:[%s154 + $0x8c] sm:%s146] %v225
                %v227 = vld [vmem:[%s153 + $0x120] sm:%s146]
                %228 = vst [vmem:[%s154 + $0x90] sm:%s146] %v227
                %v229 = vld [vmem:[%s153 + $0x128] sm:%s146]
                %230 = vst [vmem:[%s154 + $0x94] sm:%s146] %v229
                %v231 = vld [vmem:[%s153 + $0x130] sm:%s146]
                %232 = vst [vmem:[%s154 + $0x98] sm:%s146] %v231
                %v233 = vld [vmem:[%s153 + $0x138] sm:%s146]
                %234 = vst [vmem:[%s154 + $0x9c] sm:%s146] %v233
                %v235 = vld [vmem:[%s153 + $0x140] sm:%s146]
                %236 = vst [vmem:[%s154 + $0xa0] sm:%s146] %v235
                %v237 = vld [vmem:[%s153 + $0x148] sm:%s146]
                %238 = vst [vmem:[%s154 + $0xa4] sm:%s146] %v237
                %v239 = vld [vmem:[%s153 + $0x150] sm:%s146]
                %240 = vst [vmem:[%s154 + $0xa8] sm:%s146] %v239
                %v241 = vld [vmem:[%s153 + $0x158] sm:%s146]
                %242 = vst [vmem:[%s154 + $0xac] sm:%s146] %v241
                %v243 = vld [vmem:[%s153 + $0x160] sm:%s146]
                %244 = vst [vmem:[%s154 + $0xb0] sm:%s146] %v243
                %v245 = vld [vmem:[%s153 + $0x168] sm:%s146]
                %246 = vst [vmem:[%s154 + $0xb4] sm:%s146] %v245
                %v247 = vld [vmem:[%s153 + $0x170] sm:%s146]
                %248 = vst [vmem:[%s154 + $0xb8] sm:%s146] %v247
                %v249 = vld [vmem:[%s153 + $0x178] sm:%s146]
                %250 = vst [vmem:[%s154 + $0xbc] sm:%s146] %v249
                %v251 = vld [vmem:[%s153 + $0x180] sm:%s146]
                %252 = vst [vmem:[%s154 + $0xc0] sm:%s146] %v251
                %v253 = vld [vmem:[%s153 + $0x188] sm:%s146]
                %254 = vst [vmem:[%s154 + $0xc4] sm:%s146] %v253
                %v255 = vld [vmem:[%s153 + $0x190] sm:%s146]
                %256 = vst [vmem:[%s154 + $0xc8] sm:%s146] %v255
                %v257 = vld [vmem:[%s153 + $0x198] sm:%s146]
                %258 = vst [vmem:[%s154 + $0xcc] sm:%s146] %v257
                %v259 = vld [vmem:[%s153 + $0x1a0] sm:%s146]
                %260 = vst [vmem:[%s154 + $0xd0] sm:%s146] %v259
                %v261 = vld [vmem:[%s153 + $0x1a8] sm:%s146]
                %262 = vst [vmem:[%s154 + $0xd4] sm:%s146] %v261
                %v263 = vld [vmem:[%s153 + $0x1b0] sm:%s146]
                %264 = vst [vmem:[%s154 + $0xd8] sm:%s146] %v263
                %v265 = vld [vmem:[%s153 + $0x1b8] sm:%s146]
                %266 = vst [vmem:[%s154 + $0xdc] sm:%s146] %v265
                %v267 = vld [vmem:[%s153 + $0x1c0] sm:%s146]
                %268 = vst [vmem:[%s154 + $0xe0] sm:%s146] %v267
                %v269 = vld [vmem:[%s153 + $0x1c8] sm:%s146]
                %270 = vst [vmem:[%s154 + $0xe4] sm:%s146] %v269
                %v271 = vld [vmem:[%s153 + $0x1d0] sm:%s146]
                %272 = vst [vmem:[%s154 + $0xe8] sm:%s146] %v271
                %v273 = vld [vmem:[%s153 + $0x1d8] sm:%s146]
                %274 = vst [vmem:[%s154 + $0xec] sm:%s146] %v273
                %v275 = vld [vmem:[%s153 + $0x1e0] sm:%s146]
                %276 = vst [vmem:[%s154 + $0xf0] sm:%s146] %v275
                %v277 = vld [vmem:[%s153 + $0x1e8] sm:%s146]
                %278 = vst [vmem:[%s154 + $0xf4] sm:%s146] %v277
                %v279 = vld [vmem:[%s153 + $0x1f0] sm:%s146]
                %280 = vst [vmem:[%s154 + $0xf8] sm:%s146] %v279
                %v281 = vld [vmem:[%s153 + $0x1f8] sm:%s146]
                %282 = vst [vmem:[%s154 + $0xfc] sm:%s146] %v281
                %v283 = vld [vmem:[%s153 + $0x200] sm:%s146]
                %284 = vst [vmem:[%s154 + $0x100] sm:%s146] %v283
                %v285 = vld [vmem:[%s153 + $0x208] sm:%s146]
                %286 = vst [vmem:[%s154 + $0x104] sm:%s146] %v285
                %v287 = vld [vmem:[%s153 + $0x210] sm:%s146]
                %288 = vst [vmem:[%s154 + $0x108] sm:%s146] %v287
                %v289 = vld [vmem:[%s153 + $0x218] sm:%s146]
                %290 = vst [vmem:[%s154 + $0x10c] sm:%s146] %v289
                %v291 = vld [vmem:[%s153 + $0x220] sm:%s146]
                %292 = vst [vmem:[%s154 + $0x110] sm:%s146] %v291
                %v293 = vld [vmem:[%s153 + $0x228] sm:%s146]
                %294 = vst [vmem:[%s154 + $0x114] sm:%s146] %v293
                %v295 = vld [vmem:[%s153 + $0x230] sm:%s146]
                %296 = vst [vmem:[%s154 + $0x118] sm:%s146] %v295
                %v297 = vld [vmem:[%s153 + $0x238] sm:%s146]
                %298 = vst [vmem:[%s154 + $0x11c] sm:%s146] %v297
                %v299 = vld [vmem:[%s153 + $0x240] sm:%s146]
                %300 = vst [vmem:[%s154 + $0x120] sm:%s146] %v299
                %v301 = vld [vmem:[%s153 + $0x248] sm:%s146]
                %302 = vst [vmem:[%s154 + $0x124] sm:%s146] %v301
                %v303 = vld [vmem:[%s153 + $0x250] sm:%s146]
                %304 = vst [vmem:[%s154 + $0x128] sm:%s146] %v303
                %v305 = vld [vmem:[%s153 + $0x258] sm:%s146]
                %306 = vst [vmem:[%s154 + $0x12c] sm:%s146] %v305
                %v307 = vld [vmem:[%s153 + $0x260] sm:%s146]
                %308 = vst [vmem:[%s154 + $0x130] sm:%s146] %v307
                %v309 = vld [vmem:[%s153 + $0x268] sm:%s146]
                %310 = vst [vmem:[%s154 + $0x134] sm:%s146] %v309
                %v311 = vld [vmem:[%s153 + $0x270] sm:%s146]
                %312 = vst [vmem:[%s154 + $0x138] sm:%s146] %v311
                %v313 = vld [vmem:[%s153 + $0x278] sm:%s146]
                %314 = vst [vmem:[%s154 + $0x13c] sm:%s146] %v313
                %v315 = vld [vmem:[%s153 + $0x280] sm:%s146]
                %316 = vst [vmem:[%s154 + $0x140] sm:%s146] %v315
                %v317 = vld [vmem:[%s153 + $0x288] sm:%s146]
                %318 = vst [vmem:[%s154 + $0x144] sm:%s146] %v317
                %v319 = vld [vmem:[%s153 + $0x290] sm:%s146]
                %320 = vst [vmem:[%s154 + $0x148] sm:%s146] %v319
                %v321 = vld [vmem:[%s153 + $0x298] sm:%s146]
                %322 = vst [vmem:[%s154 + $0x14c] sm:%s146] %v321
                %v323 = vld [vmem:[%s153 + $0x2a0] sm:%s146]
                %324 = vst [vmem:[%s154 + $0x150] sm:%s146] %v323
                %v325 = vld [vmem:[%s153 + $0x2a8] sm:%s146]
                %326 = vst [vmem:[%s154 + $0x154] sm:%s146] %v325
                %v327 = vld [vmem:[%s153 + $0x2b0] sm:%s146]
                %328 = vst [vmem:[%s154 + $0x158] sm:%s146] %v327
                %v329 = vld [vmem:[%s153 + $0x2b8] sm:%s146]
                %330 = vst [vmem:[%s154 + $0x15c] sm:%s146] %v329
                %v331 = vld [vmem:[%s153 + $0x2c0] sm:%s146]
                %332 = vst [vmem:[%s154 + $0x160] sm:%s146] %v331
                %v333 = vld [vmem:[%s153 + $0x2c8] sm:%s146]
                %334 = vst [vmem:[%s154 + $0x164] sm:%s146] %v333
                %v335 = vld [vmem:[%s153 + $0x2d0] sm:%s146]
                %336 = vst [vmem:[%s154 + $0x168] sm:%s146] %v335
                %v337 = vld [vmem:[%s153 + $0x2d8] sm:%s146]
                %338 = vst [vmem:[%s154 + $0x16c] sm:%s146] %v337
                %v339 = vld [vmem:[%s153 + $0x2e0] sm:%s146]
                %340 = vst [vmem:[%s154 + $0x170] sm:%s146] %v339
                %v341 = vld [vmem:[%s153 + $0x2e8] sm:%s146]
                %342 = vst [vmem:[%s154 + $0x174] sm:%s146] %v341
                %v343 = vld [vmem:[%s153 + $0x2f0] sm:%s146]
                %344 = vst [vmem:[%s154 + $0x178] sm:%s146] %v343
                %v345 = vld [vmem:[%s153 + $0x2f8] sm:%s146]
                %346 = vst [vmem:[%s154 + $0x17c] sm:%s146] %v345
                %v347 = vld [vmem:[%s153 + $0x300] sm:%s146]
                %348 = vst [vmem:[%s154 + $0x180] sm:%s146] %v347
                %v349 = vld [vmem:[%s153 + $0x308] sm:%s146]
                %350 = vst [vmem:[%s154 + $0x184] sm:%s146] %v349
                %v351 = vld [vmem:[%s153 + $0x310] sm:%s146]
                %352 = vst [vmem:[%s154 + $0x188] sm:%s146] %v351
                %v353 = vld [vmem:[%s153 + $0x318] sm:%s146]
                %354 = vst [vmem:[%s154 + $0x18c] sm:%s146] %v353
                %v355 = vld [vmem:[%s153 + $0x320] sm:%s146]
                %356 = vst [vmem:[%s154 + $0x190] sm:%s146] %v355
                %v357 = vld [vmem:[%s153 + $0x328] sm:%s146]
                %358 = vst [vmem:[%s154 + $0x194] sm:%s146] %v357
                %v359 = vld [vmem:[%s153 + $0x330] sm:%s146]
                %360 = vst [vmem:[%s154 + $0x198] sm:%s146] %v359
                %v361 = vld [vmem:[%s153 + $0x338] sm:%s146]
                %362 = vst [vmem:[%s154 + $0x19c] sm:%s146] %v361
                %v363 = vld [vmem:[%s153 + $0x340] sm:%s146]
                %364 = vst [vmem:[%s154 + $0x1a0] sm:%s146] %v363
                %v365 = vld [vmem:[%s153 + $0x348] sm:%s146]
                %366 = vst [vmem:[%s154 + $0x1a4] sm:%s146] %v365
                %v367 = vld [vmem:[%s153 + $0x350] sm:%s146]
                %368 = vst [vmem:[%s154 + $0x1a8] sm:%s146] %v367
                %v369 = vld [vmem:[%s153 + $0x358] sm:%s146]
                %370 = vst [vmem:[%s154 + $0x1ac] sm:%s146] %v369
                %v371 = vld [vmem:[%s153 + $0x360] sm:%s146]
                %372 = vst [vmem:[%s154 + $0x1b0] sm:%s146] %v371
                %v373 = vld [vmem:[%s153 + $0x368] sm:%s146]
                %374 = vst [vmem:[%s154 + $0x1b4] sm:%s146] %v373
                %v375 = vld [vmem:[%s153 + $0x370] sm:%s146]
                %376 = vst [vmem:[%s154 + $0x1b8] sm:%s146] %v375
                %v377 = vld [vmem:[%s153 + $0x378] sm:%s146]
                %378 = vst [vmem:[%s154 + $0x1bc] sm:%s146] %v377
                %v379 = vld [vmem:[%s153 + $0x380] sm:%s146]
                %380 = vst [vmem:[%s154 + $0x1c0] sm:%s146] %v379
                %v381 = vld [vmem:[%s153 + $0x388] sm:%s146]
                %382 = vst [vmem:[%s154 + $0x1c4] sm:%s146] %v381
                %v383 = vld [vmem:[%s153 + $0x390] sm:%s146]
                %384 = vst [vmem:[%s154 + $0x1c8] sm:%s146] %v383
                %v385 = vld [vmem:[%s153 + $0x398] sm:%s146]
                %386 = vst [vmem:[%s154 + $0x1cc] sm:%s146] %v385
                %v387 = vld [vmem:[%s153 + $0x3a0] sm:%s146]
                %388 = vst [vmem:[%s154 + $0x1d0] sm:%s146] %v387
                %v389 = vld [vmem:[%s153 + $0x3a8] sm:%s146]
                %390 = vst [vmem:[%s154 + $0x1d4] sm:%s146] %v389
                %v391 = vld [vmem:[%s153 + $0x3b0] sm:%s146]
                %392 = vst [vmem:[%s154 + $0x1d8] sm:%s146] %v391
                %v393 = vld [vmem:[%s153 + $0x3b8] sm:%s146]
                %394 = vst [vmem:[%s154 + $0x1dc] sm:%s146] %v393
                %v395 = vld [vmem:[%s153 + $0x3c0] sm:%s146]
                %396 = vst [vmem:[%s154 + $0x1e0] sm:%s146] %v395
                %v397 = vld [vmem:[%s153 + $0x3c8] sm:%s146]
                %398 = vst [vmem:[%s154 + $0x1e4] sm:%s146] %v397
                %v399 = vld [vmem:[%s153 + $0x3d0] sm:%s146]
                %400 = vst [vmem:[%s154 + $0x1e8] sm:%s146] %v399
                %v401 = vld [vmem:[%s153 + $0x3d8] sm:%s146]
                %402 = vst [vmem:[%s154 + $0x1ec] sm:%s146] %v401
                %v403 = vld [vmem:[%s153 + $0x3e0] sm:%s146]
                %404 = vst [vmem:[%s154 + $0x1f0] sm:%s146] %v403
                %v405 = vld [vmem:[%s153 + $0x3e8] sm:%s146]
                %406 = vst [vmem:[%s154 + $0x1f4] sm:%s146] %v405
                %v407 = vld [vmem:[%s153 + $0x3f0] sm:%s146]
                %408 = vst [vmem:[%s154 + $0x1f8] sm:%s146] %v407
                %v409 = vld [vmem:[%s153 + $0x3f8] sm:%s146]
                %410 = vst [vmem:[%s154 + $0x1fc] sm:%s146] %v409
                %v411 = vld [vmem:[%s153 + $0x400] sm:%s146]
                %412 = vst [vmem:[%s154 + $0x200] sm:%s146] %v411
                %v413 = vld [vmem:[%s153 + $0x408] sm:%s146]
                %414 = vst [vmem:[%s154 + $0x204] sm:%s146] %v413
                %v415 = vld [vmem:[%s153 + $0x410] sm:%s146]
                %416 = vst [vmem:[%s154 + $0x208] sm:%s146] %v415
                %v417 = vld [vmem:[%s153 + $0x418] sm:%s146]
                %418 = vst [vmem:[%s154 + $0x20c] sm:%s146] %v417
                %v419 = vld [vmem:[%s153 + $0x420] sm:%s146]
                %420 = vst [vmem:[%s154 + $0x210] sm:%s146] %v419
                %v421 = vld [vmem:[%s153 + $0x428] sm:%s146]
                %422 = vst [vmem:[%s154 + $0x214] sm:%s146] %v421
                %v423 = vld [vmem:[%s153 + $0x430] sm:%s146]
                %424 = vst [vmem:[%s154 + $0x218] sm:%s146] %v423
                %v425 = vld [vmem:[%s153 + $0x438] sm:%s146]
                %426 = vst [vmem:[%s154 + $0x21c] sm:%s146] %v425
                %v427 = vld [vmem:[%s153 + $0x440] sm:%s146]
                %428 = vst [vmem:[%s154 + $0x220] sm:%s146] %v427
                %v429 = vld [vmem:[%s153 + $0x448] sm:%s146]
                %430 = vst [vmem:[%s154 + $0x224] sm:%s146] %v429
                %v431 = vld [vmem:[%s153 + $0x450] sm:%s146]
                %432 = vst [vmem:[%s154 + $0x228] sm:%s146] %v431
                %v433 = vld [vmem:[%s153 + $0x458] sm:%s146]
                %434 = vst [vmem:[%s154 + $0x22c] sm:%s146] %v433
                %v435 = vld [vmem:[%s153 + $0x460] sm:%s146]
                %436 = vst [vmem:[%s154 + $0x230] sm:%s146] %v435
                %v437 = vld [vmem:[%s153 + $0x468] sm:%s146]
                %438 = vst [vmem:[%s154 + $0x234] sm:%s146] %v437
                %v439 = vld [vmem:[%s153 + $0x470] sm:%s146]
                %440 = vst [vmem:[%s154 + $0x238] sm:%s146] %v439
                %v441 = vld [vmem:[%s153 + $0x478] sm:%s146]
                %442 = vst [vmem:[%s154 + $0x23c] sm:%s146] %v441
                %v443 = vld [vmem:[%s153 + $0x480] sm:%s146]
                %444 = vst [vmem:[%s154 + $0x240] sm:%s146] %v443
                %v445 = vld [vmem:[%s153 + $0x488] sm:%s146]
                %446 = vst [vmem:[%s154 + $0x244] sm:%s146] %v445
                %v447 = vld [vmem:[%s153 + $0x490] sm:%s146]
                %448 = vst [vmem:[%s154 + $0x248] sm:%s146] %v447
                %v449 = vld [vmem:[%s153 + $0x498] sm:%s146]
                %450 = vst [vmem:[%s154 + $0x24c] sm:%s146] %v449
                %v451 = vld [vmem:[%s153 + $0x4a0] sm:%s146]
                %452 = vst [vmem:[%s154 + $0x250] sm:%s146] %v451
                %v453 = vld [vmem:[%s153 + $0x4a8] sm:%s146]
                %454 = vst [vmem:[%s154 + $0x254] sm:%s146] %v453
                %v455 = vld [vmem:[%s153 + $0x4b0] sm:%s146]
                %456 = vst [vmem:[%s154 + $0x258] sm:%s146] %v455
                %v457 = vld [vmem:[%s153 + $0x4b8] sm:%s146]
                %458 = vst [vmem:[%s154 + $0x25c] sm:%s146] %v457
                %v459 = vld [vmem:[%s153 + $0x4c0] sm:%s146]
                %460 = vst [vmem:[%s154 + $0x260] sm:%s146] %v459
                %v461 = vld [vmem:[%s153 + $0x4c8] sm:%s146]
                %462 = vst [vmem:[%s154 + $0x264] sm:%s146] %v461
                %v463 = vld [vmem:[%s153 + $0x4d0] sm:%s146]
                %464 = vst [vmem:[%s154 + $0x268] sm:%s146] %v463
                %v465 = vld [vmem:[%s153 + $0x4d8] sm:%s146]
                %466 = vst [vmem:[%s154 + $0x26c] sm:%s146] %v465
                %v467 = vld [vmem:[%s153 + $0x4e0] sm:%s146]
                %468 = vst [vmem:[%s154 + $0x270] sm:%s146] %v467
                %v469 = vld [vmem:[%s153 + $0x4e8] sm:%s146]
                %470 = vst [vmem:[%s154 + $0x274] sm:%s146] %v469
                %v471 = vld [vmem:[%s153 + $0x4f0] sm:%s146]
                %472 = vst [vmem:[%s154 + $0x278] sm:%s146] %v471
                %v473 = vld [vmem:[%s153 + $0x4f8] sm:%s146]
                %474 = vst [vmem:[%s154 + $0x27c] sm:%s146] %v473
                %v475 = vld [vmem:[%s153 + $0x500] sm:%s146]
                %476 = vst [vmem:[%s154 + $0x280] sm:%s146] %v475
                %v477 = vld [vmem:[%s153 + $0x508] sm:%s146]
                %478 = vst [vmem:[%s154 + $0x284] sm:%s146] %v477
                %v479 = vld [vmem:[%s153 + $0x510] sm:%s146]
                %480 = vst [vmem:[%s154 + $0x288] sm:%s146] %v479
                %v481 = vld [vmem:[%s153 + $0x518] sm:%s146]
                %482 = vst [vmem:[%s154 + $0x28c] sm:%s146] %v481
                %v483 = vld [vmem:[%s153 + $0x520] sm:%s146]
                %484 = vst [vmem:[%s154 + $0x290] sm:%s146] %v483
                %v485 = vld [vmem:[%s153 + $0x528] sm:%s146]
                %486 = vst [vmem:[%s154 + $0x294] sm:%s146] %v485
                %v487 = vld [vmem:[%s153 + $0x530] sm:%s146]
                %488 = vst [vmem:[%s154 + $0x298] sm:%s146] %v487
                %v489 = vld [vmem:[%s153 + $0x538] sm:%s146]
                %490 = vst [vmem:[%s154 + $0x29c] sm:%s146] %v489
                %v491 = vld [vmem:[%s153 + $0x540] sm:%s146]
                %492 = vst [vmem:[%s154 + $0x2a0] sm:%s146] %v491
                %v493 = vld [vmem:[%s153 + $0x548] sm:%s146]
                %494 = vst [vmem:[%s154 + $0x2a4] sm:%s146] %v493
                %v495 = vld [vmem:[%s153 + $0x550] sm:%s146]
                %496 = vst [vmem:[%s154 + $0x2a8] sm:%s146] %v495
                %v497 = vld [vmem:[%s153 + $0x558] sm:%s146]
                %498 = vst [vmem:[%s154 + $0x2ac] sm:%s146] %v497
                %v499 = vld [vmem:[%s153 + $0x560] sm:%s146]
                %500 = vst [vmem:[%s154 + $0x2b0] sm:%s146] %v499
                %v501 = vld [vmem:[%s153 + $0x568] sm:%s146]
                %502 = vst [vmem:[%s154 + $0x2b4] sm:%s146] %v501
                %v503 = vld [vmem:[%s153 + $0x570] sm:%s146]
                %504 = vst [vmem:[%s154 + $0x2b8] sm:%s146] %v503
                %v505 = vld [vmem:[%s153 + $0x578] sm:%s146]
                %506 = vst [vmem:[%s154 + $0x2bc] sm:%s146] %v505
                %v507 = vld [vmem:[%s153 + $0x580] sm:%s146]
                %508 = vst [vmem:[%s154 + $0x2c0] sm:%s146] %v507
                %v509 = vld [vmem:[%s153 + $0x588] sm:%s146]
                %510 = vst [vmem:[%s154 + $0x2c4] sm:%s146] %v509
                %v511 = vld [vmem:[%s153 + $0x590] sm:%s146]
                %512 = vst [vmem:[%s154 + $0x2c8] sm:%s146] %v511
                %v513 = vld [vmem:[%s153 + $0x598] sm:%s146]
                %514 = vst [vmem:[%s154 + $0x2cc] sm:%s146] %v513
                %v515 = vld [vmem:[%s153 + $0x5a0] sm:%s146]
                %516 = vst [vmem:[%s154 + $0x2d0] sm:%s146] %v515
                %v517 = vld [vmem:[%s153 + $0x5a8] sm:%s146]
                %518 = vst [vmem:[%s154 + $0x2d4] sm:%s146] %v517
                %v519 = vld [vmem:[%s153 + $0x5b0] sm:%s146]
                %520 = vst [vmem:[%s154 + $0x2d8] sm:%s146] %v519
                %v521 = vld [vmem:[%s153 + $0x5b8] sm:%s146]
                %522 = vst [vmem:[%s154 + $0x2dc] sm:%s146] %v521
                %v523 = vld [vmem:[%s153 + $0x5c0] sm:%s146]
                %524 = vst [vmem:[%s154 + $0x2e0] sm:%s146] %v523
                %v525 = vld [vmem:[%s153 + $0x5c8] sm:%s146]
                %526 = vst [vmem:[%s154 + $0x2e4] sm:%s146] %v525
                %v527 = vld [vmem:[%s153 + $0x5d0] sm:%s146]
                %528 = vst [vmem:[%s154 + $0x2e8] sm:%s146] %v527
                %v529 = vld [vmem:[%s153 + $0x5d8] sm:%s146]
                %530 = vst [vmem:[%s154 + $0x2ec] sm:%s146] %v529
                %v531 = vld [vmem:[%s153 + $0x5e0] sm:%s146]
                %532 = vst [vmem:[%s154 + $0x2f0] sm:%s146] %v531
                %v533 = vld [vmem:[%s153 + $0x5e8] sm:%s146]
                %534 = vst [vmem:[%s154 + $0x2f4] sm:%s146] %v533
                %v535 = vld [vmem:[%s153 + $0x5f0] sm:%s146]
                %536 = vst [vmem:[%s154 + $0x2f8] sm:%s146] %v535
                %v537 = vld [vmem:[%s153 + $0x5f8] sm:%s146]
                %538 = vst [vmem:[%s154 + $0x2fc] sm:%s146] %v537
                %v539 = vld [vmem:[%s153 + $0x600] sm:%s146]
                %540 = vst [vmem:[%s154 + $0x300] sm:%s146] %v539
                %v541 = vld [vmem:[%s153 + $0x608] sm:%s146]
                %542 = vst [vmem:[%s154 + $0x304] sm:%s146] %v541
                %v543 = vld [vmem:[%s153 + $0x610] sm:%s146]
                %544 = vst [vmem:[%s154 + $0x308] sm:%s146] %v543
                %v545 = vld [vmem:[%s153 + $0x618] sm:%s146]
                %546 = vst [vmem:[%s154 + $0x30c] sm:%s146] %v545
                %v547 = vld [vmem:[%s153 + $0x620] sm:%s146]
                %548 = vst [vmem:[%s154 + $0x310] sm:%s146] %v547
                %v549 = vld [vmem:[%s153 + $0x628] sm:%s146]
                %550 = vst [vmem:[%s154 + $0x314] sm:%s146] %v549
                %v551 = vld [vmem:[%s153 + $0x630] sm:%s146]
                %552 = vst [vmem:[%s154 + $0x318] sm:%s146] %v551
                %v553 = vld [vmem:[%s153 + $0x638] sm:%s146]
                %554 = vst [vmem:[%s154 + $0x31c] sm:%s146] %v553
                %v555 = vld [vmem:[%s153 + $0x640] sm:%s146]
                %556 = vst [vmem:[%s154 + $0x320] sm:%s146] %v555
                %v557 = vld [vmem:[%s153 + $0x648] sm:%s146]
                %558 = vst [vmem:[%s154 + $0x324] sm:%s146] %v557
                %v559 = vld [vmem:[%s153 + $0x650] sm:%s146]
                %560 = vst [vmem:[%s154 + $0x328] sm:%s146] %v559
                %v561 = vld [vmem:[%s153 + $0x658] sm:%s146]
                %562 = vst [vmem:[%s154 + $0x32c] sm:%s146] %v561
                %v563 = vld [vmem:[%s153 + $0x660] sm:%s146]
                %564 = vst [vmem:[%s154 + $0x330] sm:%s146] %v563
                %v565 = vld [vmem:[%s153 + $0x668] sm:%s146]
                %566 = vst [vmem:[%s154 + $0x334] sm:%s146] %v565
                %v567 = vld [vmem:[%s153 + $0x670] sm:%s146]
                %568 = vst [vmem:[%s154 + $0x338] sm:%s146] %v567
                %v569 = vld [vmem:[%s153 + $0x678] sm:%s146]
                %570 = vst [vmem:[%s154 + $0x33c] sm:%s146] %v569
                %v571 = vld [vmem:[%s153 + $0x680] sm:%s146]
                %572 = vst [vmem:[%s154 + $0x340] sm:%s146] %v571
                %v573 = vld [vmem:[%s153 + $0x688] sm:%s146]
                %574 = vst [vmem:[%s154 + $0x344] sm:%s146] %v573
                %v575 = vld [vmem:[%s153 + $0x690] sm:%s146]
                %576 = vst [vmem:[%s154 + $0x348] sm:%s146] %v575
                %v577 = vld [vmem:[%s153 + $0x698] sm:%s146]
                %578 = vst [vmem:[%s154 + $0x34c] sm:%s146] %v577
                %v579 = vld [vmem:[%s153 + $0x6a0] sm:%s146]
                %580 = vst [vmem:[%s154 + $0x350] sm:%s146] %v579
                %v581 = vld [vmem:[%s153 + $0x6a8] sm:%s146]
                %582 = vst [vmem:[%s154 + $0x354] sm:%s146] %v581
                %v583 = vld [vmem:[%s153 + $0x6b0] sm:%s146]
                %584 = vst [vmem:[%s154 + $0x358] sm:%s146] %v583
                %v585 = vld [vmem:[%s153 + $0x6b8] sm:%s146]
                %586 = vst [vmem:[%s154 + $0x35c] sm:%s146] %v585
                %v587 = vld [vmem:[%s153 + $0x6c0] sm:%s146]
                %588 = vst [vmem:[%s154 + $0x360] sm:%s146] %v587
                %v589 = vld [vmem:[%s153 + $0x6c8] sm:%s146]
                %590 = vst [vmem:[%s154 + $0x364] sm:%s146] %v589
                %v591 = vld [vmem:[%s153 + $0x6d0] sm:%s146]
                %592 = vst [vmem:[%s154 + $0x368] sm:%s146] %v591
                %v593 = vld [vmem:[%s153 + $0x6d8] sm:%s146]
                %594 = vst [vmem:[%s154 + $0x36c] sm:%s146] %v593
                %v595 = vld [vmem:[%s153 + $0x6e0] sm:%s146]
                %596 = vst [vmem:[%s154 + $0x370] sm:%s146] %v595
                %v597 = vld [vmem:[%s153 + $0x6e8] sm:%s146]
                %598 = vst [vmem:[%s154 + $0x374] sm:%s146] %v597
                %v599 = vld [vmem:[%s153 + $0x6f0] sm:%s146]
                %600 = vst [vmem:[%s154 + $0x378] sm:%s146] %v599
                %v601 = vld [vmem:[%s153 + $0x6f8] sm:%s146]
                %602 = vst [vmem:[%s154 + $0x37c] sm:%s146] %v601
                %v603 = vld [vmem:[%s153 + $0x700] sm:%s146]
                %604 = vst [vmem:[%s154 + $0x380] sm:%s146] %v603
                %v605 = vld [vmem:[%s153 + $0x708] sm:%s146]
                %606 = vst [vmem:[%s154 + $0x384] sm:%s146] %v605
                %v607 = vld [vmem:[%s153 + $0x710] sm:%s146]
                %608 = vst [vmem:[%s154 + $0x388] sm:%s146] %v607
                %v609 = vld [vmem:[%s153 + $0x718] sm:%s146]
                %610 = vst [vmem:[%s154 + $0x38c] sm:%s146] %v609
                %v611 = vld [vmem:[%s153 + $0x720] sm:%s146]
                %612 = vst [vmem:[%s154 + $0x390] sm:%s146] %v611
                %v613 = vld [vmem:[%s153 + $0x728] sm:%s146]
                %614 = vst [vmem:[%s154 + $0x394] sm:%s146] %v613
                %v615 = vld [vmem:[%s153 + $0x730] sm:%s146]
                %616 = vst [vmem:[%s154 + $0x398] sm:%s146] %v615
                %v617 = vld [vmem:[%s153 + $0x738] sm:%s146]
                %618 = vst [vmem:[%s154 + $0x39c] sm:%s146] %v617
                %v619 = vld [vmem:[%s153 + $0x740] sm:%s146]
                %620 = vst [vmem:[%s154 + $0x3a0] sm:%s146] %v619
                %v621 = vld [vmem:[%s153 + $0x748] sm:%s146]
                %622 = vst [vmem:[%s154 + $0x3a4] sm:%s146] %v621
                %v623 = vld [vmem:[%s153 + $0x750] sm:%s146]
                %624 = vst [vmem:[%s154 + $0x3a8] sm:%s146] %v623
                %v625 = vld [vmem:[%s153 + $0x758] sm:%s146]
                %626 = vst [vmem:[%s154 + $0x3ac] sm:%s146] %v625
                %v627 = vld [vmem:[%s153 + $0x760] sm:%s146]
                %628 = vst [vmem:[%s154 + $0x3b0] sm:%s146] %v627
                %v629 = vld [vmem:[%s153 + $0x768] sm:%s146]
                %630 = vst [vmem:[%s154 + $0x3b4] sm:%s146] %v629
                %v631 = vld [vmem:[%s153 + $0x770] sm:%s146]
                %632 = vst [vmem:[%s154 + $0x3b8] sm:%s146] %v631
                %v633 = vld [vmem:[%s153 + $0x778] sm:%s146]
                %634 = vst [vmem:[%s154 + $0x3bc] sm:%s146] %v633
                %v635 = vld [vmem:[%s153 + $0x780] sm:%s146]
                %636 = vst [vmem:[%s154 + $0x3c0] sm:%s146] %v635
                %v637 = vld [vmem:[%s153 + $0x788] sm:%s146]
                %638 = vst [vmem:[%s154 + $0x3c4] sm:%s146] %v637
                %v639 = vld [vmem:[%s153 + $0x790] sm:%s146]
                %640 = vst [vmem:[%s154 + $0x3c8] sm:%s146] %v639
                %v641 = vld [vmem:[%s153 + $0x798] sm:%s146]
                %642 = vst [vmem:[%s154 + $0x3cc] sm:%s146] %v641
                %v643 = vld [vmem:[%s153 + $0x7a0] sm:%s146]
                %644 = vst [vmem:[%s154 + $0x3d0] sm:%s146] %v643
                %v645 = vld [vmem:[%s153 + $0x7a8] sm:%s146]
                %646 = vst [vmem:[%s154 + $0x3d4] sm:%s146] %v645
                %v647 = vld [vmem:[%s153 + $0x7b0] sm:%s146]
                %648 = vst [vmem:[%s154 + $0x3d8] sm:%s146] %v647
                %v649 = vld [vmem:[%s153 + $0x7b8] sm:%s146]
                %650 = vst [vmem:[%s154 + $0x3dc] sm:%s146] %v649
                %v651 = vld [vmem:[%s153 + $0x7c0] sm:%s146]
                %652 = vst [vmem:[%s154 + $0x3e0] sm:%s146] %v651
                %v653 = vld [vmem:[%s153 + $0x7c8] sm:%s146]
                %654 = vst [vmem:[%s154 + $0x3e4] sm:%s146] %v653
                %v655 = vld [vmem:[%s153 + $0x7d0] sm:%s146]
                %656 = vst [vmem:[%s154 + $0x3e8] sm:%s146] %v655
                %v657 = vld [vmem:[%s153 + $0x7d8] sm:%s146]
                %658 = vst [vmem:[%s154 + $0x3ec] sm:%s146] %v657
                %v659 = vld [vmem:[%s153 + $0x7e0] sm:%s146]
                %660 = vst [vmem:[%s154 + $0x3f0] sm:%s146] %v659
                %v661 = vld [vmem:[%s153 + $0x7e8] sm:%s146]
                %662 = vst [vmem:[%s154 + $0x3f4] sm:%s146] %v661
                %v663 = vld [vmem:[%s153 + $0x7f0] sm:%s146]
                %664 = vst [vmem:[%s154 + $0x3f8] sm:%s146] %v663
                %v665 = vld [vmem:[%s153 + $0x7f8] sm:%s146]
                %666 = vst [vmem:[%s154 + $0x3fc] sm:%s146] %v665
              $region41: #{bpnn_forward.3} parent=35 // loop_footer
                %s152 = sadd.s32 1, %s148
              $region42: #{bpnn_forward.3} parent=35 // loop_footer_branch
                %147 = sbr.rel target = $region38
              $region43: #{bpnn_forward.3} parent=35 // loop_exit
                _
            $region36: #{bpnn_forward.3} parent=27 // pred_fallthru
              _
          $region28: #{bpnn_forward.3} parent=23 // pred_fallthru
            _
          %1199 = vnop
        $region24: #{bpnn_forward.3} parent=15 // pred_fallthru
          _
      $region16: #{bpnn_forward.3} parent=5 // pred_fallthru
        _
      %p1200 = scmp.le.s32.totalorder 1, %s8
      %p1201 = scmp.lt.s32.totalorder %s8, 9
      %p1202 = pnand %p1200, %p1201
      %p1203 = pneg %p1202
      // Predicated region
      $region62: #{bpnn_forward.3} parent=5 // pred_check
        _
      $region63: #{bpnn_forward.3} parent=5 // pred_check_branch
        %1205 = sbr.rel (%p1202) target = $region65
      $region64: #{bpnn_forward.3} parent=5 // pred_region
        %s1206 = ssub.s32 %s8, 1
        %s1207 = sand.u32 %s61, 1
        %s1208 = sand.u32 %s61, 1
        %s1209 = smul.addr %s1208, 1024
        %s1210 = scalar_lea.vmem [#allocation3], %s1209
        // Predicated region
        $region66: #{bpnn_forward.3} parent=64 // pred_check
          %p1211 = pneg %p74
        $region67: #{bpnn_forward.3} parent=64 // pred_check_branch
          %1213 = sbr.rel (%p1211) target = $region69
        $region68: #{bpnn_forward.3} parent=64 // pred_region
          _
        $region69: #{bpnn_forward.3} parent=64 // pred_fallthru
          _
        %s1214 = smul.u32 16, %s18
        %p1215 = scmp.lt.s32.totalorder %s1214, 63
        %s1216 = scalar_select %p1215, %s1214, 63
        %s1217 = scalar_lea.vmem %s0, %s1216
        %p1218 = pneg %p46
        %p1219 = pneg %p43
        %s1220 = sand.u32 %s61, 1
        %s1221 = sand.u32 %s61, 1
        %s1222 = smul.addr %s1221, 1024
        %s1223 = scalar_lea.vmem [#allocation3], %s1222
        %p1224 = pneg %p74
        %p1225 = pneg %p71
        %p1226 = pneg %p100
        %p1227 = pneg %p97
        %p1228 = scmp.lt.s32.totalorder %s17, 1
        %s1229 = scalar_select %p1228, %s17, 1
        %s1230 = scalar_lea.vmem %s2, %s1229
        %s1231 = smul.u32 16, %s18
        %p1232 = scmp.lt.s32.totalorder %s1231, 63
        %s1233 = scalar_select %p1232, %s1231, 63
        %s1234 = scalar_lea.vmem %s0, %s1233
        %s1235 = smul.u32 16, %s18
        %s1236 = smul.u32 256, %s18
        %p1237 = scmp.lt.s32.totalorder %s17, 1
        %s1238 = scalar_select %p1237, %s17, 1
        %s1239 = scalar_lea.vmem %s2, %s1238
        %p1241 = scmp.eq.s32.totalorder %s18, 0
        // Predicated region
        $region70: #{bpnn_forward.3} parent=64 // pred_check
          %p1242 = pneg %p1241
        $region71: #{bpnn_forward.3} parent=64 // pred_check_branch
          %1244 = sbr.rel (%p1242) target = $region73
        $region72: #{bpnn_forward.3} parent=64 // pred_region
          %1245 = vst [vmem:[#allocation2] sm:$0x1] 0.0
        $region73: #{bpnn_forward.3} parent=64 // pred_fallthru
          _
        %v1246 = vld [vmem:[#allocation2] sm:$0x1]
        %v1247 = vld [vmem:[%s1234] sm:$0xff]
        %v1248 = vld [vmem:[%s1234 + $0x8] sm:$0xff]
        %v1249 = vld [vmem:[%s1210] sm:$0xf]
        %v1250 = vld [vmem:[%s1210 + $0x4] sm:$0xf]
        %v1251 = vld [vmem:[%s1210 + $0x8] sm:$0xf]
        %v1252 = vld [vmem:[%s1210 + $0xc] sm:$0xf]
        %v1253 = vld [vmem:[%s1210 + $0x10] sm:$0xf]
        %v1254 = vld [vmem:[%s1210 + $0x14] sm:$0xf]
        %v1255 = vld [vmem:[%s1210 + $0x18] sm:$0xf]
        %v1256 = vld [vmem:[%s1210 + $0x1c] sm:$0xf]
        %v1257 = vld [vmem:[%s1210 + $0x20] sm:$0xf]
        %v1258 = vld [vmem:[%s1210 + $0x24] sm:$0xf]
        %v1259 = vld [vmem:[%s1210 + $0x28] sm:$0xf]
        %v1260 = vld [vmem:[%s1210 + $0x2c] sm:$0xf]
        %v1261 = vld [vmem:[%s1210 + $0x30] sm:$0xf]
        %v1262 = vld [vmem:[%s1210 + $0x34] sm:$0xf]
        %v1263 = vld [vmem:[%s1210 + $0x38] sm:$0xf]
        %v1264 = vld [vmem:[%s1210 + $0x3c] sm:$0xf]
        %v1265 = vld [vmem:[%s1210 + $0x40] sm:$0xf]
        %v1266 = vld [vmem:[%s1210 + $0x44] sm:$0xf]
        %v1267 = vld [vmem:[%s1210 + $0x48] sm:$0xf]
        %v1268 = vld [vmem:[%s1210 + $0x4c] sm:$0xf]
        %v1269 = vld [vmem:[%s1210 + $0x50] sm:$0xf]
        %v1270 = vld [vmem:[%s1210 + $0x54] sm:$0xf]
        %v1271 = vld [vmem:[%s1210 + $0x58] sm:$0xf]
        %v1272 = vld [vmem:[%s1210 + $0x5c] sm:$0xf]
        %v1273 = vld [vmem:[%s1210 + $0x60] sm:$0xf]
        %v1274 = vld [vmem:[%s1210 + $0x64] sm:$0xf]
        %v1275 = vld [vmem:[%s1210 + $0x68] sm:$0xf]
        %v1276 = vld [vmem:[%s1210 + $0x6c] sm:$0xf]
        %v1277 = vld [vmem:[%s1210 + $0x70] sm:$0xf]
        %v1278 = vld [vmem:[%s1210 + $0x74] sm:$0xf]
        %v1279 = vld [vmem:[%s1210 + $0x78] sm:$0xf]
        %v1280 = vld [vmem:[%s1210 + $0x7c] sm:$0xf]
        %v1281 = vld [vmem:[%s1210 + $0x80] sm:$0xf]
        %v1282 = vld [vmem:[%s1210 + $0x84] sm:$0xf]
        %v1283 = vld [vmem:[%s1210 + $0x88] sm:$0xf]
        %v1284 = vld [vmem:[%s1210 + $0x8c] sm:$0xf]
        %v1285 = vld [vmem:[%s1210 + $0x90] sm:$0xf]
        %v1286 = vld [vmem:[%s1210 + $0x94] sm:$0xf]
        %v1287 = vld [vmem:[%s1210 + $0x98] sm:$0xf]
        %v1288 = vld [vmem:[%s1210 + $0x9c] sm:$0xf]
        %v1289 = vld [vmem:[%s1210 + $0xa0] sm:$0xf]
        %v1290 = vld [vmem:[%s1210 + $0xa4] sm:$0xf]
        %v1291 = vld [vmem:[%s1210 + $0xa8] sm:$0xf]
        %v1292 = vld [vmem:[%s1210 + $0xac] sm:$0xf]
        %v1293 = vld [vmem:[%s1210 + $0xb0] sm:$0xf]
        %v1294 = vld [vmem:[%s1210 + $0xb4] sm:$0xf]
        %v1295 = vld [vmem:[%s1210 + $0xb8] sm:$0xf]
        %v1296 = vld [vmem:[%s1210 + $0xbc] sm:$0xf]
        %v1297 = vld [vmem:[%s1210 + $0xc0] sm:$0xf]
        %v1298 = vld [vmem:[%s1210 + $0xc4] sm:$0xf]
        %v1299 = vld [vmem:[%s1210 + $0xc8] sm:$0xf]
        %v1300 = vld [vmem:[%s1210 + $0xcc] sm:$0xf]
        %v1301 = vld [vmem:[%s1210 + $0xd0] sm:$0xf]
        %v1302 = vld [vmem:[%s1210 + $0xd4] sm:$0xf]
        %v1303 = vld [vmem:[%s1210 + $0xd8] sm:$0xf]
        %v1304 = vld [vmem:[%s1210 + $0xdc] sm:$0xf]
        %v1305 = vld [vmem:[%s1210 + $0xe0] sm:$0xf]
        %v1306 = vld [vmem:[%s1210 + $0xe4] sm:$0xf]
        %v1307 = vld [vmem:[%s1210 + $0xe8] sm:$0xf]
        %v1308 = vld [vmem:[%s1210 + $0xec] sm:$0xf]
        %v1309 = vld [vmem:[%s1210 + $0xf0] sm:$0xf]
        %v1310 = vld [vmem:[%s1210 + $0xf4] sm:$0xf]
        %v1311 = vld [vmem:[%s1210 + $0xf8] sm:$0xf]
        %v1312 = vld [vmem:[%s1210 + $0xfc] sm:$0xf]
        %v1313 = vld [vmem:[%s1210 + $0x100] sm:$0xf]
        %v1314 = vld [vmem:[%s1210 + $0x104] sm:$0xf]
        %v1315 = vld [vmem:[%s1210 + $0x108] sm:$0xf]
        %v1316 = vld [vmem:[%s1210 + $0x10c] sm:$0xf]
        %v1317 = vld [vmem:[%s1210 + $0x110] sm:$0xf]
        %v1318 = vld [vmem:[%s1210 + $0x114] sm:$0xf]
        %v1319 = vld [vmem:[%s1210 + $0x118] sm:$0xf]
        %v1320 = vld [vmem:[%s1210 + $0x11c] sm:$0xf]
        %v1321 = vld [vmem:[%s1210 + $0x120] sm:$0xf]
        %v1322 = vld [vmem:[%s1210 + $0x124] sm:$0xf]
        %v1323 = vld [vmem:[%s1210 + $0x128] sm:$0xf]
        %v1324 = vld [vmem:[%s1210 + $0x12c] sm:$0xf]
        %v1325 = vld [vmem:[%s1210 + $0x130] sm:$0xf]
        %v1326 = vld [vmem:[%s1210 + $0x134] sm:$0xf]
        %v1327 = vld [vmem:[%s1210 + $0x138] sm:$0xf]
        %v1328 = vld [vmem:[%s1210 + $0x13c] sm:$0xf]
        %v1329 = vld [vmem:[%s1210 + $0x140] sm:$0xf]
        %v1330 = vld [vmem:[%s1210 + $0x144] sm:$0xf]
        %v1331 = vld [vmem:[%s1210 + $0x148] sm:$0xf]
        %v1332 = vld [vmem:[%s1210 + $0x14c] sm:$0xf]
        %v1333 = vld [vmem:[%s1210 + $0x150] sm:$0xf]
        %v1334 = vld [vmem:[%s1210 + $0x154] sm:$0xf]
        %v1335 = vld [vmem:[%s1210 + $0x158] sm:$0xf]
        %v1336 = vld [vmem:[%s1210 + $0x15c] sm:$0xf]
        %v1337 = vld [vmem:[%s1210 + $0x160] sm:$0xf]
        %v1338 = vld [vmem:[%s1210 + $0x164] sm:$0xf]
        %v1339 = vld [vmem:[%s1210 + $0x168] sm:$0xf]
        %v1340 = vld [vmem:[%s1210 + $0x16c] sm:$0xf]
        %v1341 = vld [vmem:[%s1210 + $0x170] sm:$0xf]
        %v1342 = vld [vmem:[%s1210 + $0x174] sm:$0xf]
        %v1343 = vld [vmem:[%s1210 + $0x178] sm:$0xf]
        %v1344 = vld [vmem:[%s1210 + $0x17c] sm:$0xf]
        %v1345 = vld [vmem:[%s1210 + $0x180] sm:$0xf]
        %v1346 = vld [vmem:[%s1210 + $0x184] sm:$0xf]
        %v1347 = vld [vmem:[%s1210 + $0x188] sm:$0xf]
        %v1348 = vld [vmem:[%s1210 + $0x18c] sm:$0xf]
        %v1349 = vld [vmem:[%s1210 + $0x190] sm:$0xf]
        %v1350 = vld [vmem:[%s1210 + $0x194] sm:$0xf]
        %v1351 = vld [vmem:[%s1210 + $0x198] sm:$0xf]
        %v1352 = vld [vmem:[%s1210 + $0x19c] sm:$0xf]
        %v1353 = vld [vmem:[%s1210 + $0x1a0] sm:$0xf]
        %v1354 = vld [vmem:[%s1210 + $0x1a4] sm:$0xf]
        %v1355 = vld [vmem:[%s1210 + $0x1a8] sm:$0xf]
        %v1356 = vld [vmem:[%s1210 + $0x1ac] sm:$0xf]
        %v1357 = vld [vmem:[%s1210 + $0x1b0] sm:$0xf]
        %v1358 = vld [vmem:[%s1210 + $0x1b4] sm:$0xf]
        %v1359 = vld [vmem:[%s1210 + $0x1b8] sm:$0xf]
        %v1360 = vld [vmem:[%s1210 + $0x1bc] sm:$0xf]
        %v1361 = vld [vmem:[%s1210 + $0x1c0] sm:$0xf]
        %v1362 = vld [vmem:[%s1210 + $0x1c4] sm:$0xf]
        %v1363 = vld [vmem:[%s1210 + $0x1c8] sm:$0xf]
        %v1364 = vld [vmem:[%s1210 + $0x1cc] sm:$0xf]
        %v1365 = vld [vmem:[%s1210 + $0x1d0] sm:$0xf]
        %v1366 = vld [vmem:[%s1210 + $0x1d4] sm:$0xf]
        %v1367 = vld [vmem:[%s1210 + $0x1d8] sm:$0xf]
        %v1368 = vld [vmem:[%s1210 + $0x1dc] sm:$0xf]
        %v1369 = vld [vmem:[%s1210 + $0x1e0] sm:$0xf]
        %v1370 = vld [vmem:[%s1210 + $0x1e4] sm:$0xf]
        %v1371 = vld [vmem:[%s1210 + $0x1e8] sm:$0xf]
        %v1372 = vld [vmem:[%s1210 + $0x1ec] sm:$0xf]
        %v1373 = vld [vmem:[%s1210 + $0x1f0] sm:$0xf]
        %v1374 = vld [vmem:[%s1210 + $0x1f4] sm:$0xf]
        %v1375 = vld [vmem:[%s1210 + $0x1f8] sm:$0xf]
        %v1376 = vld [vmem:[%s1210 + $0x1fc] sm:$0xf]
        %v1377 = vld [vmem:[%s1210 + $0x200] sm:$0xf]
        %v1378 = vld [vmem:[%s1210 + $0x204] sm:$0xf]
        %v1379 = vld [vmem:[%s1210 + $0x208] sm:$0xf]
        %v1380 = vld [vmem:[%s1210 + $0x20c] sm:$0xf]
        %v1381 = vld [vmem:[%s1210 + $0x210] sm:$0xf]
        %v1382 = vld [vmem:[%s1210 + $0x214] sm:$0xf]
        %v1383 = vld [vmem:[%s1210 + $0x218] sm:$0xf]
        %v1384 = vld [vmem:[%s1210 + $0x21c] sm:$0xf]
        %v1385 = vld [vmem:[%s1210 + $0x220] sm:$0xf]
        %v1386 = vld [vmem:[%s1210 + $0x224] sm:$0xf]
        %v1387 = vld [vmem:[%s1210 + $0x228] sm:$0xf]
        %v1388 = vld [vmem:[%s1210 + $0x22c] sm:$0xf]
        %v1389 = vld [vmem:[%s1210 + $0x230] sm:$0xf]
        %v1390 = vld [vmem:[%s1210 + $0x234] sm:$0xf]
        %v1391 = vld [vmem:[%s1210 + $0x238] sm:$0xf]
        %v1392 = vld [vmem:[%s1210 + $0x23c] sm:$0xf]
        %v1393 = vld [vmem:[%s1210 + $0x240] sm:$0xf]
        %v1394 = vld [vmem:[%s1210 + $0x244] sm:$0xf]
        %v1395 = vld [vmem:[%s1210 + $0x248] sm:$0xf]
        %v1396 = vld [vmem:[%s1210 + $0x24c] sm:$0xf]
        %v1397 = vld [vmem:[%s1210 + $0x250] sm:$0xf]
        %v1398 = vld [vmem:[%s1210 + $0x254] sm:$0xf]
        %v1399 = vld [vmem:[%s1210 + $0x258] sm:$0xf]
        %v1400 = vld [vmem:[%s1210 + $0x25c] sm:$0xf]
        %v1401 = vld [vmem:[%s1210 + $0x260] sm:$0xf]
        %v1402 = vld [vmem:[%s1210 + $0x264] sm:$0xf]
        %v1403 = vld [vmem:[%s1210 + $0x268] sm:$0xf]
        %v1404 = vld [vmem:[%s1210 + $0x26c] sm:$0xf]
        %v1405 = vld [vmem:[%s1210 + $0x270] sm:$0xf]
        %v1406 = vld [vmem:[%s1210 + $0x274] sm:$0xf]
        %v1407 = vld [vmem:[%s1210 + $0x278] sm:$0xf]
        %v1408 = vld [vmem:[%s1210 + $0x27c] sm:$0xf]
        %v1409 = vld [vmem:[%s1210 + $0x280] sm:$0xf]
        %v1410 = vld [vmem:[%s1210 + $0x284] sm:$0xf]
        %v1411 = vld [vmem:[%s1210 + $0x288] sm:$0xf]
        %v1412 = vld [vmem:[%s1210 + $0x28c] sm:$0xf]
        %v1413 = vld [vmem:[%s1210 + $0x290] sm:$0xf]
        %v1414 = vld [vmem:[%s1210 + $0x294] sm:$0xf]
        %v1415 = vld [vmem:[%s1210 + $0x298] sm:$0xf]
        %v1416 = vld [vmem:[%s1210 + $0x29c] sm:$0xf]
        %v1417 = vld [vmem:[%s1210 + $0x2a0] sm:$0xf]
        %v1418 = vld [vmem:[%s1210 + $0x2a4] sm:$0xf]
        %v1419 = vld [vmem:[%s1210 + $0x2a8] sm:$0xf]
        %v1420 = vld [vmem:[%s1210 + $0x2ac] sm:$0xf]
        %v1421 = vld [vmem:[%s1210 + $0x2b0] sm:$0xf]
        %v1422 = vld [vmem:[%s1210 + $0x2b4] sm:$0xf]
        %v1423 = vld [vmem:[%s1210 + $0x2b8] sm:$0xf]
        %v1424 = vld [vmem:[%s1210 + $0x2bc] sm:$0xf]
        %v1425 = vld [vmem:[%s1210 + $0x2c0] sm:$0xf]
        %v1426 = vld [vmem:[%s1210 + $0x2c4] sm:$0xf]
        %v1427 = vld [vmem:[%s1210 + $0x2c8] sm:$0xf]
        %v1428 = vld [vmem:[%s1210 + $0x2cc] sm:$0xf]
        %v1429 = vld [vmem:[%s1210 + $0x2d0] sm:$0xf]
        %v1430 = vld [vmem:[%s1210 + $0x2d4] sm:$0xf]
        %v1431 = vld [vmem:[%s1210 + $0x2d8] sm:$0xf]
        %v1432 = vld [vmem:[%s1210 + $0x2dc] sm:$0xf]
        %v1433 = vld [vmem:[%s1210 + $0x2e0] sm:$0xf]
        %v1434 = vld [vmem:[%s1210 + $0x2e4] sm:$0xf]
        %v1435 = vld [vmem:[%s1210 + $0x2e8] sm:$0xf]
        %v1436 = vld [vmem:[%s1210 + $0x2ec] sm:$0xf]
        %v1437 = vld [vmem:[%s1210 + $0x2f0] sm:$0xf]
        %v1438 = vld [vmem:[%s1210 + $0x2f4] sm:$0xf]
        %v1439 = vld [vmem:[%s1210 + $0x2f8] sm:$0xf]
        %v1440 = vld [vmem:[%s1210 + $0x2fc] sm:$0xf]
        %v1441 = vld [vmem:[%s1210 + $0x300] sm:$0xf]
        %v1442 = vld [vmem:[%s1210 + $0x304] sm:$0xf]
        %v1443 = vld [vmem:[%s1210 + $0x308] sm:$0xf]
        %v1444 = vld [vmem:[%s1210 + $0x30c] sm:$0xf]
        %v1445 = vld [vmem:[%s1210 + $0x310] sm:$0xf]
        %v1446 = vld [vmem:[%s1210 + $0x314] sm:$0xf]
        %v1447 = vld [vmem:[%s1210 + $0x318] sm:$0xf]
        %v1448 = vld [vmem:[%s1210 + $0x31c] sm:$0xf]
        %v1449 = vld [vmem:[%s1210 + $0x320] sm:$0xf]
        %v1450 = vld [vmem:[%s1210 + $0x324] sm:$0xf]
        %v1451 = vld [vmem:[%s1210 + $0x328] sm:$0xf]
        %v1452 = vld [vmem:[%s1210 + $0x32c] sm:$0xf]
        %v1453 = vld [vmem:[%s1210 + $0x330] sm:$0xf]
        %v1454 = vld [vmem:[%s1210 + $0x334] sm:$0xf]
        %v1455 = vld [vmem:[%s1210 + $0x338] sm:$0xf]
        %v1456 = vld [vmem:[%s1210 + $0x33c] sm:$0xf]
        %v1457 = vld [vmem:[%s1210 + $0x340] sm:$0xf]
        %v1458 = vld [vmem:[%s1210 + $0x344] sm:$0xf]
        %v1459 = vld [vmem:[%s1210 + $0x348] sm:$0xf]
        %v1460 = vld [vmem:[%s1210 + $0x34c] sm:$0xf]
        %v1461 = vld [vmem:[%s1210 + $0x350] sm:$0xf]
        %v1462 = vld [vmem:[%s1210 + $0x354] sm:$0xf]
        %v1463 = vld [vmem:[%s1210 + $0x358] sm:$0xf]
        %v1464 = vld [vmem:[%s1210 + $0x35c] sm:$0xf]
        %v1465 = vld [vmem:[%s1210 + $0x360] sm:$0xf]
        %v1466 = vld [vmem:[%s1210 + $0x364] sm:$0xf]
        %v1467 = vld [vmem:[%s1210 + $0x368] sm:$0xf]
        %v1468 = vld [vmem:[%s1210 + $0x36c] sm:$0xf]
        %v1469 = vld [vmem:[%s1210 + $0x370] sm:$0xf]
        %v1470 = vld [vmem:[%s1210 + $0x374] sm:$0xf]
        %v1471 = vld [vmem:[%s1210 + $0x378] sm:$0xf]
        %v1472 = vld [vmem:[%s1210 + $0x37c] sm:$0xf]
        %v1473 = vld [vmem:[%s1210 + $0x380] sm:$0xf]
        %v1474 = vld [vmem:[%s1210 + $0x384] sm:$0xf]
        %v1475 = vld [vmem:[%s1210 + $0x388] sm:$0xf]
        %v1476 = vld [vmem:[%s1210 + $0x38c] sm:$0xf]
        %v1477 = vld [vmem:[%s1210 + $0x390] sm:$0xf]
        %v1478 = vld [vmem:[%s1210 + $0x394] sm:$0xf]
        %v1479 = vld [vmem:[%s1210 + $0x398] sm:$0xf]
        %v1480 = vld [vmem:[%s1210 + $0x39c] sm:$0xf]
        %v1481 = vld [vmem:[%s1210 + $0x3a0] sm:$0xf]
        %v1482 = vld [vmem:[%s1210 + $0x3a4] sm:$0xf]
        %v1483 = vld [vmem:[%s1210 + $0x3a8] sm:$0xf]
        %v1484 = vld [vmem:[%s1210 + $0x3ac] sm:$0xf]
        %v1485 = vld [vmem:[%s1210 + $0x3b0] sm:$0xf]
        %v1486 = vld [vmem:[%s1210 + $0x3b4] sm:$0xf]
        %v1487 = vld [vmem:[%s1210 + $0x3b8] sm:$0xf]
        %v1488 = vld [vmem:[%s1210 + $0x3bc] sm:$0xf]
        %v1489 = vld [vmem:[%s1210 + $0x3c0] sm:$0xf]
        %v1490 = vld [vmem:[%s1210 + $0x3c4] sm:$0xf]
        %v1491 = vld [vmem:[%s1210 + $0x3c8] sm:$0xf]
        %v1492 = vld [vmem:[%s1210 + $0x3cc] sm:$0xf]
        %v1493 = vld [vmem:[%s1210 + $0x3d0] sm:$0xf]
        %v1494 = vld [vmem:[%s1210 + $0x3d4] sm:$0xf]
        %v1495 = vld [vmem:[%s1210 + $0x3d8] sm:$0xf]
        %v1496 = vld [vmem:[%s1210 + $0x3dc] sm:$0xf]
        %v1497 = vld [vmem:[%s1210 + $0x3e0] sm:$0xf]
        %v1498 = vld [vmem:[%s1210 + $0x3e4] sm:$0xf]
        %v1499 = vld [vmem:[%s1210 + $0x3e8] sm:$0xf]
        %v1500 = vld [vmem:[%s1210 + $0x3ec] sm:$0xf]
        %v1501 = vld [vmem:[%s1210 + $0x3f0] sm:$0xf]
        %v1502 = vld [vmem:[%s1210 + $0x3f4] sm:$0xf]
        %v1503 = vld [vmem:[%s1210 + $0x3f8] sm:$0xf]
        %v1504 = vld [vmem:[%s1210 + $0x3fc] sm:$0xf]
        %v1507 = vcombine.high %v1247, %v1247
        %v1509 = vunpack.c.l.s4 1966171168
        %v1510 = vunpack.c.0.s8 %v1509
        %v1511 = vlaneseq
        %v1512 = vshrl.u32 %v1511, 7
        %v1513 = vsub.s32 %v1510, %v1512
        %v1514 = vrot.slane %v1247, %v1513
        %v1516 = vunpack.c.l.s4 1966171168
        %v1517 = vunpack.c.0.s8 %v1516
        %v1518 = vlaneseq
        %v1519 = vshrl.u32 %v1518, 7
        %v1520 = vsub.s32 %v1517, %v1519
        %v1521 = vrot.slane %v1507, %v1520
        %v1522 = vcombine.high %v1514, %v1514
        %v1523 = vcombine.high %v1521, %v1521
        %v1525 = vunpack.c.l.s4 1966171168
        %v1526 = vunpack.c.0.s8 %v1525
        %v1527 = vlaneseq
        %v1528 = vshrl.u32 %v1527, 7
        %v1529 = vsub.s32 %v1526, %v1528
        %v1530 = vrot.slane %v1514, %v1529
        %v1532 = vunpack.c.l.s4 1966171168
        %v1533 = vunpack.c.0.s8 %v1532
        %v1534 = vlaneseq
        %v1535 = vshrl.u32 %v1534, 7
        %v1536 = vsub.s32 %v1533, %v1535
        %v1537 = vrot.slane %v1521, %v1536
        %v1539 = vunpack.c.l.s4 1966171168
        %v1540 = vunpack.c.0.s8 %v1539
        %v1541 = vlaneseq
        %v1542 = vshrl.u32 %v1541, 7
        %v1543 = vsub.s32 %v1540, %v1542
        %v1544 = vrot.slane %v1522, %v1543
        %v1546 = vunpack.c.l.s4 1966171168
        %v1547 = vunpack.c.0.s8 %v1546
        %v1548 = vlaneseq
        %v1549 = vshrl.u32 %v1548, 7
        %v1550 = vsub.s32 %v1547, %v1549
        %v1551 = vrot.slane %v1523, %v1550
        %v1552 = vcombine.high %v1530, %v1530
        %v1553 = vcombine.high %v1537, %v1537
        %v1554 = vcombine.high %v1544, %v1544
        %v1555 = vcombine.high %v1551, %v1551
        %v1556 = vcombine.high %v1248, %v1248
        %v1558 = vunpack.c.l.s4 1966171168
        %v1559 = vunpack.c.0.s8 %v1558
        %v1560 = vlaneseq
        %v1561 = vshrl.u32 %v1560, 7
        %v1562 = vsub.s32 %v1559, %v1561
        %v1563 = vrot.slane %v1248, %v1562
        %v1565 = vunpack.c.l.s4 1966171168
        %v1566 = vunpack.c.0.s8 %v1565
        %v1567 = vlaneseq
        %v1568 = vshrl.u32 %v1567, 7
        %v1569 = vsub.s32 %v1566, %v1568
        %v1570 = vrot.slane %v1556, %v1569
        %v1571 = vcombine.high %v1563, %v1563
        %v1572 = vcombine.high %v1570, %v1570
        %v1574 = vunpack.c.l.s4 1966171168
        %v1575 = vunpack.c.0.s8 %v1574
        %v1576 = vlaneseq
        %v1577 = vshrl.u32 %v1576, 7
        %v1578 = vsub.s32 %v1575, %v1577
        %v1579 = vrot.slane %v1563, %v1578
        %v1581 = vunpack.c.l.s4 1966171168
        %v1582 = vunpack.c.0.s8 %v1581
        %v1583 = vlaneseq
        %v1584 = vshrl.u32 %v1583, 7
        %v1585 = vsub.s32 %v1582, %v1584
        %v1586 = vrot.slane %v1570, %v1585
        %v1588 = vunpack.c.l.s4 1966171168
        %v1589 = vunpack.c.0.s8 %v1588
        %v1590 = vlaneseq
        %v1591 = vshrl.u32 %v1590, 7
        %v1592 = vsub.s32 %v1589, %v1591
        %v1593 = vrot.slane %v1571, %v1592
        %v1595 = vunpack.c.l.s4 1966171168
        %v1596 = vunpack.c.0.s8 %v1595
        %v1597 = vlaneseq
        %v1598 = vshrl.u32 %v1597, 7
        %v1599 = vsub.s32 %v1596, %v1598
        %v1600 = vrot.slane %v1572, %v1599
        %v1601 = vcombine.high %v1579, %v1579
        %v1602 = vcombine.high %v1586, %v1586
        %v1603 = vcombine.high %v1593, %v1593
        %v1604 = vcombine.high %v1600, %v1600
        %v1877 = vunpack.c.l.b16 %v1249
        %v1878 = vunpack.c.l.b16 %v1250
        %v1879 = vunpack.c.l.b16 %v1251
        %v1880 = vunpack.c.l.b16 %v1252
        %v1881 = vunpack.c.l.b16 %v1253
        %v1882 = vunpack.c.l.b16 %v1254
        %v1883 = vunpack.c.l.b16 %v1255
        %v1884 = vunpack.c.l.b16 %v1256
        %v1885 = vunpack.c.l.b16 %v1257
        %v1886 = vunpack.c.l.b16 %v1258
        %v1887 = vunpack.c.l.b16 %v1259
        %v1888 = vunpack.c.l.b16 %v1260
        %v1889 = vunpack.c.l.b16 %v1261
        %v1890 = vunpack.c.l.b16 %v1262
        %v1891 = vunpack.c.l.b16 %v1263
        %v1892 = vunpack.c.l.b16 %v1264
        %v1893 = vunpack.c.l.b16 %v1265
        %v1894 = vunpack.c.l.b16 %v1266
        %v1895 = vunpack.c.l.b16 %v1267
        %v1896 = vunpack.c.l.b16 %v1268
        %v1897 = vunpack.c.l.b16 %v1269
        %v1898 = vunpack.c.l.b16 %v1270
        %v1899 = vunpack.c.l.b16 %v1271
        %v1900 = vunpack.c.l.b16 %v1272
        %v1901 = vunpack.c.l.b16 %v1273
        %v1902 = vunpack.c.l.b16 %v1274
        %v1903 = vunpack.c.l.b16 %v1275
        %v1904 = vunpack.c.l.b16 %v1276
        %v1905 = vunpack.c.l.b16 %v1277
        %v1906 = vunpack.c.l.b16 %v1278
        %v1907 = vunpack.c.l.b16 %v1279
        %v1908 = vunpack.c.l.b16 %v1280
        %v1909 = vunpack.c.l.b16 %v1281
        %v1910 = vunpack.c.l.b16 %v1282
        %v1911 = vunpack.c.l.b16 %v1283
        %v1912 = vunpack.c.l.b16 %v1284
        %v1913 = vunpack.c.l.b16 %v1285
        %v1914 = vunpack.c.l.b16 %v1286
        %v1915 = vunpack.c.l.b16 %v1287
        %v1916 = vunpack.c.l.b16 %v1288
        %v1917 = vunpack.c.l.b16 %v1289
        %v1918 = vunpack.c.l.b16 %v1290
        %v1919 = vunpack.c.l.b16 %v1291
        %v1920 = vunpack.c.l.b16 %v1292
        %v1921 = vunpack.c.l.b16 %v1293
        %v1922 = vunpack.c.l.b16 %v1294
        %v1923 = vunpack.c.l.b16 %v1295
        %v1924 = vunpack.c.l.b16 %v1296
        %v1925 = vunpack.c.l.b16 %v1297
        %v1926 = vunpack.c.l.b16 %v1298
        %v1927 = vunpack.c.l.b16 %v1299
        %v1928 = vunpack.c.l.b16 %v1300
        %v1929 = vunpack.c.l.b16 %v1301
        %v1930 = vunpack.c.l.b16 %v1302
        %v1931 = vunpack.c.l.b16 %v1303
        %v1932 = vunpack.c.l.b16 %v1304
        %v1933 = vunpack.c.l.b16 %v1305
        %v1934 = vunpack.c.l.b16 %v1306
        %v1935 = vunpack.c.l.b16 %v1307
        %v1936 = vunpack.c.l.b16 %v1308
        %v1937 = vunpack.c.l.b16 %v1309
        %v1938 = vunpack.c.l.b16 %v1310
        %v1939 = vunpack.c.l.b16 %v1311
        %v1940 = vunpack.c.l.b16 %v1312
        %v1941 = vunpack.c.l.b16 %v1313
        %v1942 = vunpack.c.l.b16 %v1314
        %v1943 = vunpack.c.l.b16 %v1315
        %v1944 = vunpack.c.l.b16 %v1316
        %v1945 = vunpack.c.l.b16 %v1317
        %v1946 = vunpack.c.l.b16 %v1318
        %v1947 = vunpack.c.l.b16 %v1319
        %v1948 = vunpack.c.l.b16 %v1320
        %v1949 = vunpack.c.l.b16 %v1321
        %v1950 = vunpack.c.l.b16 %v1322
        %v1951 = vunpack.c.l.b16 %v1323
        %v1952 = vunpack.c.l.b16 %v1324
        %v1953 = vunpack.c.l.b16 %v1325
        %v1954 = vunpack.c.l.b16 %v1326
        %v1955 = vunpack.c.l.b16 %v1327
        %v1956 = vunpack.c.l.b16 %v1328
        %v1957 = vunpack.c.l.b16 %v1329
        %v1958 = vunpack.c.l.b16 %v1330
        %v1959 = vunpack.c.l.b16 %v1331
        %v1960 = vunpack.c.l.b16 %v1332
        %v1961 = vunpack.c.l.b16 %v1333
        %v1962 = vunpack.c.l.b16 %v1334
        %v1963 = vunpack.c.l.b16 %v1335
        %v1964 = vunpack.c.l.b16 %v1336
        %v1965 = vunpack.c.l.b16 %v1337
        %v1966 = vunpack.c.l.b16 %v1338
        %v1967 = vunpack.c.l.b16 %v1339
        %v1968 = vunpack.c.l.b16 %v1340
        %v1969 = vunpack.c.l.b16 %v1341
        %v1970 = vunpack.c.l.b16 %v1342
        %v1971 = vunpack.c.l.b16 %v1343
        %v1972 = vunpack.c.l.b16 %v1344
        %v1973 = vunpack.c.l.b16 %v1345
        %v1974 = vunpack.c.l.b16 %v1346
        %v1975 = vunpack.c.l.b16 %v1347
        %v1976 = vunpack.c.l.b16 %v1348
        %v1977 = vunpack.c.l.b16 %v1349
        %v1978 = vunpack.c.l.b16 %v1350
        %v1979 = vunpack.c.l.b16 %v1351
        %v1980 = vunpack.c.l.b16 %v1352
        %v1981 = vunpack.c.l.b16 %v1353
        %v1982 = vunpack.c.l.b16 %v1354
        %v1983 = vunpack.c.l.b16 %v1355
        %v1984 = vunpack.c.l.b16 %v1356
        %v1985 = vunpack.c.l.b16 %v1357
        %v1986 = vunpack.c.l.b16 %v1358
        %v1987 = vunpack.c.l.b16 %v1359
        %v1988 = vunpack.c.l.b16 %v1360
        %v1989 = vunpack.c.l.b16 %v1361
        %v1990 = vunpack.c.l.b16 %v1362
        %v1991 = vunpack.c.l.b16 %v1363
        %v1992 = vunpack.c.l.b16 %v1364
        %v1993 = vunpack.c.l.b16 %v1365
        %v1994 = vunpack.c.l.b16 %v1366
        %v1995 = vunpack.c.l.b16 %v1367
        %v1996 = vunpack.c.l.b16 %v1368
        %v1997 = vunpack.c.l.b16 %v1369
        %v1998 = vunpack.c.l.b16 %v1370
        %v1999 = vunpack.c.l.b16 %v1371
        %v2000 = vunpack.c.l.b16 %v1372
        %v2001 = vunpack.c.l.b16 %v1373
        %v2002 = vunpack.c.l.b16 %v1374
        %v2003 = vunpack.c.l.b16 %v1375
        %v2004 = vunpack.c.l.b16 %v1376
        %v2005 = vunpack.c.l.b16 %v1377
        %v2006 = vunpack.c.l.b16 %v1378
        %v2007 = vunpack.c.l.b16 %v1379
        %v2008 = vunpack.c.l.b16 %v1380
        %v2009 = vunpack.c.l.b16 %v1381
        %v2010 = vunpack.c.l.b16 %v1382
        %v2011 = vunpack.c.l.b16 %v1383
        %v2012 = vunpack.c.l.b16 %v1384
        %v2013 = vunpack.c.l.b16 %v1385
        %v2014 = vunpack.c.l.b16 %v1386
        %v2015 = vunpack.c.l.b16 %v1387
        %v2016 = vunpack.c.l.b16 %v1388
        %v2017 = vunpack.c.l.b16 %v1389
        %v2018 = vunpack.c.l.b16 %v1390
        %v2019 = vunpack.c.l.b16 %v1391
        %v2020 = vunpack.c.l.b16 %v1392
        %v2021 = vunpack.c.l.b16 %v1393
        %v2022 = vunpack.c.l.b16 %v1394
        %v2023 = vunpack.c.l.b16 %v1395
        %v2024 = vunpack.c.l.b16 %v1396
        %v2025 = vunpack.c.l.b16 %v1397
        %v2026 = vunpack.c.l.b16 %v1398
        %v2027 = vunpack.c.l.b16 %v1399
        %v2028 = vunpack.c.l.b16 %v1400
        %v2029 = vunpack.c.l.b16 %v1401
        %v2030 = vunpack.c.l.b16 %v1402
        %v2031 = vunpack.c.l.b16 %v1403
        %v2032 = vunpack.c.l.b16 %v1404
        %v2033 = vunpack.c.l.b16 %v1405
        %v2034 = vunpack.c.l.b16 %v1406
        %v2035 = vunpack.c.l.b16 %v1407
        %v2036 = vunpack.c.l.b16 %v1408
        %v2037 = vunpack.c.l.b16 %v1409
        %v2038 = vunpack.c.l.b16 %v1410
        %v2039 = vunpack.c.l.b16 %v1411
        %v2040 = vunpack.c.l.b16 %v1412
        %v2041 = vunpack.c.l.b16 %v1413
        %v2042 = vunpack.c.l.b16 %v1414
        %v2043 = vunpack.c.l.b16 %v1415
        %v2044 = vunpack.c.l.b16 %v1416
        %v2045 = vunpack.c.l.b16 %v1417
        %v2046 = vunpack.c.l.b16 %v1418
        %v2047 = vunpack.c.l.b16 %v1419
        %v2048 = vunpack.c.l.b16 %v1420
        %v2049 = vunpack.c.l.b16 %v1421
        %v2050 = vunpack.c.l.b16 %v1422
        %v2051 = vunpack.c.l.b16 %v1423
        %v2052 = vunpack.c.l.b16 %v1424
        %v2053 = vunpack.c.l.b16 %v1425
        %v2054 = vunpack.c.l.b16 %v1426
        %v2055 = vunpack.c.l.b16 %v1427
        %v2056 = vunpack.c.l.b16 %v1428
        %v2057 = vunpack.c.l.b16 %v1429
        %v2058 = vunpack.c.l.b16 %v1430
        %v2059 = vunpack.c.l.b16 %v1431
        %v2060 = vunpack.c.l.b16 %v1432
        %v2061 = vunpack.c.l.b16 %v1433
        %v2062 = vunpack.c.l.b16 %v1434
        %v2063 = vunpack.c.l.b16 %v1435
        %v2064 = vunpack.c.l.b16 %v1436
        %v2065 = vunpack.c.l.b16 %v1437
        %v2066 = vunpack.c.l.b16 %v1438
        %v2067 = vunpack.c.l.b16 %v1439
        %v2068 = vunpack.c.l.b16 %v1440
        %v2069 = vunpack.c.l.b16 %v1441
        %v2070 = vunpack.c.l.b16 %v1442
        %v2071 = vunpack.c.l.b16 %v1443
        %v2072 = vunpack.c.l.b16 %v1444
        %v2073 = vunpack.c.l.b16 %v1445
        %v2074 = vunpack.c.l.b16 %v1446
        %v2075 = vunpack.c.l.b16 %v1447
        %v2076 = vunpack.c.l.b16 %v1448
        %v2077 = vunpack.c.l.b16 %v1449
        %v2078 = vunpack.c.l.b16 %v1450
        %v2079 = vunpack.c.l.b16 %v1451
        %v2080 = vunpack.c.l.b16 %v1452
        %v2081 = vunpack.c.l.b16 %v1453
        %v2082 = vunpack.c.l.b16 %v1454
        %v2083 = vunpack.c.l.b16 %v1455
        %v2084 = vunpack.c.l.b16 %v1456
        %v2085 = vunpack.c.l.b16 %v1457
        %v2086 = vunpack.c.l.b16 %v1458
        %v2087 = vunpack.c.l.b16 %v1459
        %v2088 = vunpack.c.l.b16 %v1460
        %v2089 = vunpack.c.l.b16 %v1461
        %v2090 = vunpack.c.l.b16 %v1462
        %v2091 = vunpack.c.l.b16 %v1463
        %v2092 = vunpack.c.l.b16 %v1464
        %v2093 = vunpack.c.l.b16 %v1465
        %v2094 = vunpack.c.l.b16 %v1466
        %v2095 = vunpack.c.l.b16 %v1467
        %v2096 = vunpack.c.l.b16 %v1468
        %v2097 = vunpack.c.l.b16 %v1469
        %v2098 = vunpack.c.l.b16 %v1470
        %v2099 = vunpack.c.l.b16 %v1471
        %v2100 = vunpack.c.l.b16 %v1472
        %v2101 = vunpack.c.l.b16 %v1473
        %v2102 = vunpack.c.l.b16 %v1474
        %v2103 = vunpack.c.l.b16 %v1475
        %v2104 = vunpack.c.l.b16 %v1476
        %v2105 = vunpack.c.l.b16 %v1477
        %v2106 = vunpack.c.l.b16 %v1478
        %v2107 = vunpack.c.l.b16 %v1479
        %v2108 = vunpack.c.l.b16 %v1480
        %v2109 = vunpack.c.l.b16 %v1481
        %v2110 = vunpack.c.l.b16 %v1482
        %v2111 = vunpack.c.l.b16 %v1483
        %v2112 = vunpack.c.l.b16 %v1484
        %v2113 = vunpack.c.l.b16 %v1485
        %v2114 = vunpack.c.l.b16 %v1486
        %v2115 = vunpack.c.l.b16 %v1487
        %v2116 = vunpack.c.l.b16 %v1488
        %v2117 = vunpack.c.l.b16 %v1489
        %v2118 = vunpack.c.l.b16 %v1490
        %v2119 = vunpack.c.l.b16 %v1491
        %v2120 = vunpack.c.l.b16 %v1492
        %v2121 = vunpack.c.l.b16 %v1493
        %v2122 = vunpack.c.l.b16 %v1494
        %v2123 = vunpack.c.l.b16 %v1495
        %v2124 = vunpack.c.l.b16 %v1496
        %v2125 = vunpack.c.l.b16 %v1497
        %v2126 = vunpack.c.l.b16 %v1498
        %v2127 = vunpack.c.l.b16 %v1499
        %v2128 = vunpack.c.l.b16 %v1500
        %v2129 = vunpack.c.l.b16 %v1501
        %v2130 = vunpack.c.l.b16 %v1502
        %v2131 = vunpack.c.l.b16 %v1503
        %v2132 = vunpack.c.l.b16 %v1504
        %v2133 = vpack.c.b16 %v1878, %v1877
        %v2134 = vpack.c.b16 %v1880, %v1879
        %v2135 = vpack.c.b16 %v1882, %v1881
        %v2136 = vpack.c.b16 %v1884, %v1883
        %v2137 = vpack.c.b16 %v1886, %v1885
        %v2138 = vpack.c.b16 %v1888, %v1887
        %v2139 = vpack.c.b16 %v1890, %v1889
        %v2140 = vpack.c.b16 %v1892, %v1891
        %v2141 = vpack.c.b16 %v1894, %v1893
        %v2142 = vpack.c.b16 %v1896, %v1895
        %v2143 = vpack.c.b16 %v1898, %v1897
        %v2144 = vpack.c.b16 %v1900, %v1899
        %v2145 = vpack.c.b16 %v1902, %v1901
        %v2146 = vpack.c.b16 %v1904, %v1903
        %v2147 = vpack.c.b16 %v1906, %v1905
        %v2148 = vpack.c.b16 %v1908, %v1907
        %v2149 = vpack.c.b16 %v1910, %v1909
        %v2150 = vpack.c.b16 %v1912, %v1911
        %v2151 = vpack.c.b16 %v1914, %v1913
        %v2152 = vpack.c.b16 %v1916, %v1915
        %v2153 = vpack.c.b16 %v1918, %v1917
        %v2154 = vpack.c.b16 %v1920, %v1919
        %v2155 = vpack.c.b16 %v1922, %v1921
        %v2156 = vpack.c.b16 %v1924, %v1923
        %v2157 = vpack.c.b16 %v1926, %v1925
        %v2158 = vpack.c.b16 %v1928, %v1927
        %v2159 = vpack.c.b16 %v1930, %v1929
        %v2160 = vpack.c.b16 %v1932, %v1931
        %v2161 = vpack.c.b16 %v1934, %v1933
        %v2162 = vpack.c.b16 %v1936, %v1935
        %v2163 = vpack.c.b16 %v1938, %v1937
        %v2164 = vpack.c.b16 %v1940, %v1939
        %v2165 = vpack.c.b16 %v1942, %v1941
        %v2166 = vpack.c.b16 %v1944, %v1943
        %v2167 = vpack.c.b16 %v1946, %v1945
        %v2168 = vpack.c.b16 %v1948, %v1947
        %v2169 = vpack.c.b16 %v1950, %v1949
        %v2170 = vpack.c.b16 %v1952, %v1951
        %v2171 = vpack.c.b16 %v1954, %v1953
        %v2172 = vpack.c.b16 %v1956, %v1955
        %v2173 = vpack.c.b16 %v1958, %v1957
        %v2174 = vpack.c.b16 %v1960, %v1959
        %v2175 = vpack.c.b16 %v1962, %v1961
        %v2176 = vpack.c.b16 %v1964, %v1963
        %v2177 = vpack.c.b16 %v1966, %v1965
        %v2178 = vpack.c.b16 %v1968, %v1967
        %v2179 = vpack.c.b16 %v1970, %v1969
        %v2180 = vpack.c.b16 %v1972, %v1971
        %v2181 = vpack.c.b16 %v1974, %v1973
        %v2182 = vpack.c.b16 %v1976, %v1975
        %v2183 = vpack.c.b16 %v1978, %v1977
        %v2184 = vpack.c.b16 %v1980, %v1979
        %v2185 = vpack.c.b16 %v1982, %v1981
        %v2186 = vpack.c.b16 %v1984, %v1983
        %v2187 = vpack.c.b16 %v1986, %v1985
        %v2188 = vpack.c.b16 %v1988, %v1987
        %v2189 = vpack.c.b16 %v1990, %v1989
        %v2190 = vpack.c.b16 %v1992, %v1991
        %v2191 = vpack.c.b16 %v1994, %v1993
        %v2192 = vpack.c.b16 %v1996, %v1995
        %v2193 = vpack.c.b16 %v1998, %v1997
        %v2194 = vpack.c.b16 %v2000, %v1999
        %v2195 = vpack.c.b16 %v2002, %v2001
        %v2196 = vpack.c.b16 %v2004, %v2003
        %v2197 = vpack.c.b16 %v2006, %v2005
        %v2198 = vpack.c.b16 %v2008, %v2007
        %v2199 = vpack.c.b16 %v2010, %v2009
        %v2200 = vpack.c.b16 %v2012, %v2011
        %v2201 = vpack.c.b16 %v2014, %v2013
        %v2202 = vpack.c.b16 %v2016, %v2015
        %v2203 = vpack.c.b16 %v2018, %v2017
        %v2204 = vpack.c.b16 %v2020, %v2019
        %v2205 = vpack.c.b16 %v2022, %v2021
        %v2206 = vpack.c.b16 %v2024, %v2023
        %v2207 = vpack.c.b16 %v2026, %v2025
        %v2208 = vpack.c.b16 %v2028, %v2027
        %v2209 = vpack.c.b16 %v2030, %v2029
        %v2210 = vpack.c.b16 %v2032, %v2031
        %v2211 = vpack.c.b16 %v2034, %v2033
        %v2212 = vpack.c.b16 %v2036, %v2035
        %v2213 = vpack.c.b16 %v2038, %v2037
        %v2214 = vpack.c.b16 %v2040, %v2039
        %v2215 = vpack.c.b16 %v2042, %v2041
        %v2216 = vpack.c.b16 %v2044, %v2043
        %v2217 = vpack.c.b16 %v2046, %v2045
        %v2218 = vpack.c.b16 %v2048, %v2047
        %v2219 = vpack.c.b16 %v2050, %v2049
        %v2220 = vpack.c.b16 %v2052, %v2051
        %v2221 = vpack.c.b16 %v2054, %v2053
        %v2222 = vpack.c.b16 %v2056, %v2055
        %v2223 = vpack.c.b16 %v2058, %v2057
        %v2224 = vpack.c.b16 %v2060, %v2059
        %v2225 = vpack.c.b16 %v2062, %v2061
        %v2226 = vpack.c.b16 %v2064, %v2063
        %v2227 = vpack.c.b16 %v2066, %v2065
        %v2228 = vpack.c.b16 %v2068, %v2067
        %v2229 = vpack.c.b16 %v2070, %v2069
        %v2230 = vpack.c.b16 %v2072, %v2071
        %v2231 = vpack.c.b16 %v2074, %v2073
        %v2232 = vpack.c.b16 %v2076, %v2075
        %v2233 = vpack.c.b16 %v2078, %v2077
        %v2234 = vpack.c.b16 %v2080, %v2079
        %v2235 = vpack.c.b16 %v2082, %v2081
        %v2236 = vpack.c.b16 %v2084, %v2083
        %v2237 = vpack.c.b16 %v2086, %v2085
        %v2238 = vpack.c.b16 %v2088, %v2087
        %v2239 = vpack.c.b16 %v2090, %v2089
        %v2240 = vpack.c.b16 %v2092, %v2091
        %v2241 = vpack.c.b16 %v2094, %v2093
        %v2242 = vpack.c.b16 %v2096, %v2095
        %v2243 = vpack.c.b16 %v2098, %v2097
        %v2244 = vpack.c.b16 %v2100, %v2099
        %v2245 = vpack.c.b16 %v2102, %v2101
        %v2246 = vpack.c.b16 %v2104, %v2103
        %v2247 = vpack.c.b16 %v2106, %v2105
        %v2248 = vpack.c.b16 %v2108, %v2107
        %v2249 = vpack.c.b16 %v2110, %v2109
        %v2250 = vpack.c.b16 %v2112, %v2111
        %v2251 = vpack.c.b16 %v2114, %v2113
        %v2252 = vpack.c.b16 %v2116, %v2115
        %v2253 = vpack.c.b16 %v2118, %v2117
        %v2254 = vpack.c.b16 %v2120, %v2119
        %v2255 = vpack.c.b16 %v2122, %v2121
        %v2256 = vpack.c.b16 %v2124, %v2123
        %v2257 = vpack.c.b16 %v2126, %v2125
        %v2258 = vpack.c.b16 %v2128, %v2127
        %v2259 = vpack.c.b16 %v2130, %v2129
        %v2260 = vpack.c.b16 %v2132, %v2131
        %2389 = vmatprep.subr.bf16.mxu0 0
        %2390 = vmatpush1.bf16.msra.mxu0 %v2140
        %2391 = vmatprep.subr.bf16.mxu0 0
        %2392 = vmatpush1.bf16.msra.mxu0 %v2139
        %2393 = vmatprep.subr.bf16.mxu0 0
        %2394 = vmatpush1.bf16.msra.mxu0 %v2138
        %2395 = vmatprep.subr.bf16.mxu0 0
        %2396 = vmatpush1.bf16.msra.mxu0 %v2137
        %2397 = vmatprep.subr.bf16.mxu0 0
        %2398 = vmatpush1.bf16.msra.mxu0 %v2136
        %2399 = vmatprep.subr.bf16.mxu0 0
        %2400 = vmatpush1.bf16.msra.mxu0 %v2135
        %2401 = vmatprep.subr.bf16.mxu0 0
        %2402 = vmatpush1.bf16.msra.mxu0 %v2134
        %2403 = vmatprep.subr.bf16.mxu0 0
        %2404 = vmatpush1.bf16.msra.mxu0 %v2133
        %2405 = vmatprep.subr.bf16.mxu0 0
        %2406 = vmatpush2.bf16.msra.mxu0 %v2148
        %2407 = vmatprep.subr.bf16.mxu0 0
        %2408 = vmatpush2.bf16.msra.mxu0 %v2147
        %2409 = vmatprep.subr.bf16.mxu0 0
        %2410 = vmatpush2.bf16.msra.mxu0 %v2146
        %2411 = vmatprep.subr.bf16.mxu0 0
        %2412 = vmatpush2.bf16.msra.mxu0 %v2145
        %2413 = vmatprep.subr.bf16.mxu0 0
        %2414 = vmatpush2.bf16.msra.mxu0 %v2144
        %2415 = vmatprep.subr.bf16.mxu0 0
        %2416 = vmatpush2.bf16.msra.mxu0 %v2143
        %2417 = vmatprep.subr.bf16.mxu0 0
        %2418 = vmatpush2.bf16.msra.mxu0 %v2142
        %2419 = vmatprep.subr.bf16.mxu0 0
        %2420 = vmatpush2.bf16.msra.mxu0 %v2141
        %2421 = vmatprep.mubr.bf16.mxu0 %v1544
        %2422 = vmatmul.mubr.bf16.gmra.mxu0 %v1530
        %v2423 = vpop.f32.mrf.mxu0
        %v2424 = vadd.f32 0.0, %v2423
        %v2425 = vpop.f32.mrf.mxu0
        %v2426 = vpop.f32.mrf.mxu0
        %v2427 = vpop.f32.mrf.mxu0
        %2428 = vdwg.mxu0
        %2429 = vmatprep.subr.bf16.mxu0 0
        %2430 = vmatpush1.bf16.msra.mxu0 %v2156
        %2431 = vmatprep.subr.bf16.mxu0 0
        %2432 = vmatpush1.bf16.msra.mxu0 %v2155
        %2433 = vmatprep.subr.bf16.mxu0 0
        %2434 = vmatpush1.bf16.msra.mxu0 %v2154
        %2435 = vmatprep.subr.bf16.mxu0 0
        %2436 = vmatpush1.bf16.msra.mxu0 %v2153
        %2437 = vmatprep.subr.bf16.mxu0 0
        %2438 = vmatpush1.bf16.msra.mxu0 %v2152
        %2439 = vmatprep.subr.bf16.mxu0 0
        %2440 = vmatpush1.bf16.msra.mxu0 %v2151
        %2441 = vmatprep.subr.bf16.mxu0 0
        %2442 = vmatpush1.bf16.msra.mxu0 %v2150
        %2443 = vmatprep.subr.bf16.mxu0 0
        %2444 = vmatpush1.bf16.msra.mxu0 %v2149
        %2445 = vmatprep.subr.bf16.mxu0 0
        %2446 = vmatpush2.bf16.msra.mxu0 %v2164
        %2447 = vmatprep.subr.bf16.mxu0 0
        %2448 = vmatpush2.bf16.msra.mxu0 %v2163
        %2449 = vmatprep.subr.bf16.mxu0 0
        %2450 = vmatpush2.bf16.msra.mxu0 %v2162
        %2451 = vmatprep.subr.bf16.mxu0 0
        %2452 = vmatpush2.bf16.msra.mxu0 %v2161
        %2453 = vmatprep.subr.bf16.mxu0 0
        %2454 = vmatpush2.bf16.msra.mxu0 %v2160
        %2455 = vmatprep.subr.bf16.mxu0 0
        %2456 = vmatpush2.bf16.msra.mxu0 %v2159
        %2457 = vmatprep.subr.bf16.mxu0 0
        %2458 = vmatpush2.bf16.msra.mxu0 %v2158
        %2459 = vmatprep.subr.bf16.mxu0 0
        %2460 = vmatpush2.bf16.msra.mxu0 %v2157
        %2461 = vmatprep.mubr.bf16.mxu0 %v1554
        %2462 = vmatmul.mubr.bf16.gmra.mxu0 %v1552
        %v2463 = vpop.f32.mrf.mxu0
        %v2464 = vadd.f32 %v2424, %v2463
        %v2465 = vpop.f32.mrf.mxu0
        %v2466 = vpop.f32.mrf.mxu0
        %v2467 = vpop.f32.mrf.mxu0
        %2468 = vdwg.mxu0
        %2469 = vmatprep.subr.bf16.mxu0 0
        %2470 = vmatpush1.bf16.msra.mxu0 %v2172
        %2471 = vmatprep.subr.bf16.mxu0 0
        %2472 = vmatpush1.bf16.msra.mxu0 %v2171
        %2473 = vmatprep.subr.bf16.mxu0 0
        %2474 = vmatpush1.bf16.msra.mxu0 %v2170
        %2475 = vmatprep.subr.bf16.mxu0 0
        %2476 = vmatpush1.bf16.msra.mxu0 %v2169
        %2477 = vmatprep.subr.bf16.mxu0 0
        %2478 = vmatpush1.bf16.msra.mxu0 %v2168
        %2479 = vmatprep.subr.bf16.mxu0 0
        %2480 = vmatpush1.bf16.msra.mxu0 %v2167
        %2481 = vmatprep.subr.bf16.mxu0 0
        %2482 = vmatpush1.bf16.msra.mxu0 %v2166
        %2483 = vmatprep.subr.bf16.mxu0 0
        %2484 = vmatpush1.bf16.msra.mxu0 %v2165
        %2485 = vmatprep.subr.bf16.mxu0 0
        %2486 = vmatpush2.bf16.msra.mxu0 %v2180
        %2487 = vmatprep.subr.bf16.mxu0 0
        %2488 = vmatpush2.bf16.msra.mxu0 %v2179
        %2489 = vmatprep.subr.bf16.mxu0 0
        %2490 = vmatpush2.bf16.msra.mxu0 %v2178
        %2491 = vmatprep.subr.bf16.mxu0 0
        %2492 = vmatpush2.bf16.msra.mxu0 %v2177
        %2493 = vmatprep.subr.bf16.mxu0 0
        %2494 = vmatpush2.bf16.msra.mxu0 %v2176
        %2495 = vmatprep.subr.bf16.mxu0 0
        %2496 = vmatpush2.bf16.msra.mxu0 %v2175
        %2497 = vmatprep.subr.bf16.mxu0 0
        %2498 = vmatpush2.bf16.msra.mxu0 %v2174
        %2499 = vmatprep.subr.bf16.mxu0 0
        %2500 = vmatpush2.bf16.msra.mxu0 %v2173
        %2501 = vmatprep.mubr.bf16.mxu0 %v1551
        %2502 = vmatmul.mubr.bf16.gmra.mxu0 %v1537
        %v2503 = vpop.f32.mrf.mxu0
        %v2504 = vadd.f32 %v2464, %v2503
        %v2505 = vpop.f32.mrf.mxu0
        %v2506 = vpop.f32.mrf.mxu0
        %v2507 = vpop.f32.mrf.mxu0
        %2508 = vdwg.mxu0
        %2509 = vmatprep.subr.bf16.mxu0 0
        %2510 = vmatpush1.bf16.msra.mxu0 %v2188
        %2511 = vmatprep.subr.bf16.mxu0 0
        %2512 = vmatpush1.bf16.msra.mxu0 %v2187
        %2513 = vmatprep.subr.bf16.mxu0 0
        %2514 = vmatpush1.bf16.msra.mxu0 %v2186
        %2515 = vmatprep.subr.bf16.mxu0 0
        %2516 = vmatpush1.bf16.msra.mxu0 %v2185
        %2517 = vmatprep.subr.bf16.mxu0 0
        %2518 = vmatpush1.bf16.msra.mxu0 %v2184
        %2519 = vmatprep.subr.bf16.mxu0 0
        %2520 = vmatpush1.bf16.msra.mxu0 %v2183
        %2521 = vmatprep.subr.bf16.mxu0 0
        %2522 = vmatpush1.bf16.msra.mxu0 %v2182
        %2523 = vmatprep.subr.bf16.mxu0 0
        %2524 = vmatpush1.bf16.msra.mxu0 %v2181
        %2525 = vmatprep.subr.bf16.mxu0 0
        %2526 = vmatpush2.bf16.msra.mxu0 %v2196
        %2527 = vmatprep.subr.bf16.mxu0 0
        %2528 = vmatpush2.bf16.msra.mxu0 %v2195
        %2529 = vmatprep.subr.bf16.mxu0 0
        %2530 = vmatpush2.bf16.msra.mxu0 %v2194
        %2531 = vmatprep.subr.bf16.mxu0 0
        %2532 = vmatpush2.bf16.msra.mxu0 %v2193
        %2533 = vmatprep.subr.bf16.mxu0 0
        %2534 = vmatpush2.bf16.msra.mxu0 %v2192
        %2535 = vmatprep.subr.bf16.mxu0 0
        %2536 = vmatpush2.bf16.msra.mxu0 %v2191
        %2537 = vmatprep.subr.bf16.mxu0 0
        %2538 = vmatpush2.bf16.msra.mxu0 %v2190
        %2539 = vmatprep.subr.bf16.mxu0 0
        %2540 = vmatpush2.bf16.msra.mxu0 %v2189
        %2541 = vmatprep.mubr.bf16.mxu0 %v1555
        %2542 = vmatmul.mubr.bf16.gmra.mxu0 %v1553
        %v2543 = vpop.f32.mrf.mxu0
        %v2544 = vadd.f32 %v2504, %v2543
        %v2545 = vpop.f32.mrf.mxu0
        %v2546 = vpop.f32.mrf.mxu0
        %v2547 = vpop.f32.mrf.mxu0
        %2548 = vdwg.mxu0
        %2549 = vmatprep.subr.bf16.mxu0 0
        %2550 = vmatpush1.bf16.msra.mxu0 %v2204
        %2551 = vmatprep.subr.bf16.mxu0 0
        %2552 = vmatpush1.bf16.msra.mxu0 %v2203
        %2553 = vmatprep.subr.bf16.mxu0 0
        %2554 = vmatpush1.bf16.msra.mxu0 %v2202
        %2555 = vmatprep.subr.bf16.mxu0 0
        %2556 = vmatpush1.bf16.msra.mxu0 %v2201
        %2557 = vmatprep.subr.bf16.mxu0 0
        %2558 = vmatpush1.bf16.msra.mxu0 %v2200
        %2559 = vmatprep.subr.bf16.mxu0 0
        %2560 = vmatpush1.bf16.msra.mxu0 %v2199
        %2561 = vmatprep.subr.bf16.mxu0 0
        %2562 = vmatpush1.bf16.msra.mxu0 %v2198
        %2563 = vmatprep.subr.bf16.mxu0 0
        %2564 = vmatpush1.bf16.msra.mxu0 %v2197
        %2565 = vmatprep.subr.bf16.mxu0 0
        %2566 = vmatpush2.bf16.msra.mxu0 %v2212
        %2567 = vmatprep.subr.bf16.mxu0 0
        %2568 = vmatpush2.bf16.msra.mxu0 %v2211
        %2569 = vmatprep.subr.bf16.mxu0 0
        %2570 = vmatpush2.bf16.msra.mxu0 %v2210
        %2571 = vmatprep.subr.bf16.mxu0 0
        %2572 = vmatpush2.bf16.msra.mxu0 %v2209
        %2573 = vmatprep.subr.bf16.mxu0 0
        %2574 = vmatpush2.bf16.msra.mxu0 %v2208
        %2575 = vmatprep.subr.bf16.mxu0 0
        %2576 = vmatpush2.bf16.msra.mxu0 %v2207
        %2577 = vmatprep.subr.bf16.mxu0 0
        %2578 = vmatpush2.bf16.msra.mxu0 %v2206
        %2579 = vmatprep.subr.bf16.mxu0 0
        %2580 = vmatpush2.bf16.msra.mxu0 %v2205
        %2581 = vmatprep.mubr.bf16.mxu0 %v1593
        %2582 = vmatmul.mubr.bf16.gmra.mxu0 %v1579
        %v2583 = vpop.f32.mrf.mxu0
        %v2584 = vadd.f32 %v2544, %v2583
        %v2585 = vpop.f32.mrf.mxu0
        %v2586 = vpop.f32.mrf.mxu0
        %v2587 = vpop.f32.mrf.mxu0
        %2588 = vdwg.mxu0
        %2589 = vmatprep.subr.bf16.mxu0 0
        %2590 = vmatpush1.bf16.msra.mxu0 %v2220
        %2591 = vmatprep.subr.bf16.mxu0 0
        %2592 = vmatpush1.bf16.msra.mxu0 %v2219
        %2593 = vmatprep.subr.bf16.mxu0 0
        %2594 = vmatpush1.bf16.msra.mxu0 %v2218
        %2595 = vmatprep.subr.bf16.mxu0 0
        %2596 = vmatpush1.bf16.msra.mxu0 %v2217
        %2597 = vmatprep.subr.bf16.mxu0 0
        %2598 = vmatpush1.bf16.msra.mxu0 %v2216
        %2599 = vmatprep.subr.bf16.mxu0 0
        %2600 = vmatpush1.bf16.msra.mxu0 %v2215
        %2601 = vmatprep.subr.bf16.mxu0 0
        %2602 = vmatpush1.bf16.msra.mxu0 %v2214
        %2603 = vmatprep.subr.bf16.mxu0 0
        %2604 = vmatpush1.bf16.msra.mxu0 %v2213
        %2605 = vmatprep.subr.bf16.mxu0 0
        %2606 = vmatpush2.bf16.msra.mxu0 %v2228
        %2607 = vmatprep.subr.bf16.mxu0 0
        %2608 = vmatpush2.bf16.msra.mxu0 %v2227
        %2609 = vmatprep.subr.bf16.mxu0 0
        %2610 = vmatpush2.bf16.msra.mxu0 %v2226
        %2611 = vmatprep.subr.bf16.mxu0 0
        %2612 = vmatpush2.bf16.msra.mxu0 %v2225
        %2613 = vmatprep.subr.bf16.mxu0 0
        %2614 = vmatpush2.bf16.msra.mxu0 %v2224
        %2615 = vmatprep.subr.bf16.mxu0 0
        %2616 = vmatpush2.bf16.msra.mxu0 %v2223
        %2617 = vmatprep.subr.bf16.mxu0 0
        %2618 = vmatpush2.bf16.msra.mxu0 %v2222
        %2619 = vmatprep.subr.bf16.mxu0 0
        %2620 = vmatpush2.bf16.msra.mxu0 %v2221
        %2621 = vmatprep.mubr.bf16.mxu0 %v1603
        %2622 = vmatmul.mubr.bf16.gmra.mxu0 %v1601
        %v2623 = vpop.f32.mrf.mxu0
        %v2624 = vadd.f32 %v2584, %v2623
        %v2625 = vpop.f32.mrf.mxu0
        %v2626 = vpop.f32.mrf.mxu0
        %v2627 = vpop.f32.mrf.mxu0
        %2628 = vdwg.mxu0
        %2629 = vmatprep.subr.bf16.mxu0 0
        %2630 = vmatpush1.bf16.msra.mxu0 %v2236
        %2631 = vmatprep.subr.bf16.mxu0 0
        %2632 = vmatpush1.bf16.msra.mxu0 %v2235
        %2633 = vmatprep.subr.bf16.mxu0 0
        %2634 = vmatpush1.bf16.msra.mxu0 %v2234
        %2635 = vmatprep.subr.bf16.mxu0 0
        %2636 = vmatpush1.bf16.msra.mxu0 %v2233
        %2637 = vmatprep.subr.bf16.mxu0 0
        %2638 = vmatpush1.bf16.msra.mxu0 %v2232
        %2639 = vmatprep.subr.bf16.mxu0 0
        %2640 = vmatpush1.bf16.msra.mxu0 %v2231
        %2641 = vmatprep.subr.bf16.mxu0 0
        %2642 = vmatpush1.bf16.msra.mxu0 %v2230
        %2643 = vmatprep.subr.bf16.mxu0 0
        %2644 = vmatpush1.bf16.msra.mxu0 %v2229
        %2645 = vmatprep.subr.bf16.mxu0 0
        %2646 = vmatpush2.bf16.msra.mxu0 %v2244
        %2647 = vmatprep.subr.bf16.mxu0 0
        %2648 = vmatpush2.bf16.msra.mxu0 %v2243
        %2649 = vmatprep.subr.bf16.mxu0 0
        %2650 = vmatpush2.bf16.msra.mxu0 %v2242
        %2651 = vmatprep.subr.bf16.mxu0 0
        %2652 = vmatpush2.bf16.msra.mxu0 %v2241
        %2653 = vmatprep.subr.bf16.mxu0 0
        %2654 = vmatpush2.bf16.msra.mxu0 %v2240
        %2655 = vmatprep.subr.bf16.mxu0 0
        %2656 = vmatpush2.bf16.msra.mxu0 %v2239
        %2657 = vmatprep.subr.bf16.mxu0 0
        %2658 = vmatpush2.bf16.msra.mxu0 %v2238
        %2659 = vmatprep.subr.bf16.mxu0 0
        %2660 = vmatpush2.bf16.msra.mxu0 %v2237
        %2661 = vmatprep.mubr.bf16.mxu0 %v1600
        %2662 = vmatmul.mubr.bf16.gmra.mxu0 %v1586
        %v2663 = vpop.f32.mrf.mxu0
        %v2664 = vadd.f32 %v2624, %v2663
        %v2665 = vpop.f32.mrf.mxu0
        %v2666 = vpop.f32.mrf.mxu0
        %v2667 = vpop.f32.mrf.mxu0
        %2668 = vdwg.mxu0
        %2669 = vmatprep.subr.bf16.mxu0 0
        %2670 = vmatpush1.bf16.msra.mxu0 %v2252
        %2671 = vmatprep.subr.bf16.mxu0 0
        %2672 = vmatpush1.bf16.msra.mxu0 %v2251
        %2673 = vmatprep.subr.bf16.mxu0 0
        %2674 = vmatpush1.bf16.msra.mxu0 %v2250
        %2675 = vmatprep.subr.bf16.mxu0 0
        %2676 = vmatpush1.bf16.msra.mxu0 %v2249
        %2677 = vmatprep.subr.bf16.mxu0 0
        %2678 = vmatpush1.bf16.msra.mxu0 %v2248
        %2679 = vmatprep.subr.bf16.mxu0 0
        %2680 = vmatpush1.bf16.msra.mxu0 %v2247
        %2681 = vmatprep.subr.bf16.mxu0 0
        %2682 = vmatpush1.bf16.msra.mxu0 %v2246
        %2683 = vmatprep.subr.bf16.mxu0 0
        %2684 = vmatpush1.bf16.msra.mxu0 %v2245
        %2685 = vmatprep.subr.bf16.mxu0 0
        %2686 = vmatpush2.bf16.msra.mxu0 %v2260
        %2687 = vmatprep.subr.bf16.mxu0 0
        %2688 = vmatpush2.bf16.msra.mxu0 %v2259
        %2689 = vmatprep.subr.bf16.mxu0 0
        %2690 = vmatpush2.bf16.msra.mxu0 %v2258
        %2691 = vmatprep.subr.bf16.mxu0 0
        %2692 = vmatpush2.bf16.msra.mxu0 %v2257
        %2693 = vmatprep.subr.bf16.mxu0 0
        %2694 = vmatpush2.bf16.msra.mxu0 %v2256
        %2695 = vmatprep.subr.bf16.mxu0 0
        %2696 = vmatpush2.bf16.msra.mxu0 %v2255
        %2697 = vmatprep.subr.bf16.mxu0 0
        %2698 = vmatpush2.bf16.msra.mxu0 %v2254
        %2699 = vmatprep.subr.bf16.mxu0 0
        %2700 = vmatpush2.bf16.msra.mxu0 %v2253
        %2701 = vmatprep.mubr.bf16.mxu0 %v1604
        %2702 = vmatmul.mubr.bf16.gmra.mxu0 %v1602
        %v2703 = vpop.f32.mrf.mxu0
        %v2704 = vadd.f32 %v2664, %v2703
        %v2705 = vpop.f32.mrf.mxu0
        %v2706 = vpop.f32.mrf.mxu0
        %v2707 = vpop.f32.mrf.mxu0
        %2708 = vdwg.mxu0
        %v2709 = vadd.f32 %v1246, %v2704
        %2710 = vst [vmem:[#allocation2] sm:$0x1] %v2709
        %p2711 = scmp.eq.s32.totalorder %s18, 3
        // Predicated region
        $region74: #{bpnn_forward.3} parent=64 // pred_check
          %p2712 = pneg %p2711
        $region75: #{bpnn_forward.3} parent=64 // pred_check_branch
          %2714 = sbr.rel (%p2712) target = $region77
        $region76: #{bpnn_forward.3} parent=64 // pred_region
          %v2715 = vld [vmem:[#allocation2] sm:$0x1]
          %v2716 = vsub.f32 0.0, %v2715
          %2717 = vst [vmem:[%s1239] sm:$0x1] %v2716
        $region77: #{bpnn_forward.3} parent=64 // pred_fallthru
          _
        %p2718 = scmp.lt.s32.totalorder %s17, 1
        %s2719 = scalar_select %p2718, %s17, 1
        %s2720 = scalar_lea.vmem %s2, %s2719
        // Predicated region
        $region78: #{bpnn_forward.3} parent=64 // pred_check
          %p2721 = pneg %p97
        $region79: #{bpnn_forward.3} parent=64 // pred_check_branch
          %2723 = sbr.rel (%p2721) target = $region81
        $region80: #{bpnn_forward.3} parent=64 // pred_region
          _
        $region81: #{bpnn_forward.3} parent=64 // pred_fallthru
          _
      $region65: #{bpnn_forward.3} parent=5 // pred_fallthru
        _
      %p2724 = scmp.le.s32.totalorder 2, %s8
      // Predicated region
      $region82: #{bpnn_forward.3} parent=5 // pred_check
        %p2725 = pneg %p2724
      $region83: #{bpnn_forward.3} parent=5 // pred_check_branch
        %2727 = sbr.rel (%p2725) target = $region85
      $region84: #{bpnn_forward.3} parent=5 // pred_region
        %s2728 = ssub.s32 %s8, 2
        // Predicated region
        $region86: #{bpnn_forward.3} parent=84 // pred_check
          %p2729 = pneg %p103
        $region87: #{bpnn_forward.3} parent=84 // pred_check_branch
          %2731 = sbr.rel (%p2729) target = $region89
        $region88: #{bpnn_forward.3} parent=84 // pred_region
          %p2732 = scmp.lt.s32.totalorder %s19, 1
          %s2733 = scalar_select %p2732, %s19, 1
          %s2734 = scalar_lea.vmem %s2, %s2733
        $region89: #{bpnn_forward.3} parent=84 // pred_fallthru
          _
      $region85: #{bpnn_forward.3} parent=5 // pred_fallthru
        _
    $region6: #{bpnn_forward.3} parent=1 // loop_footer
      %s12 = sadd.s32 1, %s8
    $region7: #{bpnn_forward.3} parent=1 // loop_footer_branch
      %7 = sbr.rel target = $region3
    $region8: #{bpnn_forward.3} parent=1 // loop_exit
      _

// kernel: squeeze.1
$region0: #{squeeze.1}
  %s0 = inlined_call_operand.vmem [shape: f32[192], index: 0, kind: input, shape index: {}]
  %s1 = inlined_call_operand.vmem [shape: f32[64,3], index: 1, kind: output, shape index: {}]
  $region1: #{squeeze.1} parent=0
    #allocation0 [shape = 'u8[4096]{0}', space=vmem, size = 0x1000, scoped, tag = 'scoped mem for input reshape']
    %s3 = sshll.u32 1, 2
    %s4 = ssub.s32 %s3, 1
    %v5 = vld [vmem:[%s0] sm:%s4]
    %6 = vst [vmem:[#allocation0] sm:%s4] %v5
    %v7 = vld [vmem:[#allocation0] sm:$0x1]
    %vm8 = vcmask 23552
    %9 = vst.msk [vmem:[%s1] sm:$0x1] %vm8, %v7
    %s10 = scalar_lea.vmem [#allocation0], 1
    %v11 = vld [vmem:[%s10] sm:$0x1]
    %12 = vrot.lane.b32.xlu0 %v11, 127
    %v13 = vpop.permute.xlu0 %12
    %vm14 = vcmask 23552
    %s15 = scalar_lea.vmem %s1, 43
    %16 = vst.msk [vmem:[%s15] sm:$0x1] %vm14, %v13
    %v17 = vld [vmem:[#allocation0] sm:$0x1]
    %18 = vrot.lane.b32.xlu0 %v17, 125
    %v19 = vpop.permute.xlu0 %18
    %vm20 = vcmask 23552
    %s21 = scalar_lea.vmem %s1, 1
    %22 = vst.msk [vmem:[%s21] sm:$0x1] %vm20, %v19
    %s23 = scalar_lea.vmem [#allocation0], 1
    %v24 = vld [vmem:[%s23] sm:$0x1]
    %25 = vrot.lane.b32.xlu0 %v24, 124
    %v26 = vpop.permute.xlu0 %25
    %vm27 = vcmask 23552
    %s28 = scalar_lea.vmem %s1, 44
    %29 = vst.msk [vmem:[%s28] sm:$0x1] %vm27, %v26
    %v30 = vld [vmem:[#allocation0] sm:$0x1]
    %31 = vrot.lane.b32.xlu0 %v30, 122
    %v32 = vpop.permute.xlu0 %31
    %vm33 = vcmask 23552
    %s34 = scalar_lea.vmem %s1, 2
    %35 = vst.msk [vmem:[%s34] sm:$0x1] %vm33, %v32
    %s36 = scalar_lea.vmem [#allocation0], 1
    %v37 = vld [vmem:[%s36] sm:$0x1]
    %38 = vrot.lane.b32.xlu0 %v37, 121
    %v39 = vpop.permute.xlu0 %38
    %vm40 = vcmask 23552
    %s41 = scalar_lea.vmem %s1, 45
    %42 = vst.msk [vmem:[%s41] sm:$0x1] %vm40, %v39
    %v43 = vld [vmem:[#allocation0] sm:$0x1]
    %44 = vrot.lane.b32.xlu0 %v43, 119
    %v45 = vpop.permute.xlu0 %44
    %vm46 = vcmask 23552
    %s47 = scalar_lea.vmem %s1, 3
    %48 = vst.msk [vmem:[%s47] sm:$0x1] %vm46, %v45
    %s49 = scalar_lea.vmem [#allocation0], 1
    %v50 = vld [vmem:[%s49] sm:$0x1]
    %51 = vrot.lane.b32.xlu0 %v50, 118
    %v52 = vpop.permute.xlu0 %51
    %vm53 = vcmask 23552
    %s54 = scalar_lea.vmem %s1, 46
    %55 = vst.msk [vmem:[%s54] sm:$0x1] %vm53, %v52
    %v56 = vld [vmem:[#allocation0] sm:$0x1]
    %57 = vrot.lane.b32.xlu0 %v56, 116
    %v58 = vpop.permute.xlu0 %57
    %vm59 = vcmask 23552
    %s60 = scalar_lea.vmem %s1, 4
    %61 = vst.msk [vmem:[%s60] sm:$0x1] %vm59, %v58
    %s62 = scalar_lea.vmem [#allocation0], 1
    %v63 = vld [vmem:[%s62] sm:$0x1]
    %64 = vrot.lane.b32.xlu0 %v63, 115
    %v65 = vpop.permute.xlu0 %64
    %vm66 = vcmask 23552
    %s67 = scalar_lea.vmem %s1, 47
    %68 = vst.msk [vmem:[%s67] sm:$0x1] %vm66, %v65
    %v69 = vld [vmem:[#allocation0] sm:$0x1]
    %70 = vrot.lane.b32.xlu0 %v69, 113
    %v71 = vpop.permute.xlu0 %70
    %vm72 = vcmask 23552
    %s73 = scalar_lea.vmem %s1, 5
    %74 = vst.msk [vmem:[%s73] sm:$0x1] %vm72, %v71
    %s75 = scalar_lea.vmem [#allocation0], 1
    %v76 = vld [vmem:[%s75] sm:$0x1]
    %77 = vrot.lane.b32.xlu0 %v76, 112
    %v78 = vpop.permute.xlu0 %77
    %vm79 = vcmask 23552
    %s80 = scalar_lea.vmem %s1, 48
    %81 = vst.msk [vmem:[%s80] sm:$0x1] %vm79, %v78
    %v82 = vld [vmem:[#allocation0] sm:$0x1]
    %83 = vrot.lane.b32.xlu0 %v82, 110
    %v84 = vpop.permute.xlu0 %83
    %vm85 = vcmask 23552
    %s86 = scalar_lea.vmem %s1, 6
    %87 = vst.msk [vmem:[%s86] sm:$0x1] %vm85, %v84
    %s88 = scalar_lea.vmem [#allocation0], 1
    %v89 = vld [vmem:[%s88] sm:$0x1]
    %90 = vrot.lane.b32.xlu0 %v89, 109
    %v91 = vpop.permute.xlu0 %90
    %vm92 = vcmask 23552
    %s93 = scalar_lea.vmem %s1, 49
    %94 = vst.msk [vmem:[%s93] sm:$0x1] %vm92, %v91
    %v95 = vld [vmem:[#allocation0] sm:$0x1]
    %96 = vrot.lane.b32.xlu0 %v95, 107
    %v97 = vpop.permute.xlu0 %96
    %vm98 = vcmask 23552
    %s99 = scalar_lea.vmem %s1, 7
    %100 = vst.msk [vmem:[%s99] sm:$0x1] %vm98, %v97
    %s101 = scalar_lea.vmem [#allocation0], 1
    %v102 = vld [vmem:[%s101] sm:$0x1]
    %103 = vrot.lane.b32.xlu0 %v102, 106
    %v104 = vpop.permute.xlu0 %103
    %vm105 = vcmask 23552
    %s106 = scalar_lea.vmem %s1, 50
    %107 = vst.msk [vmem:[%s106] sm:$0x1] %vm105, %v104
    %v108 = vld [vmem:[#allocation0] sm:$0x1]
    %109 = vrot.lane.b32.xlu0 %v108, 104
    %v110 = vpop.permute.xlu0 %109
    %vm111 = vcmask 23552
    %s112 = scalar_lea.vmem %s1, 8
    %113 = vst.msk [vmem:[%s112] sm:$0x1] %vm111, %v110
    %s114 = scalar_lea.vmem [#allocation0], 1
    %v115 = vld [vmem:[%s114] sm:$0x1]
    %116 = vrot.lane.b32.xlu0 %v115, 103
    %v117 = vpop.permute.xlu0 %116
    %vm118 = vcmask 23552
    %s119 = scalar_lea.vmem %s1, 51
    %120 = vst.msk [vmem:[%s119] sm:$0x1] %vm118, %v117
    %v121 = vld [vmem:[#allocation0] sm:$0x1]
    %122 = vrot.lane.b32.xlu0 %v121, 101
    %v123 = vpop.permute.xlu0 %122
    %vm124 = vcmask 23552
    %s125 = scalar_lea.vmem %s1, 9
    %126 = vst.msk [vmem:[%s125] sm:$0x1] %vm124, %v123
    %s127 = scalar_lea.vmem [#allocation0], 1
    %v128 = vld [vmem:[%s127] sm:$0x1]
    %129 = vrot.lane.b32.xlu0 %v128, 100
    %v130 = vpop.permute.xlu0 %129
    %vm131 = vcmask 23552
    %s132 = scalar_lea.vmem %s1, 52
    %133 = vst.msk [vmem:[%s132] sm:$0x1] %vm131, %v130
    %v134 = vld [vmem:[#allocation0] sm:$0x1]
    %135 = vrot.lane.b32.xlu0 %v134, 98
    %v136 = vpop.permute.xlu0 %135
    %vm137 = vcmask 23552
    %s138 = scalar_lea.vmem %s1, 10
    %139 = vst.msk [vmem:[%s138] sm:$0x1] %vm137, %v136
    %s140 = scalar_lea.vmem [#allocation0], 1
    %v141 = vld [vmem:[%s140] sm:$0x1]
    %142 = vrot.lane.b32.xlu0 %v141, 97
    %v143 = vpop.permute.xlu0 %142
    %vm144 = vcmask 23552
    %s145 = scalar_lea.vmem %s1, 53
    %146 = vst.msk [vmem:[%s145] sm:$0x1] %vm144, %v143
    %v147 = vld [vmem:[#allocation0] sm:$0x1]
    %148 = vrot.lane.b32.xlu0 %v147, 95
    %v149 = vpop.permute.xlu0 %148
    %vm150 = vcmask 23552
    %s151 = scalar_lea.vmem %s1, 11
    %152 = vst.msk [vmem:[%s151] sm:$0x1] %vm150, %v149
    %s153 = scalar_lea.vmem [#allocation0], 1
    %v154 = vld [vmem:[%s153] sm:$0x1]
    %155 = vrot.lane.b32.xlu0 %v154, 94
    %v156 = vpop.permute.xlu0 %155
    %vm157 = vcmask 23552
    %s158 = scalar_lea.vmem %s1, 54
    %159 = vst.msk [vmem:[%s158] sm:$0x1] %vm157, %v156
    %v160 = vld [vmem:[#allocation0] sm:$0x1]
    %161 = vrot.lane.b32.xlu0 %v160, 92
    %v162 = vpop.permute.xlu0 %161
    %vm163 = vcmask 23552
    %s164 = scalar_lea.vmem %s1, 12
    %165 = vst.msk [vmem:[%s164] sm:$0x1] %vm163, %v162
    %s166 = scalar_lea.vmem [#allocation0], 1
    %v167 = vld [vmem:[%s166] sm:$0x1]
    %168 = vrot.lane.b32.xlu0 %v167, 91
    %v169 = vpop.permute.xlu0 %168
    %vm170 = vcmask 23552
    %s171 = scalar_lea.vmem %s1, 55
    %172 = vst.msk [vmem:[%s171] sm:$0x1] %vm170, %v169
    %v173 = vld [vmem:[#allocation0] sm:$0x1]
    %174 = vrot.lane.b32.xlu0 %v173, 89
    %v175 = vpop.permute.xlu0 %174
    %vm176 = vcmask 23552
    %s177 = scalar_lea.vmem %s1, 13
    %178 = vst.msk [vmem:[%s177] sm:$0x1] %vm176, %v175
    %s179 = scalar_lea.vmem [#allocation0], 1
    %v180 = vld [vmem:[%s179] sm:$0x1]
    %181 = vrot.lane.b32.xlu0 %v180, 88
    %v182 = vpop.permute.xlu0 %181
    %vm183 = vcmask 23552
    %s184 = scalar_lea.vmem %s1, 56
    %185 = vst.msk [vmem:[%s184] sm:$0x1] %vm183, %v182
    %v186 = vld [vmem:[#allocation0] sm:$0x1]
    %187 = vrot.lane.b32.xlu0 %v186, 86
    %v188 = vpop.permute.xlu0 %187
    %vm189 = vcmask 23552
    %s190 = scalar_lea.vmem %s1, 14
    %191 = vst.msk [vmem:[%s190] sm:$0x1] %vm189, %v188
    %s192 = scalar_lea.vmem [#allocation0], 1
    %v193 = vld [vmem:[%s192] sm:$0x1]
    %194 = vrot.lane.b32.xlu0 %v193, 85
    %v195 = vpop.permute.xlu0 %194
    %vm196 = vcmask 23552
    %s197 = scalar_lea.vmem %s1, 57
    %198 = vst.msk [vmem:[%s197] sm:$0x1] %vm196, %v195
    %v199 = vld [vmem:[#allocation0] sm:$0x1]
    %200 = vrot.lane.b32.xlu0 %v199, 83
    %v201 = vpop.permute.xlu0 %200
    %vm202 = vcmask 23552
    %s203 = scalar_lea.vmem %s1, 15
    %204 = vst.msk [vmem:[%s203] sm:$0x1] %vm202, %v201
    %s205 = scalar_lea.vmem [#allocation0], 1
    %v206 = vld [vmem:[%s205] sm:$0x1]
    %207 = vrot.lane.b32.xlu0 %v206, 82
    %v208 = vpop.permute.xlu0 %207
    %vm209 = vcmask 23552
    %s210 = scalar_lea.vmem %s1, 58
    %211 = vst.msk [vmem:[%s210] sm:$0x1] %vm209, %v208
    %v212 = vld [vmem:[#allocation0] sm:$0x1]
    %213 = vrot.lane.b32.xlu0 %v212, 80
    %v214 = vpop.permute.xlu0 %213
    %vm215 = vcmask 23552
    %s216 = scalar_lea.vmem %s1, 16
    %217 = vst.msk [vmem:[%s216] sm:$0x1] %vm215, %v214
    %s218 = scalar_lea.vmem [#allocation0], 1
    %v219 = vld [vmem:[%s218] sm:$0x1]
    %220 = vrot.lane.b32.xlu0 %v219, 79
    %v221 = vpop.permute.xlu0 %220
    %vm222 = vcmask 23552
    %s223 = scalar_lea.vmem %s1, 59
    %224 = vst.msk [vmem:[%s223] sm:$0x1] %vm222, %v221
    %v225 = vld [vmem:[#allocation0] sm:$0x1]
    %226 = vrot.lane.b32.xlu0 %v225, 77
    %v227 = vpop.permute.xlu0 %226
    %vm228 = vcmask 23552
    %s229 = scalar_lea.vmem %s1, 17
    %230 = vst.msk [vmem:[%s229] sm:$0x1] %vm228, %v227
    %s231 = scalar_lea.vmem [#allocation0], 1
    %v232 = vld [vmem:[%s231] sm:$0x1]
    %233 = vrot.lane.b32.xlu0 %v232, 76
    %v234 = vpop.permute.xlu0 %233
    %vm235 = vcmask 23552
    %s236 = scalar_lea.vmem %s1, 60
    %237 = vst.msk [vmem:[%s236] sm:$0x1] %vm235, %v234
    %v238 = vld [vmem:[#allocation0] sm:$0x1]
    %239 = vrot.lane.b32.xlu0 %v238, 74
    %v240 = vpop.permute.xlu0 %239
    %vm241 = vcmask 23552
    %s242 = scalar_lea.vmem %s1, 18
    %243 = vst.msk [vmem:[%s242] sm:$0x1] %vm241, %v240
    %s244 = scalar_lea.vmem [#allocation0], 1
    %v245 = vld [vmem:[%s244] sm:$0x1]
    %246 = vrot.lane.b32.xlu0 %v245, 73
    %v247 = vpop.permute.xlu0 %246
    %vm248 = vcmask 23552
    %s249 = scalar_lea.vmem %s1, 61
    %250 = vst.msk [vmem:[%s249] sm:$0x1] %vm248, %v247
    %v251 = vld [vmem:[#allocation0] sm:$0x1]
    %252 = vrot.lane.b32.xlu0 %v251, 71
    %v253 = vpop.permute.xlu0 %252
    %vm254 = vcmask 23552
    %s255 = scalar_lea.vmem %s1, 19
    %256 = vst.msk [vmem:[%s255] sm:$0x1] %vm254, %v253
    %s257 = scalar_lea.vmem [#allocation0], 1
    %v258 = vld [vmem:[%s257] sm:$0x1]
    %259 = vrot.lane.b32.xlu0 %v258, 70
    %v260 = vpop.permute.xlu0 %259
    %vm261 = vcmask 23552
    %s262 = scalar_lea.vmem %s1, 62
    %263 = vst.msk [vmem:[%s262] sm:$0x1] %vm261, %v260
    %v264 = vld [vmem:[#allocation0] sm:$0x1]
    %265 = vrot.lane.b32.xlu0 %v264, 68
    %v266 = vpop.permute.xlu0 %265
    %vm267 = vcmask 23552
    %s268 = scalar_lea.vmem %s1, 20
    %269 = vst.msk [vmem:[%s268] sm:$0x1] %vm267, %v266
    %s270 = scalar_lea.vmem [#allocation0], 1
    %v271 = vld [vmem:[%s270] sm:$0x1]
    %272 = vrot.lane.b32.xlu0 %v271, 67
    %v273 = vpop.permute.xlu0 %272
    %vm274 = vcmask 23552
    %s275 = scalar_lea.vmem %s1, 63
    %276 = vst.msk [vmem:[%s275] sm:$0x1] %vm274, %v273
    %v277 = vld [vmem:[#allocation0] sm:$0x1]
    %278 = vrot.lane.b32.xlu0 %v277, 65
    %v279 = vpop.permute.xlu0 %278
    %vm280 = vcmask 23552
    %s281 = scalar_lea.vmem %s1, 21
    %282 = vst.msk [vmem:[%s281] sm:$0x1] %vm280, %v279
    %v283 = vld [vmem:[#allocation0] sm:$0x1]
    %284 = vrot.lane.b32.xlu0 %v283, 62
    %v285 = vpop.permute.xlu0 %284
    %vm286 = vcmask 23552
    %s287 = scalar_lea.vmem %s1, 22
    %288 = vst.msk [vmem:[%s287] sm:$0x1] %vm286, %v285
    %v289 = vld [vmem:[#allocation0] sm:$0x1]
    %290 = vrot.lane.b32.xlu0 %v289, 59
    %v291 = vpop.permute.xlu0 %290
    %vm292 = vcmask 23552
    %s293 = scalar_lea.vmem %s1, 23
    %294 = vst.msk [vmem:[%s293] sm:$0x1] %vm292, %v291
    %v295 = vld [vmem:[#allocation0] sm:$0x1]
    %296 = vrot.lane.b32.xlu0 %v295, 56
    %v297 = vpop.permute.xlu0 %296
    %vm298 = vcmask 23552
    %s299 = scalar_lea.vmem %s1, 24
    %300 = vst.msk [vmem:[%s299] sm:$0x1] %vm298, %v297
    %v301 = vld [vmem:[#allocation0] sm:$0x1]
    %302 = vrot.lane.b32.xlu0 %v301, 53
    %v303 = vpop.permute.xlu0 %302
    %vm304 = vcmask 23552
    %s305 = scalar_lea.vmem %s1, 25
    %306 = vst.msk [vmem:[%s305] sm:$0x1] %vm304, %v303
    %v307 = vld [vmem:[#allocation0] sm:$0x1]
    %308 = vrot.lane.b32.xlu0 %v307, 50
    %v309 = vpop.permute.xlu0 %308
    %vm310 = vcmask 23552
    %s311 = scalar_lea.vmem %s1, 26
    %312 = vst.msk [vmem:[%s311] sm:$0x1] %vm310, %v309
    %v313 = vld [vmem:[#allocation0] sm:$0x1]
    %314 = vrot.lane.b32.xlu0 %v313, 47
    %v315 = vpop.permute.xlu0 %314
    %vm316 = vcmask 23552
    %s317 = scalar_lea.vmem %s1, 27
    %318 = vst.msk [vmem:[%s317] sm:$0x1] %vm316, %v315
    %v319 = vld [vmem:[#allocation0] sm:$0x1]
    %320 = vrot.lane.b32.xlu0 %v319, 44
    %v321 = vpop.permute.xlu0 %320
    %vm322 = vcmask 23552
    %s323 = scalar_lea.vmem %s1, 28
    %324 = vst.msk [vmem:[%s323] sm:$0x1] %vm322, %v321
    %v325 = vld [vmem:[#allocation0] sm:$0x1]
    %326 = vrot.lane.b32.xlu0 %v325, 41
    %v327 = vpop.permute.xlu0 %326
    %vm328 = vcmask 23552
    %s329 = scalar_lea.vmem %s1, 29
    %330 = vst.msk [vmem:[%s329] sm:$0x1] %vm328, %v327
    %v331 = vld [vmem:[#allocation0] sm:$0x1]
    %332 = vrot.lane.b32.xlu0 %v331, 38
    %v333 = vpop.permute.xlu0 %332
    %vm334 = vcmask 23552
    %s335 = scalar_lea.vmem %s1, 30
    %336 = vst.msk [vmem:[%s335] sm:$0x1] %vm334, %v333
    %v337 = vld [vmem:[#allocation0] sm:$0x1]
    %338 = vrot.lane.b32.xlu0 %v337, 35
    %v339 = vpop.permute.xlu0 %338
    %vm340 = vcmask 23552
    %s341 = scalar_lea.vmem %s1, 31
    %342 = vst.msk [vmem:[%s341] sm:$0x1] %vm340, %v339
    %v343 = vld [vmem:[#allocation0] sm:$0x1]
    %344 = vrot.lane.b32.xlu0 %v343, 32
    %v345 = vpop.permute.xlu0 %344
    %vm346 = vcmask 23552
    %s347 = scalar_lea.vmem %s1, 32
    %348 = vst.msk [vmem:[%s347] sm:$0x1] %vm346, %v345
    %v349 = vld [vmem:[#allocation0] sm:$0x1]
    %350 = vrot.lane.b32.xlu0 %v349, 29
    %v351 = vpop.permute.xlu0 %350
    %vm352 = vcmask 23552
    %s353 = scalar_lea.vmem %s1, 33
    %354 = vst.msk [vmem:[%s353] sm:$0x1] %vm352, %v351
    %v355 = vld [vmem:[#allocation0] sm:$0x1]
    %356 = vrot.lane.b32.xlu0 %v355, 26
    %v357 = vpop.permute.xlu0 %356
    %vm358 = vcmask 23552
    %s359 = scalar_lea.vmem %s1, 34
    %360 = vst.msk [vmem:[%s359] sm:$0x1] %vm358, %v357
    %v361 = vld [vmem:[#allocation0] sm:$0x1]
    %362 = vrot.lane.b32.xlu0 %v361, 23
    %v363 = vpop.permute.xlu0 %362
    %vm364 = vcmask 23552
    %s365 = scalar_lea.vmem %s1, 35
    %366 = vst.msk [vmem:[%s365] sm:$0x1] %vm364, %v363
    %v367 = vld [vmem:[#allocation0] sm:$0x1]
    %368 = vrot.lane.b32.xlu0 %v367, 20
    %v369 = vpop.permute.xlu0 %368
    %vm370 = vcmask 23552
    %s371 = scalar_lea.vmem %s1, 36
    %372 = vst.msk [vmem:[%s371] sm:$0x1] %vm370, %v369
    %v373 = vld [vmem:[#allocation0] sm:$0x1]
    %374 = vrot.lane.b32.xlu0 %v373, 17
    %v375 = vpop.permute.xlu0 %374
    %vm376 = vcmask 23552
    %s377 = scalar_lea.vmem %s1, 37
    %378 = vst.msk [vmem:[%s377] sm:$0x1] %vm376, %v375
    %v379 = vld [vmem:[#allocation0] sm:$0x1]
    %380 = vrot.lane.b32.xlu0 %v379, 14
    %v381 = vpop.permute.xlu0 %380
    %vm382 = vcmask 23552
    %s383 = scalar_lea.vmem %s1, 38
    %384 = vst.msk [vmem:[%s383] sm:$0x1] %vm382, %v381
    %v385 = vld [vmem:[#allocation0] sm:$0x1]
    %386 = vrot.lane.b32.xlu0 %v385, 11
    %v387 = vpop.permute.xlu0 %386
    %vm388 = vcmask 23552
    %s389 = scalar_lea.vmem %s1, 39
    %390 = vst.msk [vmem:[%s389] sm:$0x1] %vm388, %v387
    %v391 = vld [vmem:[#allocation0] sm:$0x1]
    %392 = vrot.lane.b32.xlu0 %v391, 8
    %v393 = vpop.permute.xlu0 %392
    %vm394 = vcmask 23552
    %s395 = scalar_lea.vmem %s1, 40
    %396 = vst.msk [vmem:[%s395] sm:$0x1] %vm394, %v393
    %v397 = vld [vmem:[#allocation0] sm:$0x1]
    %398 = vrot.lane.b32.xlu0 %v397, 5
    %v399 = vpop.permute.xlu0 %398
    %vm400 = vcmask 23552
    %s401 = scalar_lea.vmem %s1, 41
    %402 = vst.msk [vmem:[%s401] sm:$0x1] %vm400, %v399
    %v403 = vld [vmem:[#allocation0] sm:$0x1]
    %s404 = scalar_lea.vmem [#allocation0], 1
    %v405 = vld [vmem:[%s404] sm:$0x1]
    %vm406 = vcmask 1031168
    %v407 = vsel %vm406, %v405, %v403
    %408 = vrot.lane.b32.xlu0 %v407, 2
    %v409 = vpop.permute.xlu0 %408
    %vm410 = vcmask 15360
    %s411 = scalar_lea.vmem %s1, 42
    %412 = vst.msk [vmem:[%s411] sm:$0x1] %vm410, %v409
    %vm413 = vcmask 23568
    %s414 = scalar_lea.vmem %s1, 42
    %415 = vst.msk [vmem:[%s414] sm:$0x1] %vm413, %v409

</llo_original>
